<compile_context>
chip_gen: v6e
topology: v6e:2x2x1
jax: 0.10.0
libtpu: 0.0.40
codegen_flags: <defaults>
</compile_context>

<pallas_src>
import jax
import jax.numpy as jnp
from jax import lax
from jax.experimental import pallas as pl
from jax.experimental.pallas import tpu as pltpu


def _round_up(x, m):
    return (x + m - 1) // m * m


def _pick_time_chunk(T, max_chunk=8):
    """Largest divisor of T that is <= max_chunk (grid needs T % chunk == 0)."""
    for c in range(min(T, max_chunk), 0, -1):
        if T % c == 0:
            return c
    return 1


# ---------------------------------------------------------------------------
# Kernel 1: parallel input projection  gi = x @ [W_ir|W_iz|W_in] + b_folded
# One lane-dense matmul per time chunk, grid axis fully parallel.
# ---------------------------------------------------------------------------
def _input_proj_kernel(x_ref, wi_ref, bi_ref, gi_ref):
    tc, b, e = x_ref.shape
    x = x_ref[...].reshape(tc * b, e)                       # (T_CHUNK*B, E_pad)
    gi = jnp.dot(x, wi_ref[...],
                 preferred_element_type=jnp.float32) + bi_ref[...]
    gi_ref[...] = gi.reshape(gi_ref.shape)                  # (T_CHUNK, B, 3H)


# ---------------------------------------------------------------------------
# Kernel 2: sequential GRU recurrence (time-chunked) + per-chunk output Linear.
#   r = sigmoid(gi_r + h@W_hr)
#   z = sigmoid(gi_z + h@W_hz)
#   n = tanh   (gi_n + r * (h@W_hn + b_hn))
#   h = (1-z)*n + z*h
# where gi already contains the folded input biases.
# ---------------------------------------------------------------------------
def _gru_seq_kernel(gi_ref, h0_ref, wh_ref, bhn_ref, wo_ref, bo_ref,
                    out_ref, hlast_ref,
                    h_scratch, hs_scratch):
    tc = pl.program_id(0)
    t_chunk, b, _ = gi_ref.shape
    hid = h_scratch.shape[-1]

    @pl.when(tc == 0)
    def _():
        h_scratch[...] = h0_ref[...]

    bhn = bhn_ref[...]                                       # (1, H)

    def step(i, h):
        gi = gi_ref[i]                                       # (B, 3H)
        gh = jnp.dot(h, wh_ref[...],
                     preferred_element_type=jnp.float32)     # (B, 3H), one fused matmul
        r = jax.nn.sigmoid(gi[:, :hid] + gh[:, :hid])
        z = jax.nn.sigmoid(gi[:, hid:2 * hid] + gh[:, hid:2 * hid])
        n = jnp.tanh(gi[:, 2 * hid:] + r * (gh[:, 2 * hid:] + bhn))
        h_new = (1.0 - z) * n + z * h
        hs_scratch[i] = h_new
        return h_new

    h_final = lax.fori_loop(0, t_chunk, step, h_scratch[...], unroll=True)
    h_scratch[...] = h_final

    # Output Linear hoisted out of the per-timestep loop:
    # one (T_CHUNK*B, H) x (H, 4) matmul per chunk.
    hs = hs_scratch[...].reshape(t_chunk * b, hid)
    logits = jnp.dot(hs, wo_ref[...],
                     preferred_element_type=jnp.float32) + bo_ref[...]
    out_ref[...] = logits.reshape(out_ref.shape)

    @pl.when(tc == pl.num_programs(0) - 1)
    def _():
        hlast_ref[...] = h_final


# ---------------------------------------------------------------------------
# Parameters (PyTorch-style layout: weights stored transposed, (in, out)).
# ---------------------------------------------------------------------------
def init_params(key, vocab_size, emb_size, gru_size, out_size=4):
    ks = jax.random.split(key, 16)
    bound = 1.0 / jnp.sqrt(gru_size)

    def u(k, shape):
        return jax.random.uniform(k, shape, jnp.float32, -bound, bound)

    emb = jax.random.normal(ks[0], (vocab_size, emb_size), jnp.float32)
    emb = emb.at[1].set(0.0)                      # padding_idx=1

    return dict(
        emb=emb,
        wir=u(ks[1], (emb_size, gru_size)),
        wiz=u(ks[2], (emb_size, gru_size)),
        win=u(ks[3], (emb_size, gru_size)),
        whr=u(ks[4], (gru_size, gru_size)),
        whz=u(ks[5], (gru_size, gru_size)),
        whn=u(ks[6], (gru_size, gru_size)),
        bir=u(ks[7], (1, gru_size)),
        biz=u(ks[8], (1, gru_size)),
        bin=u(ks[9], (1, gru_size)),
        bhr=u(ks[10], (1, gru_size)),
        bhz=u(ks[11], (1, gru_size)),
        bhn=u(ks[12], (1, gru_size)),
        wo=u(ks[13], (gru_size, out_size)),
        bo=u(ks[14], (1, out_size)),
    )


@jax.jit
def rnnlm_forward(x_ids, params, h_last=None):
    """Equivalent of RNNLM.forward: returns (out, h).

    x_ids: (B, T) int32 token ids.
    out:   (B, T, 4) f32 logits.
    h:     (1, B, H) f32 final hidden state (matches nn.GRU's (1, B, H)).
    """
    emb = params["emb"]
    B, T = x_ids.shape
    E = emb.shape[1]
    H = params["whr"].shape[0]
    O = params["wo"].shape[1]
    H3 = 3 * H
    t_chunk = _pick_time_chunk(T)
    n_chunks = T // t_chunk

    # --- glue: fuse/fold GRU weights (would be pre-packed once offline). ----
    wi = jnp.concatenate([params["wir"], params["wiz"], params["win"]], axis=1)  # (E, 3H)
    wh = jnp.concatenate([params["whr"], params["whz"], params["whn"]], axis=1)  # (H, 3H)
    bi = jnp.concatenate([params["bir"] + params["bhr"],
                          params["biz"] + params["bhz"],
                          params["bin"]], axis=1)                                # (1, 3H)
    bhn = params["bhn"]                                                          # (1, H)

    # --- glue: embedding gather produced time-major directly (no (B,T,E)
    #     transpose round-trip; x_ids.T is a tiny int transpose).
    # TODO(synk): could be fused into the kernel via scalar-prefetched ids +
    #             manual DMA row gather from the HBM embedding table.
    emb_tm = jnp.take(emb, x_ids.T, axis=0).astype(jnp.float32)   # (T, B, E)

    # Zero-pad E to a lane multiple (zeros contribute exactly 0 to x @ W_i).
    E_pad = _round_up(E, 128)
    if E_pad != E:
        emb_tm = jnp.pad(emb_tm, ((0, 0), (0, 0), (0, E_pad - E)))
        wi = jnp.pad(wi, ((0, E_pad - E), (0, 0)))

    if h_last is None:
        h0 = jnp.zeros((B, H), jnp.float32)
    else:
        h0 = h_last[0].astype(jnp.float32)

    def const(shape):
        nd = len(shape)
        return pl.BlockSpec(shape, lambda t: (0,) * nd)

    # --- phase 1: parallel, lane-dense input projection over all timesteps --
    gi = pl.pallas_call(
        _input_proj_kernel,
        out_shape=jax.ShapeDtypeStruct((T, B, H3), jnp.float32),
        grid_spec=pltpu.PrefetchScalarGridSpec(
            num_scalar_prefetch=0,
            grid=(n_chunks,),
            in_specs=[
                pl.BlockSpec((t_chunk, B, E_pad), lambda t: (t, 0, 0)),
                const((E_pad, H3)),
                const((1, H3)),
            ],
            out_specs=pl.BlockSpec((t_chunk, B, H3), lambda t: (t, 0, 0)),
        ),
        compiler_params=pltpu.CompilerParams(
            dimension_semantics=("parallel",)),
    )(emb_tm, wi, bi)

    # --- phase 2: sequential recurrence, time chunked ------------------------
    out_tm, h_final = pl.pallas_call(
        _gru_seq_kernel,
        out_shape=(jax.ShapeDtypeStruct((T, B, O), jnp.float32),
                   jax.ShapeDtypeStruct((B, H), jnp.float32)),
        grid_spec=pltpu.PrefetchScalarGridSpec(
            num_scalar_prefetch=0,
            grid=(n_chunks,),
            in_specs=[
                pl.BlockSpec((t_chunk, B, H3), lambda t: (t, 0, 0)),  # gi chunk
                const((B, H)),                                        # h0
                const((H, H3)),                                       # W_h fused
                const((1, H)),                                        # b_hn
                const((H, O)),                                        # W_o
                const((1, O)),                                        # b_o
            ],
            out_specs=[
                pl.BlockSpec((t_chunk, B, O), lambda t: (t, 0, 0)),   # logits chunk
                const((B, H)),                                        # final hidden (resident)
            ],
            scratch_shapes=[
                pltpu.VMEM((B, H), jnp.float32),          # hidden-state carry
                pltpu.VMEM((t_chunk, B, H), jnp.float32), # chunk hidden states
            ],
        ),
        compiler_params=pltpu.CompilerParams(
            dimension_semantics=("arbitrary",)),          # recurrence carry across chunks
    )(gi, h0, wh, bhn, params["wo"], params["bo"])

    out = jnp.transpose(out_tm, (1, 0, 2))   # (B, T, 4)  -- tiny array
    h = h_final[None]                        # (1, B, H)
    return out, h


# ---------------------------------------------------------------------------
# Pure-JAX reference (classic unpacked GRU) to cross-check the fused kernels.
# ---------------------------------------------------------------------------
def _reference_forward(x_ids, params, h_last=None):
    emb_x = jnp.take(params["emb"], x_ids, axis=0)       # (B, T, E)
    B = emb_x.shape[0]
    H = params["whr"].shape[0]
    h0 = jnp.zeros((B, H), jnp.float32) if h_last is None else h_last[0]

    def step(h, x_t):
        r = jax.nn.sigmoid(x_t @ params["wir"] + params["bir"]
                           + h @ params["whr"] + params["bhr"])
        z = jax.nn.sigmoid(x_t @ params["wiz"] + params["biz"]
                           + h @ params["whz"] + params["bhz"])
        n = jnp.tanh(x_t @ params["win"] + params["bin"]
                     + r * (h @ params["whn"] + params["bhn"]))
        h_new = (1.0 - z) * n + z * h
        return h_new, h_new

    h_fin, hs = jax.lax.scan(step, h0, jnp.transpose(emb_x, (1, 0, 2)))
    out = jnp.einsum("tbh,ho->tbo", hs, params["wo"]) + params["bo"]
    return jnp.transpose(out, (1, 0, 2)), h_fin[None]


if __name__ == "__main__":
    # Module defaults: emb_size=100, gru_size=128, out=4.
    VOCAB, EMB, HID, OUT = 50, 100, 128, 4
    B, T = 8, 16          # B >= 8 (sublane width); T chunked by 8 -> 2 grid steps

    key = jax.random.PRNGKey(0)
    k_param, k_tok = jax.random.split(key)
    params = init_params(k_param, VOCAB, EMB, HID, OUT)

    x_ids = jax.random.randint(k_tok, (B, T), 0, VOCAB, dtype=jnp.int32)
    x_ids = x_ids.at[0, -2:].set(1)   # include some padding_idx tokens

    out, h = rnnlm_forward(x_ids, params)
    jax.block_until_ready((out, h))

    out_ref, h_ref = _reference_forward(x_ids, params)
    assert out.shape == (B, T, OUT) and h.shape == (1, B, HID)
    assert jnp.allclose(out, out_ref, atol=1e-4, rtol=1e-4), \
        float(jnp.max(jnp.abs(out - out_ref)))
    assert jnp.allclose(h, h_ref, atol=1e-4, rtol=1e-4), \
        float(jnp.max(jnp.abs(h - h_ref)))

    print("KERNEL_OK")
</pallas_src>

<mosaic_0001>
module attributes {stable_mosaic.version = 11 : i64} {
  func.func @_input_proj_kernel(%arg0: i32, %arg1: memref<8x8x128xf32, #tpu.memory_space<vmem>>, %arg2: memref<128x384xf32, #tpu.memory_space<vmem>>, %arg3: memref<1x384xf32, #tpu.memory_space<vmem>>, %arg4: memref<8x8x384xf32, #tpu.memory_space<vmem>>) attributes {dimension_semantics = [#tpu.dimension_semantics<parallel>], iteration_bounds = array<i64: 2>, scalar_prefetch = 0 : i64, scratch_operands = 0 : i64, tpu.core_type = #tpu.core_type<tc>, window_params = [{transform_indices = @transform_0, window_bounds = array<i64: 8, 8, 128>}, {pipeline_mode = #tpu.pipeline_mode<synchronous>, transform_indices = @transform_1, window_bounds = array<i64: 128, 384>}, {pipeline_mode = #tpu.pipeline_mode<synchronous>, transform_indices = @transform_2, window_bounds = array<i64: 1, 384>}, {transform_indices = @transform_3, window_bounds = array<i64: 8, 8, 384>}]} {
    %c0 = arith.constant 0 : index
    %c0_0 = arith.constant 0 : index
    %c0_1 = arith.constant 0 : index
    %0 = vector.load %arg1[%c0, %c0_0, %c0_1] : memref<8x8x128xf32, #tpu.memory_space<vmem>>, vector<8x8x128xf32>
    %1 = vector.shape_cast %0 : vector<8x8x128xf32> to vector<64x128xf32>
    %c0_2 = arith.constant 0 : index
    %c0_3 = arith.constant 0 : index
    %2 = vector.load %arg2[%c0_2, %c0_3] : memref<128x384xf32, #tpu.memory_space<vmem>>, vector<128x384xf32>
    %cst = arith.constant dense<0.000000e+00> : vector<64x384xf32>
    %3 = tpu.matmul %1, %2, %cst {dimension_numbers = #tpu.dot_dimension_numbers<[1], [0], [0], [1], [0, 0, 1, 1], [], []>} : vector<64x128xf32>, vector<128x384xf32>, vector<64x384xf32> -> vector<64x384xf32>
    %c0_4 = arith.constant 0 : index
    %c0_5 = arith.constant 0 : index
    %4 = vector.load %arg3[%c0_4, %c0_5] : memref<1x384xf32, #tpu.memory_space<vmem>>, vector<1x384xf32>
    %5 = vector.broadcast %4 : vector<1x384xf32> to vector<64x384xf32>
    %6 = arith.addf %3, %5 : vector<64x384xf32>
    %7 = vector.shape_cast %6 : vector<64x384xf32> to vector<8x8x384xf32>
    %c0_6 = arith.constant 0 : index
    %c0_7 = arith.constant 0 : index
    %c0_8 = arith.constant 0 : index
    %8 = vector.load %arg4[%c0_6, %c0_7, %c0_8] : memref<8x8x384xf32, #tpu.memory_space<vmem>>, vector<8x8x384xf32>
    tpu.vector_store %arg4[%c0_6, %c0_7, %c0_8], %7 {strides = array<i32>} : memref<8x8x384xf32, #tpu.memory_space<vmem>>, vector<8x8x384xf32>,
    return
  }
  func.func @transform_0(%arg0: i32) -> (i32, i32, i32) {
    %c0_i32 = arith.constant 0 : i32
    %c0_i32_0 = arith.constant 0 : i32
    %c0_i32_1 = arith.constant 0 : i32
    return %arg0, %c0_i32, %c0_i32_0 : i32, i32, i32
  }
  func.func @transform_1(%arg0: i32) -> (i32, i32) {
    %c0_i32 = arith.constant 0 : i32
    %c0_i32_0 = arith.constant 0 : i32
    %c0_i32_1 = arith.constant 0 : i32
    return %c0_i32, %c0_i32_0 : i32, i32
  }
  func.func @transform_2(%arg0: i32) -> (i32, i32) {
    %c0_i32 = arith.constant 0 : i32
    %c0_i32_0 = arith.constant 0 : i32
    %c0_i32_1 = arith.constant 0 : i32
    return %c0_i32, %c0_i32_0 : i32, i32
  }
  func.func @transform_3(%arg0: i32) -> (i32, i32, i32) {
    %c0_i32 = arith.constant 0 : i32
    %c0_i32_0 = arith.constant 0 : i32
    %c0_i32_1 = arith.constant 0 : i32
    return %arg0, %c0_i32, %c0_i32_0 : i32, i32, i32
  }
}

module attributes {stable_mosaic.version = 11 : i64} {
  func.func @_gru_seq_kernel(%arg0: i32, %arg1: memref<8x8x384xf32, #tpu.memory_space<vmem>>, %arg2: memref<8x128xf32, #tpu.memory_space<vmem>>, %arg3: memref<128x384xf32, #tpu.memory_space<vmem>>, %arg4: memref<1x128xf32, #tpu.memory_space<vmem>>, %arg5: memref<128x4xf32, #tpu.memory_space<vmem>>, %arg6: memref<1x4xf32, #tpu.memory_space<vmem>>, %arg7: memref<8x8x4xf32, #tpu.memory_space<vmem>>, %arg8: memref<8x128xf32, #tpu.memory_space<vmem>>, %arg9: memref<8x128xf32, #tpu.memory_space<vmem>>, %arg10: memref<8x8x128xf32, #tpu.memory_space<vmem>>) attributes {dimension_semantics = [#tpu.dimension_semantics<arbitrary>], iteration_bounds = array<i64: 2>, scalar_prefetch = 0 : i64, scratch_operands = 2 : i64, tpu.core_type = #tpu.core_type<tc>, window_params = [{transform_indices = @transform_0, window_bounds = array<i64: 8, 8, 384>}, {pipeline_mode = #tpu.pipeline_mode<synchronous>, transform_indices = @transform_1, window_bounds = array<i64: 8, 128>}, {pipeline_mode = #tpu.pipeline_mode<synchronous>, transform_indices = @transform_2, window_bounds = array<i64: 128, 384>}, {pipeline_mode = #tpu.pipeline_mode<synchronous>, transform_indices = @transform_3, window_bounds = array<i64: 1, 128>}, {pipeline_mode = #tpu.pipeline_mode<synchronous>, transform_indices = @transform_4, window_bounds = array<i64: 128, 4>}, {pipeline_mode = #tpu.pipeline_mode<synchronous>, transform_indices = @transform_5, window_bounds = array<i64: 1, 4>}, {transform_indices = @transform_6, window_bounds = array<i64: 8, 8, 4>}, {pipeline_mode = #tpu.pipeline_mode<synchronous>, transform_indices = @transform_7, window_bounds = array<i64: 8, 128>}]} {
    %c0_i32 = arith.constant 0 : i32
    %0 = arith.cmpi eq, %arg0, %c0_i32 : i32
    %1 = arith.extui %0 : i1 to i32
    %c0_i32_0 = arith.constant 0 : i32
    %2 = arith.cmpi ne, %1, %c0_i32_0 : i32
    scf.if %2 {
      %c0_99 = arith.constant 0 : index
      %c0_100 = arith.constant 0 : index
      %314 = vector.load %arg2[%c0_99, %c0_100] : memref<8x128xf32, #tpu.memory_space<vmem>>, vector<8x128xf32>
      %c0_101 = arith.constant 0 : index
      %c0_102 = arith.constant 0 : index
      %315 = vector.load %arg9[%c0_101, %c0_102] : memref<8x128xf32, #tpu.memory_space<vmem>>, vector<8x128xf32>
      tpu.vector_store %arg9[%c0_101, %c0_102], %314 {strides = array<i32>} : memref<8x128xf32, #tpu.memory_space<vmem>>, vector<8x128xf32>,
    } else {
    }
    %c0 = arith.constant 0 : index
    %c0_1 = arith.constant 0 : index
    %3 = vector.load %arg4[%c0, %c0_1] : memref<1x128xf32, #tpu.memory_space<vmem>>, vector<1x128xf32>
    %c0_2 = arith.constant 0 : index
    %c0_3 = arith.constant 0 : index
    %4 = vector.load %arg9[%c0_2, %c0_3] : memref<8x128xf32, #tpu.memory_space<vmem>>, vector<8x128xf32>
    %c0_i32_4 = arith.constant 0 : i32
    %5 = arith.index_cast %c0_i32_4 : i32 to index
    %c0_5 = arith.constant 0 : index
    %c0_6 = arith.constant 0 : index
    %6 = vector.load %arg1[%5, %c0_5, %c0_6] : memref<8x8x384xf32, #tpu.memory_space<vmem>>, vector<1x8x384xf32>
    %7 = vector.shape_cast %6 : vector<1x8x384xf32> to vector<8x384xf32>
    %c0_7 = arith.constant 0 : index
    %c0_8 = arith.constant 0 : index
    %8 = vector.load %arg3[%c0_7, %c0_8] : memref<128x384xf32, #tpu.memory_space<vmem>>, vector<128x384xf32>
    %cst = arith.constant dense<0.000000e+00> : vector<8x384xf32>
    %9 = tpu.matmul %4, %8, %cst {dimension_numbers = #tpu.dot_dimension_numbers<[1], [0], [0], [1], [0, 0, 1, 1], [], []>} : vector<8x128xf32>, vector<128x384xf32>, vector<8x384xf32> -> vector<8x384xf32>
    %10 = vector.extract_strided_slice %7 {offsets = [0, 0], sizes = [8, 128], strides = [1, 1]} : vector<8x384xf32> to vector<8x128xf32>
    %11 = vector.extract_strided_slice %9 {offsets = [0, 0], sizes = [8, 128], strides = [1, 1]} : vector<8x384xf32> to vector<8x128xf32>
    %12 = arith.addf %10, %11 : vector<8x128xf32>
    %13 = arith.negf %12 : vector<8x128xf32>
    %14 = math.exp %13 : vector<8x128xf32>
    %cst_9 = arith.constant 1.000000e+00 : f32
    %15 = vector.broadcast %cst_9 : f32 to vector<8x128xf32>
    %16 = arith.addf %15, %14 : vector<8x128xf32>
    %17 = arith.divf %15, %16 : vector<8x128xf32>
    %18 = vector.extract_strided_slice %7 {offsets = [0, 128], sizes = [8, 128], strides = [1, 1]} : vector<8x384xf32> to vector<8x128xf32>
    %19 = vector.extract_strided_slice %9 {offsets = [0, 128], sizes = [8, 128], strides = [1, 1]} : vector<8x384xf32> to vector<8x128xf32>
    %20 = arith.addf %18, %19 : vector<8x128xf32>
    %21 = arith.negf %20 : vector<8x128xf32>
    %22 = math.exp %21 : vector<8x128xf32>
    %cst_10 = arith.constant 1.000000e+00 : f32
    %23 = vector.broadcast %cst_10 : f32 to vector<8x128xf32>
    %24 = arith.addf %23, %22 : vector<8x128xf32>
    %25 = arith.divf %23, %24 : vector<8x128xf32>
    %26 = vector.extract_strided_slice %7 {offsets = [0, 256], sizes = [8, 128], strides = [1, 1]} : vector<8x384xf32> to vector<8x128xf32>
    %27 = vector.extract_strided_slice %9 {offsets = [0, 256], sizes = [8, 128], strides = [1, 1]} : vector<8x384xf32> to vector<8x128xf32>
    %28 = vector.broadcast %3 : vector<1x128xf32> to vector<8x128xf32>
    %29 = arith.addf %27, %28 : vector<8x128xf32>
    %30 = arith.mulf %17, %29 : vector<8x128xf32>
    %31 = arith.addf %26, %30 : vector<8x128xf32>
    %32 = math.tanh %31 : vector<8x128xf32>
    %cst_11 = arith.constant 1.000000e+00 : f32
    %33 = vector.broadcast %cst_11 : f32 to vector<8x128xf32>
    %34 = arith.subf %33, %25 : vector<8x128xf32>
    %35 = arith.mulf %34, %32 : vector<8x128xf32>
    %36 = arith.mulf %25, %4 : vector<8x128xf32>
    %37 = arith.addf %35, %36 : vector<8x128xf32>
    %38 = arith.index_cast %c0_i32_4 : i32 to index
    %c0_12 = arith.constant 0 : index
    %c0_13 = arith.constant 0 : index
    %39 = vector.load %arg10[%38, %c0_12, %c0_13] : memref<8x8x128xf32, #tpu.memory_space<vmem>>, vector<1x8x128xf32>
    %40 = vector.shape_cast %39 : vector<1x8x128xf32> to vector<8x128xf32>
    %41 = vector.shape_cast %37 : vector<8x128xf32> to vector<1x8x128xf32>
    tpu.vector_store %arg10[%38, %c0_12, %c0_13], %41 {strides = array<i32>} : memref<8x8x128xf32, #tpu.memory_space<vmem>>, vector<1x8x128xf32>,
    %c1_i32 = arith.constant 1 : i32
    %42 = arith.index_cast %c1_i32 : i32 to index
    %c0_14 = arith.constant 0 : index
    %c0_15 = arith.constant 0 : index
    %43 = vector.load %arg1[%42, %c0_14, %c0_15] : memref<8x8x384xf32, #tpu.memory_space<vmem>>, vector<1x8x384xf32>
    %44 = vector.shape_cast %43 : vector<1x8x384xf32> to vector<8x384xf32>
    %c0_16 = arith.constant 0 : index
    %c0_17 = arith.constant 0 : index
    %45 = vector.load %arg3[%c0_16, %c0_17] : memref<128x384xf32, #tpu.memory_space<vmem>>, vector<128x384xf32>
    %cst_18 = arith.constant dense<0.000000e+00> : vector<8x384xf32>
    %46 = tpu.matmul %37, %45, %cst_18 {dimension_numbers = #tpu.dot_dimension_numbers<[1], [0], [0], [1], [0, 0, 1, 1], [], []>} : vector<8x128xf32>, vector<128x384xf32>, vector<8x384xf32> -> vector<8x384xf32>
    %47 = vector.extract_strided_slice %44 {offsets = [0, 0], sizes = [8, 128], strides = [1, 1]} : vector<8x384xf32> to vector<8x128xf32>
    %48 = vector.extract_strided_slice %46 {offsets = [0, 0], sizes = [8, 128], strides = [1, 1]} : vector<8x384xf32> to vector<8x128xf32>
    %49 = arith.addf %47, %48 : vector<8x128xf32>
    %50 = arith.negf %49 : vector<8x128xf32>
    %51 = math.exp %50 : vector<8x128xf32>
    %cst_19 = arith.constant 1.000000e+00 : f32
    %52 = vector.broadcast %cst_19 : f32 to vector<8x128xf32>
    %53 = arith.addf %52, %51 : vector<8x128xf32>
    %54 = arith.divf %52, %53 : vector<8x128xf32>
    %55 = vector.extract_strided_slice %44 {offsets = [0, 128], sizes = [8, 128], strides = [1, 1]} : vector<8x384xf32> to vector<8x128xf32>
    %56 = vector.extract_strided_slice %46 {offsets = [0, 128], sizes = [8, 128], strides = [1, 1]} : vector<8x384xf32> to vector<8x128xf32>
    %57 = arith.addf %55, %56 : vector<8x128xf32>
    %58 = arith.negf %57 : vector<8x128xf32>
    %59 = math.exp %58 : vector<8x128xf32>
    %cst_20 = arith.constant 1.000000e+00 : f32
    %60 = vector.broadcast %cst_20 : f32 to vector<8x128xf32>
    %61 = arith.addf %60, %59 : vector<8x128xf32>
    %62 = arith.divf %60, %61 : vector<8x128xf32>
    %63 = vector.extract_strided_slice %44 {offsets = [0, 256], sizes = [8, 128], strides = [1, 1]} : vector<8x384xf32> to vector<8x128xf32>
    %64 = vector.extract_strided_slice %46 {offsets = [0, 256], sizes = [8, 128], strides = [1, 1]} : vector<8x384xf32> to vector<8x128xf32>
    %65 = vector.broadcast %3 : vector<1x128xf32> to vector<8x128xf32>
    %66 = arith.addf %64, %65 : vector<8x128xf32>
    %67 = arith.mulf %54, %66 : vector<8x128xf32>
    %68 = arith.addf %63, %67 : vector<8x128xf32>
    %69 = math.tanh %68 : vector<8x128xf32>
    %cst_21 = arith.constant 1.000000e+00 : f32
    %70 = vector.broadcast %cst_21 : f32 to vector<8x128xf32>
    %71 = arith.subf %70, %62 : vector<8x128xf32>
    %72 = arith.mulf %71, %69 : vector<8x128xf32>
    %73 = arith.mulf %62, %37 : vector<8x128xf32>
    %74 = arith.addf %72, %73 : vector<8x128xf32>
    %75 = arith.index_cast %c1_i32 : i32 to index
    %c0_22 = arith.constant 0 : index
    %c0_23 = arith.constant 0 : index
    %76 = vector.load %arg10[%75, %c0_22, %c0_23] : memref<8x8x128xf32, #tpu.memory_space<vmem>>, vector<1x8x128xf32>
    %77 = vector.shape_cast %76 : vector<1x8x128xf32> to vector<8x128xf32>
    %78 = vector.shape_cast %74 : vector<8x128xf32> to vector<1x8x128xf32>
    tpu.vector_store %arg10[%75, %c0_22, %c0_23], %78 {strides = array<i32>} : memref<8x8x128xf32, #tpu.memory_space<vmem>>, vector<1x8x128xf32>,
    %c2_i32 = arith.constant 2 : i32
    %79 = arith.index_cast %c2_i32 : i32 to index
    %c0_24 = arith.constant 0 : index
    %c0_25 = arith.constant 0 : index
    %80 = vector.load %arg1[%79, %c0_24, %c0_25] : memref<8x8x384xf32, #tpu.memory_space<vmem>>, vector<1x8x384xf32>
    %81 = vector.shape_cast %80 : vector<1x8x384xf32> to vector<8x384xf32>
    %c0_26 = arith.constant 0 : index
    %c0_27 = arith.constant 0 : index
    %82 = vector.load %arg3[%c0_26, %c0_27] : memref<128x384xf32, #tpu.memory_space<vmem>>, vector<128x384xf32>
    %cst_28 = arith.constant dense<0.000000e+00> : vector<8x384xf32>
    %83 = tpu.matmul %74, %82, %cst_28 {dimension_numbers = #tpu.dot_dimension_numbers<[1], [0], [0], [1], [0, 0, 1, 1], [], []>} : vector<8x128xf32>, vector<128x384xf32>, vector<8x384xf32> -> vector<8x384xf32>
    %84 = vector.extract_strided_slice %81 {offsets = [0, 0], sizes = [8, 128], strides = [1, 1]} : vector<8x384xf32> to vector<8x128xf32>
    %85 = vector.extract_strided_slice %83 {offsets = [0, 0], sizes = [8, 128], strides = [1, 1]} : vector<8x384xf32> to vector<8x128xf32>
    %86 = arith.addf %84, %85 : vector<8x128xf32>
    %87 = arith.negf %86 : vector<8x128xf32>
    %88 = math.exp %87 : vector<8x128xf32>
    %cst_29 = arith.constant 1.000000e+00 : f32
    %89 = vector.broadcast %cst_29 : f32 to vector<8x128xf32>
    %90 = arith.addf %89, %88 : vector<8x128xf32>
    %91 = arith.divf %89, %90 : vector<8x128xf32>
    %92 = vector.extract_strided_slice %81 {offsets = [0, 128], sizes = [8, 128], strides = [1, 1]} : vector<8x384xf32> to vector<8x128xf32>
    %93 = vector.extract_strided_slice %83 {offsets = [0, 128], sizes = [8, 128], strides = [1, 1]} : vector<8x384xf32> to vector<8x128xf32>
    %94 = arith.addf %92, %93 : vector<8x128xf32>
    %95 = arith.negf %94 : vector<8x128xf32>
    %96 = math.exp %95 : vector<8x128xf32>
    %cst_30 = arith.constant 1.000000e+00 : f32
    %97 = vector.broadcast %cst_30 : f32 to vector<8x128xf32>
    %98 = arith.addf %97, %96 : vector<8x128xf32>
    %99 = arith.divf %97, %98 : vector<8x128xf32>
    %100 = vector.extract_strided_slice %81 {offsets = [0, 256], sizes = [8, 128], strides = [1, 1]} : vector<8x384xf32> to vector<8x128xf32>
    %101 = vector.extract_strided_slice %83 {offsets = [0, 256], sizes = [8, 128], strides = [1, 1]} : vector<8x384xf32> to vector<8x128xf32>
    %102 = vector.broadcast %3 : vector<1x128xf32> to vector<8x128xf32>
    %103 = arith.addf %101, %102 : vector<8x128xf32>
    %104 = arith.mulf %91, %103 : vector<8x128xf32>
    %105 = arith.addf %100, %104 : vector<8x128xf32>
    %106 = math.tanh %105 : vector<8x128xf32>
    %cst_31 = arith.constant 1.000000e+00 : f32
    %107 = vector.broadcast %cst_31 : f32 to vector<8x128xf32>
    %108 = arith.subf %107, %99 : vector<8x128xf32>
    %109 = arith.mulf %108, %106 : vector<8x128xf32>
    %110 = arith.mulf %99, %74 : vector<8x128xf32>
    %111 = arith.addf %109, %110 : vector<8x128xf32>
    %112 = arith.index_cast %c2_i32 : i32 to index
    %c0_32 = arith.constant 0 : index
    %c0_33 = arith.constant 0 : index
    %113 = vector.load %arg10[%112, %c0_32, %c0_33] : memref<8x8x128xf32, #tpu.memory_space<vmem>>, vector<1x8x128xf32>
    %114 = vector.shape_cast %113 : vector<1x8x128xf32> to vector<8x128xf32>
    %115 = vector.shape_cast %111 : vector<8x128xf32> to vector<1x8x128xf32>
    tpu.vector_store %arg10[%112, %c0_32, %c0_33], %115 {strides = array<i32>} : memref<8x8x128xf32, #tpu.memory_space<vmem>>, vector<1x8x128xf32>,
    %c3_i32 = arith.constant 3 : i32
    %116 = arith.index_cast %c3_i32 : i32 to index
    %c0_34 = arith.constant 0 : index
    %c0_35 = arith.constant 0 : index
    %117 = vector.load %arg1[%116, %c0_34, %c0_35] : memref<8x8x384xf32, #tpu.memory_space<vmem>>, vector<1x8x384xf32>
    %118 = vector.shape_cast %117 : vector<1x8x384xf32> to vector<8x384xf32>
    %c0_36 = arith.constant 0 : index
    %c0_37 = arith.constant 0 : index
    %119 = vector.load %arg3[%c0_36, %c0_37] : memref<128x384xf32, #tpu.memory_space<vmem>>, vector<128x384xf32>
    %cst_38 = arith.constant dense<0.000000e+00> : vector<8x384xf32>
    %120 = tpu.matmul %111, %119, %cst_38 {dimension_numbers = #tpu.dot_dimension_numbers<[1], [0], [0], [1], [0, 0, 1, 1], [], []>} : vector<8x128xf32>, vector<128x384xf32>, vector<8x384xf32> -> vector<8x384xf32>
    %121 = vector.extract_strided_slice %118 {offsets = [0, 0], sizes = [8, 128], strides = [1, 1]} : vector<8x384xf32> to vector<8x128xf32>
    %122 = vector.extract_strided_slice %120 {offsets = [0, 0], sizes = [8, 128], strides = [1, 1]} : vector<8x384xf32> to vector<8x128xf32>
    %123 = arith.addf %121, %122 : vector<8x128xf32>
    %124 = arith.negf %123 : vector<8x128xf32>
    %125 = math.exp %124 : vector<8x128xf32>
    %cst_39 = arith.constant 1.000000e+00 : f32
    %126 = vector.broadcast %cst_39 : f32 to vector<8x128xf32>
    %127 = arith.addf %126, %125 : vector<8x128xf32>
    %128 = arith.divf %126, %127 : vector<8x128xf32>
    %129 = vector.extract_strided_slice %118 {offsets = [0, 128], sizes = [8, 128], strides = [1, 1]} : vector<8x384xf32> to vector<8x128xf32>
    %130 = vector.extract_strided_slice %120 {offsets = [0, 128], sizes = [8, 128], strides = [1, 1]} : vector<8x384xf32> to vector<8x128xf32>
    %131 = arith.addf %129, %130 : vector<8x128xf32>
    %132 = arith.negf %131 : vector<8x128xf32>
    %133 = math.exp %132 : vector<8x128xf32>
    %cst_40 = arith.constant 1.000000e+00 : f32
    %134 = vector.broadcast %cst_40 : f32 to vector<8x128xf32>
    %135 = arith.addf %134, %133 : vector<8x128xf32>
    %136 = arith.divf %134, %135 : vector<8x128xf32>
    %137 = vector.extract_strided_slice %118 {offsets = [0, 256], sizes = [8, 128], strides = [1, 1]} : vector<8x384xf32> to vector<8x128xf32>
    %138 = vector.extract_strided_slice %120 {offsets = [0, 256], sizes = [8, 128], strides = [1, 1]} : vector<8x384xf32> to vector<8x128xf32>
    %139 = vector.broadcast %3 : vector<1x128xf32> to vector<8x128xf32>
    %140 = arith.addf %138, %139 : vector<8x128xf32>
    %141 = arith.mulf %128, %140 : vector<8x128xf32>
    %142 = arith.addf %137, %141 : vector<8x128xf32>
    %143 = math.tanh %142 : vector<8x128xf32>
    %cst_41 = arith.constant 1.000000e+00 : f32
    %144 = vector.broadcast %cst_41 : f32 to vector<8x128xf32>
    %145 = arith.subf %144, %136 : vector<8x128xf32>
    %146 = arith.mulf %145, %143 : vector<8x128xf32>
    %147 = arith.mulf %136, %111 : vector<8x128xf32>
    %148 = arith.addf %146, %147 : vector<8x128xf32>
    %149 = arith.index_cast %c3_i32 : i32 to index
    %c0_42 = arith.constant 0 : index
    %c0_43 = arith.constant 0 : index
    %150 = vector.load %arg10[%149, %c0_42, %c0_43] : memref<8x8x128xf32, #tpu.memory_space<vmem>>, vector<1x8x128xf32>
    %151 = vector.shape_cast %150 : vector<1x8x128xf32> to vector<8x128xf32>
    %152 = vector.shape_cast %148 : vector<8x128xf32> to vector<1x8x128xf32>
    tpu.vector_store %arg10[%149, %c0_42, %c0_43], %152 {strides = array<i32>} : memref<8x8x128xf32, #tpu.memory_space<vmem>>, vector<1x8x128xf32>,
    %c4_i32 = arith.constant 4 : i32
    %153 = arith.index_cast %c4_i32 : i32 to index
    %c0_44 = arith.constant 0 : index
    %c0_45 = arith.constant 0 : index
    %154 = vector.load %arg1[%153, %c0_44, %c0_45] : memref<8x8x384xf32, #tpu.memory_space<vmem>>, vector<1x8x384xf32>
    %155 = vector.shape_cast %154 : vector<1x8x384xf32> to vector<8x384xf32>
    %c0_46 = arith.constant 0 : index
    %c0_47 = arith.constant 0 : index
    %156 = vector.load %arg3[%c0_46, %c0_47] : memref<128x384xf32, #tpu.memory_space<vmem>>, vector<128x384xf32>
    %cst_48 = arith.constant dense<0.000000e+00> : vector<8x384xf32>
    %157 = tpu.matmul %148, %156, %cst_48 {dimension_numbers = #tpu.dot_dimension_numbers<[1], [0], [0], [1], [0, 0, 1, 1], [], []>} : vector<8x128xf32>, vector<128x384xf32>, vector<8x384xf32> -> vector<8x384xf32>
    %158 = vector.extract_strided_slice %155 {offsets = [0, 0], sizes = [8, 128], strides = [1, 1]} : vector<8x384xf32> to vector<8x128xf32>
    %159 = vector.extract_strided_slice %157 {offsets = [0, 0], sizes = [8, 128], strides = [1, 1]} : vector<8x384xf32> to vector<8x128xf32>
    %160 = arith.addf %158, %159 : vector<8x128xf32>
    %161 = arith.negf %160 : vector<8x128xf32>
    %162 = math.exp %161 : vector<8x128xf32>
    %cst_49 = arith.constant 1.000000e+00 : f32
    %163 = vector.broadcast %cst_49 : f32 to vector<8x128xf32>
    %164 = arith.addf %163, %162 : vector<8x128xf32>
    %165 = arith.divf %163, %164 : vector<8x128xf32>
    %166 = vector.extract_strided_slice %155 {offsets = [0, 128], sizes = [8, 128], strides = [1, 1]} : vector<8x384xf32> to vector<8x128xf32>
    %167 = vector.extract_strided_slice %157 {offsets = [0, 128], sizes = [8, 128], strides = [1, 1]} : vector<8x384xf32> to vector<8x128xf32>
    %168 = arith.addf %166, %167 : vector<8x128xf32>
    %169 = arith.negf %168 : vector<8x128xf32>
    %170 = math.exp %169 : vector<8x128xf32>
    %cst_50 = arith.constant 1.000000e+00 : f32
    %171 = vector.broadcast %cst_50 : f32 to vector<8x128xf32>
    %172 = arith.addf %171, %170 : vector<8x128xf32>
    %173 = arith.divf %171, %172 : vector<8x128xf32>
    %174 = vector.extract_strided_slice %155 {offsets = [0, 256], sizes = [8, 128], strides = [1, 1]} : vector<8x384xf32> to vector<8x128xf32>
    %175 = vector.extract_strided_slice %157 {offsets = [0, 256], sizes = [8, 128], strides = [1, 1]} : vector<8x384xf32> to vector<8x128xf32>
    %176 = vector.broadcast %3 : vector<1x128xf32> to vector<8x128xf32>
    %177 = arith.addf %175, %176 : vector<8x128xf32>
    %178 = arith.mulf %165, %177 : vector<8x128xf32>
    %179 = arith.addf %174, %178 : vector<8x128xf32>
    %180 = math.tanh %179 : vector<8x128xf32>
    %cst_51 = arith.constant 1.000000e+00 : f32
    %181 = vector.broadcast %cst_51 : f32 to vector<8x128xf32>
    %182 = arith.subf %181, %173 : vector<8x128xf32>
    %183 = arith.mulf %182, %180 : vector<8x128xf32>
    %184 = arith.mulf %173, %148 : vector<8x128xf32>
    %185 = arith.addf %183, %184 : vector<8x128xf32>
    %186 = arith.index_cast %c4_i32 : i32 to index
    %c0_52 = arith.constant 0 : index
    %c0_53 = arith.constant 0 : index
    %187 = vector.load %arg10[%186, %c0_52, %c0_53] : memref<8x8x128xf32, #tpu.memory_space<vmem>>, vector<1x8x128xf32>
    %188 = vector.shape_cast %187 : vector<1x8x128xf32> to vector<8x128xf32>
    %189 = vector.shape_cast %185 : vector<8x128xf32> to vector<1x8x128xf32>
    tpu.vector_store %arg10[%186, %c0_52, %c0_53], %189 {strides = array<i32>} : memref<8x8x128xf32, #tpu.memory_space<vmem>>, vector<1x8x128xf32>,
    %c5_i32 = arith.constant 5 : i32
    %190 = arith.index_cast %c5_i32 : i32 to index
    %c0_54 = arith.constant 0 : index
    %c0_55 = arith.constant 0 : index
    %191 = vector.load %arg1[%190, %c0_54, %c0_55] : memref<8x8x384xf32, #tpu.memory_space<vmem>>, vector<1x8x384xf32>
    %192 = vector.shape_cast %191 : vector<1x8x384xf32> to vector<8x384xf32>
    %c0_56 = arith.constant 0 : index
    %c0_57 = arith.constant 0 : index
    %193 = vector.load %arg3[%c0_56, %c0_57] : memref<128x384xf32, #tpu.memory_space<vmem>>, vector<128x384xf32>
    %cst_58 = arith.constant dense<0.000000e+00> : vector<8x384xf32>
    %194 = tpu.matmul %185, %193, %cst_58 {dimension_numbers = #tpu.dot_dimension_numbers<[1], [0], [0], [1], [0, 0, 1, 1], [], []>} : vector<8x128xf32>, vector<128x384xf32>, vector<8x384xf32> -> vector<8x384xf32>
    %195 = vector.extract_strided_slice %192 {offsets = [0, 0], sizes = [8, 128], strides = [1, 1]} : vector<8x384xf32> to vector<8x128xf32>
    %196 = vector.extract_strided_slice %194 {offsets = [0, 0], sizes = [8, 128], strides = [1, 1]} : vector<8x384xf32> to vector<8x128xf32>
    %197 = arith.addf %195, %196 : vector<8x128xf32>
    %198 = arith.negf %197 : vector<8x128xf32>
    %199 = math.exp %198 : vector<8x128xf32>
    %cst_59 = arith.constant 1.000000e+00 : f32
    %200 = vector.broadcast %cst_59 : f32 to vector<8x128xf32>
    %201 = arith.addf %200, %199 : vector<8x128xf32>
    %202 = arith.divf %200, %201 : vector<8x128xf32>
    %203 = vector.extract_strided_slice %192 {offsets = [0, 128], sizes = [8, 128], strides = [1, 1]} : vector<8x384xf32> to vector<8x128xf32>
    %204 = vector.extract_strided_slice %194 {offsets = [0, 128], sizes = [8, 128], strides = [1, 1]} : vector<8x384xf32> to vector<8x128xf32>
    %205 = arith.addf %203, %204 : vector<8x128xf32>
    %206 = arith.negf %205 : vector<8x128xf32>
    %207 = math.exp %206 : vector<8x128xf32>
    %cst_60 = arith.constant 1.000000e+00 : f32
    %208 = vector.broadcast %cst_60 : f32 to vector<8x128xf32>
    %209 = arith.addf %208, %207 : vector<8x128xf32>
    %210 = arith.divf %208, %209 : vector<8x128xf32>
    %211 = vector.extract_strided_slice %192 {offsets = [0, 256], sizes = [8, 128], strides = [1, 1]} : vector<8x384xf32> to vector<8x128xf32>
    %212 = vector.extract_strided_slice %194 {offsets = [0, 256], sizes = [8, 128], strides = [1, 1]} : vector<8x384xf32> to vector<8x128xf32>
    %213 = vector.broadcast %3 : vector<1x128xf32> to vector<8x128xf32>
    %214 = arith.addf %212, %213 : vector<8x128xf32>
    %215 = arith.mulf %202, %214 : vector<8x128xf32>
    %216 = arith.addf %211, %215 : vector<8x128xf32>
    %217 = math.tanh %216 : vector<8x128xf32>
    %cst_61 = arith.constant 1.000000e+00 : f32
    %218 = vector.broadcast %cst_61 : f32 to vector<8x128xf32>
    %219 = arith.subf %218, %210 : vector<8x128xf32>
    %220 = arith.mulf %219, %217 : vector<8x128xf32>
    %221 = arith.mulf %210, %185 : vector<8x128xf32>
    %222 = arith.addf %220, %221 : vector<8x128xf32>
    %223 = arith.index_cast %c5_i32 : i32 to index
    %c0_62 = arith.constant 0 : index
    %c0_63 = arith.constant 0 : index
    %224 = vector.load %arg10[%223, %c0_62, %c0_63] : memref<8x8x128xf32, #tpu.memory_space<vmem>>, vector<1x8x128xf32>
    %225 = vector.shape_cast %224 : vector<1x8x128xf32> to vector<8x128xf32>
    %226 = vector.shape_cast %222 : vector<8x128xf32> to vector<1x8x128xf32>
    tpu.vector_store %arg10[%223, %c0_62, %c0_63], %226 {strides = array<i32>} : memref<8x8x128xf32, #tpu.memory_space<vmem>>, vector<1x8x128xf32>,
    %c6_i32 = arith.constant 6 : i32
    %227 = arith.index_cast %c6_i32 : i32 to index
    %c0_64 = arith.constant 0 : index
    %c0_65 = arith.constant 0 : index
    %228 = vector.load %arg1[%227, %c0_64, %c0_65] : memref<8x8x384xf32, #tpu.memory_space<vmem>>, vector<1x8x384xf32>
    %229 = vector.shape_cast %228 : vector<1x8x384xf32> to vector<8x384xf32>
    %c0_66 = arith.constant 0 : index
    %c0_67 = arith.constant 0 : index
    %230 = vector.load %arg3[%c0_66, %c0_67] : memref<128x384xf32, #tpu.memory_space<vmem>>, vector<128x384xf32>
    %cst_68 = arith.constant dense<0.000000e+00> : vector<8x384xf32>
    %231 = tpu.matmul %222, %230, %cst_68 {dimension_numbers = #tpu.dot_dimension_numbers<[1], [0], [0], [1], [0, 0, 1, 1], [], []>} : vector<8x128xf32>, vector<128x384xf32>, vector<8x384xf32> -> vector<8x384xf32>
    %232 = vector.extract_strided_slice %229 {offsets = [0, 0], sizes = [8, 128], strides = [1, 1]} : vector<8x384xf32> to vector<8x128xf32>
    %233 = vector.extract_strided_slice %231 {offsets = [0, 0], sizes = [8, 128], strides = [1, 1]} : vector<8x384xf32> to vector<8x128xf32>
    %234 = arith.addf %232, %233 : vector<8x128xf32>
    %235 = arith.negf %234 : vector<8x128xf32>
    %236 = math.exp %235 : vector<8x128xf32>
    %cst_69 = arith.constant 1.000000e+00 : f32
    %237 = vector.broadcast %cst_69 : f32 to vector<8x128xf32>
    %238 = arith.addf %237, %236 : vector<8x128xf32>
    %239 = arith.divf %237, %238 : vector<8x128xf32>
    %240 = vector.extract_strided_slice %229 {offsets = [0, 128], sizes = [8, 128], strides = [1, 1]} : vector<8x384xf32> to vector<8x128xf32>
    %241 = vector.extract_strided_slice %231 {offsets = [0, 128], sizes = [8, 128], strides = [1, 1]} : vector<8x384xf32> to vector<8x128xf32>
    %242 = arith.addf %240, %241 : vector<8x128xf32>
    %243 = arith.negf %242 : vector<8x128xf32>
    %244 = math.exp %243 : vector<8x128xf32>
    %cst_70 = arith.constant 1.000000e+00 : f32
    %245 = vector.broadcast %cst_70 : f32 to vector<8x128xf32>
    %246 = arith.addf %245, %244 : vector<8x128xf32>
    %247 = arith.divf %245, %246 : vector<8x128xf32>
    %248 = vector.extract_strided_slice %229 {offsets = [0, 256], sizes = [8, 128], strides = [1, 1]} : vector<8x384xf32> to vector<8x128xf32>
    %249 = vector.extract_strided_slice %231 {offsets = [0, 256], sizes = [8, 128], strides = [1, 1]} : vector<8x384xf32> to vector<8x128xf32>
    %250 = vector.broadcast %3 : vector<1x128xf32> to vector<8x128xf32>
    %251 = arith.addf %249, %250 : vector<8x128xf32>
    %252 = arith.mulf %239, %251 : vector<8x128xf32>
    %253 = arith.addf %248, %252 : vector<8x128xf32>
    %254 = math.tanh %253 : vector<8x128xf32>
    %cst_71 = arith.constant 1.000000e+00 : f32
    %255 = vector.broadcast %cst_71 : f32 to vector<8x128xf32>
    %256 = arith.subf %255, %247 : vector<8x128xf32>
    %257 = arith.mulf %256, %254 : vector<8x128xf32>
    %258 = arith.mulf %247, %222 : vector<8x128xf32>
    %259 = arith.addf %257, %258 : vector<8x128xf32>
    %260 = arith.index_cast %c6_i32 : i32 to index
    %c0_72 = arith.constant 0 : index
    %c0_73 = arith.constant 0 : index
    %261 = vector.load %arg10[%260, %c0_72, %c0_73] : memref<8x8x128xf32, #tpu.memory_space<vmem>>, vector<1x8x128xf32>
    %262 = vector.shape_cast %261 : vector<1x8x128xf32> to vector<8x128xf32>
    %263 = vector.shape_cast %259 : vector<8x128xf32> to vector<1x8x128xf32>
    tpu.vector_store %arg10[%260, %c0_72, %c0_73], %263 {strides = array<i32>} : memref<8x8x128xf32, #tpu.memory_space<vmem>>, vector<1x8x128xf32>,
    %c7_i32 = arith.constant 7 : i32
    %264 = arith.index_cast %c7_i32 : i32 to index
    %c0_74 = arith.constant 0 : index
    %c0_75 = arith.constant 0 : index
    %265 = vector.load %arg1[%264, %c0_74, %c0_75] : memref<8x8x384xf32, #tpu.memory_space<vmem>>, vector<1x8x384xf32>
    %266 = vector.shape_cast %265 : vector<1x8x384xf32> to vector<8x384xf32>
    %c0_76 = arith.constant 0 : index
    %c0_77 = arith.constant 0 : index
    %267 = vector.load %arg3[%c0_76, %c0_77] : memref<128x384xf32, #tpu.memory_space<vmem>>, vector<128x384xf32>
    %cst_78 = arith.constant dense<0.000000e+00> : vector<8x384xf32>
    %268 = tpu.matmul %259, %267, %cst_78 {dimension_numbers = #tpu.dot_dimension_numbers<[1], [0], [0], [1], [0, 0, 1, 1], [], []>} : vector<8x128xf32>, vector<128x384xf32>, vector<8x384xf32> -> vector<8x384xf32>
    %269 = vector.extract_strided_slice %266 {offsets = [0, 0], sizes = [8, 128], strides = [1, 1]} : vector<8x384xf32> to vector<8x128xf32>
    %270 = vector.extract_strided_slice %268 {offsets = [0, 0], sizes = [8, 128], strides = [1, 1]} : vector<8x384xf32> to vector<8x128xf32>
    %271 = arith.addf %269, %270 : vector<8x128xf32>
    %272 = arith.negf %271 : vector<8x128xf32>
    %273 = math.exp %272 : vector<8x128xf32>
    %cst_79 = arith.constant 1.000000e+00 : f32
    %274 = vector.broadcast %cst_79 : f32 to vector<8x128xf32>
    %275 = arith.addf %274, %273 : vector<8x128xf32>
    %276 = arith.divf %274, %275 : vector<8x128xf32>
    %277 = vector.extract_strided_slice %266 {offsets = [0, 128], sizes = [8, 128], strides = [1, 1]} : vector<8x384xf32> to vector<8x128xf32>
    %278 = vector.extract_strided_slice %268 {offsets = [0, 128], sizes = [8, 128], strides = [1, 1]} : vector<8x384xf32> to vector<8x128xf32>
    %279 = arith.addf %277, %278 : vector<8x128xf32>
    %280 = arith.negf %279 : vector<8x128xf32>
    %281 = math.exp %280 : vector<8x128xf32>
    %cst_80 = arith.constant 1.000000e+00 : f32
    %282 = vector.broadcast %cst_80 : f32 to vector<8x128xf32>
    %283 = arith.addf %282, %281 : vector<8x128xf32>
    %284 = arith.divf %282, %283 : vector<8x128xf32>
    %285 = vector.extract_strided_slice %266 {offsets = [0, 256], sizes = [8, 128], strides = [1, 1]} : vector<8x384xf32> to vector<8x128xf32>
    %286 = vector.extract_strided_slice %268 {offsets = [0, 256], sizes = [8, 128], strides = [1, 1]} : vector<8x384xf32> to vector<8x128xf32>
    %287 = vector.broadcast %3 : vector<1x128xf32> to vector<8x128xf32>
    %288 = arith.addf %286, %287 : vector<8x128xf32>
    %289 = arith.mulf %276, %288 : vector<8x128xf32>
    %290 = arith.addf %285, %289 : vector<8x128xf32>
    %291 = math.tanh %290 : vector<8x128xf32>
    %cst_81 = arith.constant 1.000000e+00 : f32
    %292 = vector.broadcast %cst_81 : f32 to vector<8x128xf32>
    %293 = arith.subf %292, %284 : vector<8x128xf32>
    %294 = arith.mulf %293, %291 : vector<8x128xf32>
    %295 = arith.mulf %284, %259 : vector<8x128xf32>
    %296 = arith.addf %294, %295 : vector<8x128xf32>
    %297 = arith.index_cast %c7_i32 : i32 to index
    %c0_82 = arith.constant 0 : index
    %c0_83 = arith.constant 0 : index
    %298 = vector.load %arg10[%297, %c0_82, %c0_83] : memref<8x8x128xf32, #tpu.memory_space<vmem>>, vector<1x8x128xf32>
    %299 = vector.shape_cast %298 : vector<1x8x128xf32> to vector<8x128xf32>
    %300 = vector.shape_cast %296 : vector<8x128xf32> to vector<1x8x128xf32>
    tpu.vector_store %arg10[%297, %c0_82, %c0_83], %300 {strides = array<i32>} : memref<8x8x128xf32, #tpu.memory_space<vmem>>, vector<1x8x128xf32>,
    %c8_i32 = arith.constant 8 : i32
    %c0_84 = arith.constant 0 : index
    %c0_85 = arith.constant 0 : index
    %301 = vector.load %arg9[%c0_84, %c0_85] : memref<8x128xf32, #tpu.memory_space<vmem>>, vector<8x128xf32>
    tpu.vector_store %arg9[%c0_84, %c0_85], %296 {strides = array<i32>} : memref<8x128xf32, #tpu.memory_space<vmem>>, vector<8x128xf32>,
    %c0_86 = arith.constant 0 : index
    %c0_87 = arith.constant 0 : index
    %c0_88 = arith.constant 0 : index
    %302 = vector.load %arg10[%c0_86, %c0_87, %c0_88] : memref<8x8x128xf32, #tpu.memory_space<vmem>>, vector<8x8x128xf32>
    %303 = vector.shape_cast %302 : vector<8x8x128xf32> to vector<64x128xf32>
    %c0_89 = arith.constant 0 : index
    %c0_90 = arith.constant 0 : index
    %304 = vector.load %arg5[%c0_89, %c0_90] : memref<128x4xf32, #tpu.memory_space<vmem>>, vector<128x4xf32>
    %cst_91 = arith.constant dense<0.000000e+00> : vector<64x4xf32>
    %305 = tpu.matmul %303, %304, %cst_91 {dimension_numbers = #tpu.dot_dimension_numbers<[1], [0], [0], [1], [0, 0, 1, 1], [], []>} : vector<64x128xf32>, vector<128x4xf32>, vector<64x4xf32> -> vector<64x4xf32>
    %c0_92 = arith.constant 0 : index
    %c0_93 = arith.constant 0 : index
    %306 = vector.load %arg6[%c0_92, %c0_93] : memref<1x4xf32, #tpu.memory_space<vmem>>, vector<1x4xf32>
    %307 = vector.broadcast %306 : vector<1x4xf32> to vector<64x4xf32>
    %308 = arith.addf %305, %307 : vector<64x4xf32>
    %309 = vector.shape_cast %308 : vector<64x4xf32> to vector<8x8x4xf32>
    %c0_94 = arith.constant 0 : index
    %c0_95 = arith.constant 0 : index
    %c0_96 = arith.constant 0 : index
    %310 = vector.load %arg7[%c0_94, %c0_95, %c0_96] : memref<8x8x4xf32, #tpu.memory_space<vmem>>, vector<8x8x4xf32>
    tpu.vector_store %arg7[%c0_94, %c0_95, %c0_96], %309 {strides = array<i32>} : memref<8x8x4xf32, #tpu.memory_space<vmem>>, vector<8x8x4xf32>,
    %c1_i32_97 = arith.constant 1 : i32
    %311 = arith.cmpi eq, %arg0, %c1_i32_97 : i32
    %312 = arith.extui %311 : i1 to i32
    %c0_i32_98 = arith.constant 0 : i32
    %313 = arith.cmpi ne, %312, %c0_i32_98 : i32
    scf.if %313 {
      %c0_99 = arith.constant 0 : index
      %c0_100 = arith.constant 0 : index
      %314 = vector.load %arg8[%c0_99, %c0_100] : memref<8x128xf32, #tpu.memory_space<vmem>>, vector<8x128xf32>
      tpu.vector_store %arg8[%c0_99, %c0_100], %296 {strides = array<i32>} : memref<8x128xf32, #tpu.memory_space<vmem>>, vector<8x128xf32>,
    } else {
    }
    return
  }
  func.func @transform_0(%arg0: i32) -> (i32, i32, i32) {
    %c0_i32 = arith.constant 0 : i32
    %c0_i32_0 = arith.constant 0 : i32
    %c0_i32_1 = arith.constant 0 : i32
    return %arg0, %c0_i32, %c0_i32_0 : i32, i32, i32
  }
  func.func @transform_1(%arg0: i32) -> (i32, i32) {
    %c0_i32 = arith.constant 0 : i32
    %c0_i32_0 = arith.constant 0 : i32
    %c0_i32_1 = arith.constant 0 : i32
    return %c0_i32, %c0_i32_0 : i32, i32
  }
  func.func @transform_2(%arg0: i32) -> (i32, i32) {
    %c0_i32 = arith.constant 0 : i32
    %c0_i32_0 = arith.constant 0 : i32
    %c0_i32_1 = arith.constant 0 : i32
    return %c0_i32, %c0_i32_0 : i32, i32
  }
  func.func @transform_3(%arg0: i32) -> (i32, i32) {
    %c0_i32 = arith.constant 0 : i32
    %c0_i32_0 = arith.constant 0 : i32
    %c0_i32_1 = arith.constant 0 : i32
    return %c0_i32, %c0_i32_0 : i32, i32
  }
  func.func @transform_4(%arg0: i32) -> (i32, i32) {
    %c0_i32 = arith.constant 0 : i32
    %c0_i32_0 = arith.constant 0 : i32
    %c0_i32_1 = arith.constant 0 : i32
    return %c0_i32, %c0_i32_0 : i32, i32
  }
  func.func @transform_5(%arg0: i32) -> (i32, i32) {
    %c0_i32 = arith.constant 0 : i32
    %c0_i32_0 = arith.constant 0 : i32
    %c0_i32_1 = arith.constant 0 : i32
    return %c0_i32, %c0_i32_0 : i32, i32
  }
  func.func @transform_6(%arg0: i32) -> (i32, i32, i32) {
    %c0_i32 = arith.constant 0 : i32
    %c0_i32_0 = arith.constant 0 : i32
    %c0_i32_1 = arith.constant 0 : i32
    return %arg0, %c0_i32, %c0_i32_0 : i32, i32, i32
  }
  func.func @transform_7(%arg0: i32) -> (i32, i32) {
    %c0_i32 = arith.constant 0 : i32
    %c0_i32_0 = arith.constant 0 : i32
    %c0_i32_1 = arith.constant 0 : i32
    return %c0_i32, %c0_i32_0 : i32, i32
  }
}

</mosaic_0001>

<llo_original>
// kernel: rnnlm_forward.2
$region0: #{rnnlm_forward.2}
  #allocation0 [shape = 'u32[]', space=smem, size = 0x4, offset = 0x4, fixed_abs, tag = 'smem constant byte address 0x4 - core index']
  #allocation1 [shape = 'u32[144,128]{1,0:T(1,128)}', space=vmem, size = 0x12000, scoped, tag = 'internal scratch']
  %s0 = inlined_call_operand.vmem [shape: f32[16,8,128], index: 0, kind: input, shape index: {}]
  %s1 = inlined_call_operand.vmem [shape: f32[128,384], index: 1, kind: input, shape index: {}]
  %s2 = inlined_call_operand.vmem [shape: f32[1,384], index: 2, kind: input, shape index: {}]
  %s3 = inlined_call_operand.vmem [shape: f32[16,8,384], index: 3, kind: output, shape index: {}]
  %s4 = sld [smem:[#allocation0]]
  $region45: #{rnnlm_forward.2} parent=0
    _
  %s6 = ssub.s32 1, %s4
  %s7 = scalar_select 0, %s6, %s4
  loop: start=0, step=1, limit=4
  $region2: #{rnnlm_forward.2} parent=0 // loop_pre_header
    _
  $region3: #{rnnlm_forward.2} parent=0 // loop_header
    %s9 = sphi 0, %s13
    %p10 = scmp.ge.s32.totalorder %s9, 4
    %s19 = sphi 0, %s21
    %s22 = sphi 0, %s19
    %s23 = sphi 0, %s22
    %s39 = sphi 0, %s23
    %s43 = sphi 0, %s43
    %s45 = sphi 0, %s43
    %s46 = sphi 0, %s45
    %s60 = sphi 0, %s46
    %s64 = sphi 0, %s64
    %s66 = sphi 0, %s64
    %s67 = sphi 0, %s66
    %s81 = sphi 0, %s67
    %s87 = sphi 0, %s89
    %s90 = sphi 0, %s87
    %s91 = sphi 0, %s90
    %s107 = sphi 0, %s91
  $region4: #{rnnlm_forward.2} parent=0 // loop_header_branch
    %12 = sbr.rel (%p10) target = $region8
  $region5: #{rnnlm_forward.2} parent=0 // loop_body
    %s14 = ssub.s32 %s9, 1
    %s15 = ssub.s32 %s9, 2
    %s16 = sadd.s32 %s9, 1
    %s17 = ssub.s32 %s9, %s16
    %p18 = scmp.eq.s32.totalorder %s17, 0
    %s20 = sadd.s32 %s19, 1
    %s21 = scalar_select %p18, %s19, %s20
    %p24 = pneg %p18
    %p25 = scmp.eq.s32.totalorder %s9, 1
    %p26 = por %p24, %p25
    %p27 = scmp.ne.s32.totalorder %s19, %s22
    %p28 = scmp.eq.s32.totalorder %s9, 0
    %p29 = por %p27, %p28
    %p30 = scmp.ne.s32.totalorder %s19, %s22
    %p31 = scmp.eq.s32.totalorder %s14, 1
    %p32 = por %p30, %p31
    %p33 = scmp.ne.s32.totalorder %s22, %s23
    %p34 = scmp.eq.s32.totalorder %s14, 0
    %p35 = por %p33, %p34
    %p36 = scmp.ne.s32.totalorder %s22, %s23
    %p37 = scmp.eq.s32.totalorder %s15, 1
    %p38 = por %p36, %p37
    %p40 = scmp.ne.s32.totalorder %s23, %s39
    %p41 = scmp.eq.s32.totalorder %s15, 0
    %p42 = por %p40, %p41
    %s44 = sadd.s32 %s43, 1
    %p47 = scmp.eq.s32.totalorder %s9, 1
    %p48 = scmp.ne.s32.totalorder %s43, %s45
    %p49 = scmp.eq.s32.totalorder %s9, 0
    %p50 = por %p48, %p49
    %p51 = scmp.ne.s32.totalorder %s43, %s45
    %p52 = scmp.eq.s32.totalorder %s14, 1
    %p53 = por %p51, %p52
    %p54 = scmp.ne.s32.totalorder %s45, %s46
    %p55 = scmp.eq.s32.totalorder %s14, 0
    %p56 = por %p54, %p55
    %p57 = scmp.ne.s32.totalorder %s45, %s46
    %p58 = scmp.eq.s32.totalorder %s15, 1
    %p59 = por %p57, %p58
    %p61 = scmp.ne.s32.totalorder %s46, %s60
    %p62 = scmp.eq.s32.totalorder %s15, 0
    %p63 = por %p61, %p62
    %s65 = sadd.s32 %s64, 1
    %p68 = scmp.eq.s32.totalorder %s9, 1
    %p69 = scmp.ne.s32.totalorder %s64, %s66
    %p70 = scmp.eq.s32.totalorder %s9, 0
    %p71 = por %p69, %p70
    %p72 = scmp.ne.s32.totalorder %s64, %s66
    %p73 = scmp.eq.s32.totalorder %s14, 1
    %p74 = por %p72, %p73
    %p75 = scmp.ne.s32.totalorder %s66, %s67
    %p76 = scmp.eq.s32.totalorder %s14, 0
    %p77 = por %p75, %p76
    %p78 = scmp.ne.s32.totalorder %s66, %s67
    %p79 = scmp.eq.s32.totalorder %s15, 1
    %p80 = por %p78, %p79
    %p82 = scmp.ne.s32.totalorder %s67, %s81
    %p83 = scmp.eq.s32.totalorder %s15, 0
    %p84 = por %p82, %p83
    %s85 = ssub.s32 %s9, %s16
    %p86 = scmp.eq.s32.totalorder %s85, 0
    %s88 = sadd.s32 %s87, 1
    %s89 = scalar_select %p86, %s87, %s88
    %p92 = pneg %p86
    %p93 = scmp.eq.s32.totalorder %s9, 1
    %p94 = por %p92, %p93
    %p95 = scmp.ne.s32.totalorder %s87, %s90
    %p96 = scmp.eq.s32.totalorder %s9, 0
    %p97 = por %p95, %p96
    %p98 = scmp.ne.s32.totalorder %s87, %s90
    %p99 = scmp.eq.s32.totalorder %s14, 1
    %p100 = por %p98, %p99
    %p101 = scmp.ne.s32.totalorder %s90, %s91
    %p102 = scmp.eq.s32.totalorder %s14, 0
    %p103 = por %p101, %p102
    %p104 = scmp.ne.s32.totalorder %s90, %s91
    %p105 = scmp.eq.s32.totalorder %s15, 1
    %p106 = por %p104, %p105
    %p108 = scmp.ne.s32.totalorder %s91, %s107
    %p109 = scmp.eq.s32.totalorder %s15, 0
    %p110 = por %p108, %p109
    %p111 = scmp.le.s32.totalorder 1, %s9
    %p112 = scmp.lt.s32.totalorder %s9, 3
    %p113 = pnand %p111, %p112
    %p114 = pneg %p113
    // Predicated region
    $region9: #{rnnlm_forward.2} parent=5 // pred_check
      _
    $region10: #{rnnlm_forward.2} parent=5 // pred_check_branch
      %116 = sbr.rel (%p113) target = $region12
    $region11: #{rnnlm_forward.2} parent=5 // pred_region
      %s117 = ssub.s32 %s9, 1
      // Predicated region
      $region13: #{rnnlm_forward.2} parent=11 // pred_check
        %p118 = pneg %p56
      $region14: #{rnnlm_forward.2} parent=11 // pred_check_branch
        %120 = sbr.rel (%p118) target = $region16
      $region15: #{rnnlm_forward.2} parent=11 // pred_region
        _
      $region16: #{rnnlm_forward.2} parent=11 // pred_fallthru
        _
      // Predicated region
      $region17: #{rnnlm_forward.2} parent=11 // pred_check
        %p121 = pneg %p77
      $region18: #{rnnlm_forward.2} parent=11 // pred_check_branch
        %123 = sbr.rel (%p121) target = $region20
      $region19: #{rnnlm_forward.2} parent=11 // pred_region
        _
      $region20: #{rnnlm_forward.2} parent=11 // pred_fallthru
        _
    $region12: #{rnnlm_forward.2} parent=5 // pred_fallthru
      _
    %p124 = scmp.lt.s32.totalorder %s9, 2
    // Predicated region
    $region21: #{rnnlm_forward.2} parent=5 // pred_check
      %p125 = pneg %p124
    $region22: #{rnnlm_forward.2} parent=5 // pred_check_branch
      %127 = sbr.rel (%p125) target = $region24
    $region23: #{rnnlm_forward.2} parent=5 // pred_region
      // Predicated region
      $region25: #{rnnlm_forward.2} parent=23 // pred_check
        %p128 = pneg %p29
      $region26: #{rnnlm_forward.2} parent=23 // pred_check_branch
        %130 = sbr.rel (%p128) target = $region28
      $region27: #{rnnlm_forward.2} parent=23 // pred_region
        %s131 = smul.u32 8, %s9
        %p132 = scmp.lt.s32.totalorder %s131, 15
        %s133 = scalar_select %p132, %s131, 15
        %s134 = smul.addr %s133, 8
        %s135 = scalar_lea.vmem %s0, %s134
        %s136 = smul.u32 8, %s9
      $region28: #{rnnlm_forward.2} parent=23 // pred_fallthru
        _
    $region24: #{rnnlm_forward.2} parent=5 // pred_fallthru
      _
    %p137 = scmp.le.s32.totalorder 1, %s9
    %p138 = scmp.lt.s32.totalorder %s9, 3
    %p139 = pnand %p137, %p138
    %p140 = pneg %p139
    // Predicated region
    $region29: #{rnnlm_forward.2} parent=5 // pred_check
      _
    $region30: #{rnnlm_forward.2} parent=5 // pred_check_branch
      %142 = sbr.rel (%p139) target = $region32
    $region31: #{rnnlm_forward.2} parent=5 // pred_region
      %s143 = ssub.s32 %s9, 1
      %s144 = smul.u32 8, %s14
      %p145 = scmp.lt.s32.totalorder %s144, 15
      %s146 = scalar_select %p145, %s144, 15
      %s147 = smul.addr %s146, 8
      %s148 = scalar_lea.vmem %s0, %s147
      %p149 = pneg %p35
      %p150 = pneg %p32
      %p151 = pneg %p56
      %p152 = pneg %p53
      %p153 = pneg %p77
      %p154 = pneg %p74
      %p155 = pneg %p103
      %p156 = pneg %p100
      %s157 = smul.u32 8, %s14
      %p158 = scmp.lt.s32.totalorder %s157, 15
      %s159 = scalar_select %p158, %s157, 15
      %s160 = smul.addr %s159, 3
      %s161 = smul.addr %s160, 8
      %s162 = scalar_lea.vmem %s3, %s161
      %s163 = smul.u32 8, %s14
      %p164 = scmp.lt.s32.totalorder %s163, 15
      %s165 = scalar_select %p164, %s163, 15
      %s166 = smul.addr %s165, 8
      %s167 = scalar_lea.vmem %s0, %s166
      %s168 = smul.u32 8, %s14
      %s169 = smul.u32 8, %s14
      %p170 = scmp.lt.s32.totalorder %s169, 15
      %s171 = scalar_select %p170, %s169, 15
      %s172 = smul.addr %s171, 3
      %s173 = smul.addr %s172, 8
      %s174 = scalar_lea.vmem %s3, %s173
      %s175 = smul.u32 8, %s14
      %v176 = vld [vmem:[%s167] sm:$0xff]
      %v177 = vld [vmem:[%s167 + $0x8] sm:$0xff]
      %v178 = vld [vmem:[%s167 + $0x10] sm:$0xff]
      %v179 = vld [vmem:[%s167 + $0x18] sm:$0xff]
      %v180 = vld [vmem:[%s167 + $0x20] sm:$0xff]
      %v181 = vld [vmem:[%s167 + $0x28] sm:$0xff]
      %v182 = vld [vmem:[%s167 + $0x30] sm:$0xff]
      %v183 = vld [vmem:[%s167 + $0x38] sm:$0xff]
      %v184 = vld [vmem:[%s1] sm:$0xff]
      %v185 = vld [vmem:[%s1 + $0x8] sm:$0xff]
      %v186 = vld [vmem:[%s1 + $0x10] sm:$0xff]
      %v187 = vld [vmem:[%s1 + $0x18] sm:$0xff]
      %v188 = vld [vmem:[%s1 + $0x20] sm:$0xff]
      %v189 = vld [vmem:[%s1 + $0x28] sm:$0xff]
      %v190 = vld [vmem:[%s1 + $0x30] sm:$0xff]
      %v191 = vld [vmem:[%s1 + $0x38] sm:$0xff]
      %v192 = vld [vmem:[%s1 + $0x40] sm:$0xff]
      %v193 = vld [vmem:[%s1 + $0x48] sm:$0xff]
      %v194 = vld [vmem:[%s1 + $0x50] sm:$0xff]
      %v195 = vld [vmem:[%s1 + $0x58] sm:$0xff]
      %v196 = vld [vmem:[%s1 + $0x60] sm:$0xff]
      %v197 = vld [vmem:[%s1 + $0x68] sm:$0xff]
      %v198 = vld [vmem:[%s1 + $0x70] sm:$0xff]
      %v199 = vld [vmem:[%s1 + $0x78] sm:$0xff]
      %v200 = vld [vmem:[%s1 + $0x80] sm:$0xff]
      %v201 = vld [vmem:[%s1 + $0x88] sm:$0xff]
      %v202 = vld [vmem:[%s1 + $0x90] sm:$0xff]
      %v203 = vld [vmem:[%s1 + $0x98] sm:$0xff]
      %v204 = vld [vmem:[%s1 + $0xa0] sm:$0xff]
      %v205 = vld [vmem:[%s1 + $0xa8] sm:$0xff]
      %v206 = vld [vmem:[%s1 + $0xb0] sm:$0xff]
      %v207 = vld [vmem:[%s1 + $0xb8] sm:$0xff]
      %v208 = vld [vmem:[%s1 + $0xc0] sm:$0xff]
      %v209 = vld [vmem:[%s1 + $0xc8] sm:$0xff]
      %v210 = vld [vmem:[%s1 + $0xd0] sm:$0xff]
      %v211 = vld [vmem:[%s1 + $0xd8] sm:$0xff]
      %v212 = vld [vmem:[%s1 + $0xe0] sm:$0xff]
      %v213 = vld [vmem:[%s1 + $0xe8] sm:$0xff]
      %v214 = vld [vmem:[%s1 + $0xf0] sm:$0xff]
      %v215 = vld [vmem:[%s1 + $0xf8] sm:$0xff]
      %v216 = vld [vmem:[%s1 + $0x100] sm:$0xff]
      %v217 = vld [vmem:[%s1 + $0x108] sm:$0xff]
      %v218 = vld [vmem:[%s1 + $0x110] sm:$0xff]
      %v219 = vld [vmem:[%s1 + $0x118] sm:$0xff]
      %v220 = vld [vmem:[%s1 + $0x120] sm:$0xff]
      %v221 = vld [vmem:[%s1 + $0x128] sm:$0xff]
      %v222 = vld [vmem:[%s1 + $0x130] sm:$0xff]
      %v223 = vld [vmem:[%s1 + $0x138] sm:$0xff]
      %v224 = vld [vmem:[%s1 + $0x140] sm:$0xff]
      %v225 = vld [vmem:[%s1 + $0x148] sm:$0xff]
      %v226 = vld [vmem:[%s1 + $0x150] sm:$0xff]
      %v227 = vld [vmem:[%s1 + $0x158] sm:$0xff]
      %v228 = vld [vmem:[%s1 + $0x160] sm:$0xff]
      %v229 = vld [vmem:[%s1 + $0x168] sm:$0xff]
      %v230 = vld [vmem:[%s1 + $0x170] sm:$0xff]
      %v231 = vld [vmem:[%s1 + $0x178] sm:$0xff]
      %v232 = vld [vmem:[%s2] sm:$0x7]
      %v234 = vlaneseq
      %v235 = vshrl.u32 %v234, 7
      %v236 = vsub.s32 0, %v235
      %v237 = vrot.slane %v232, %v236
      %v238 = vlaneseq
      %v239 = vshrl.u32 %v238, 7
      %v240 = vsub.s32 1, %v239
      %v241 = vrot.slane %v232, %v240
      %v242 = vlaneseq
      %v243 = vshrl.u32 %v242, 7
      %v244 = vsub.s32 2, %v243
      %v245 = vrot.slane %v232, %v244
      %249 = vmatprep.subr.mxu0 %v230
      %250 = vmatpush1.msra.mxu0 %v229
      %251 = vmatprep.subr.mxu0 %v227
      %252 = vmatpush1.msra.mxu0 %v226
      %253 = vmatprep.subr.mxu0 %v224
      %254 = vmatpush1.msra.mxu0 %v223
      %255 = vmatprep.subr.mxu0 %v221
      %256 = vmatpush1.msra.mxu0 %v220
      %257 = vmatprep.subr.mxu0 %v218
      %258 = vmatpush1.msra.mxu0 %v217
      %259 = vmatprep.subr.mxu0 %v215
      %260 = vmatpush1.msra.mxu0 %v214
      %261 = vmatprep.subr.mxu0 %v212
      %262 = vmatpush1.msra.mxu0 %v211
      %263 = vmatprep.subr.mxu0 %v209
      %264 = vmatpush1.msra.mxu0 %v208
      %265 = vmatprep.subr.mxu0 %v206
      %266 = vmatpush1.msra.mxu0 %v205
      %267 = vmatprep.subr.mxu0 %v203
      %268 = vmatpush1.msra.mxu0 %v202
      %269 = vmatprep.subr.mxu0 %v200
      %270 = vmatpush1.msra.mxu0 %v199
      %271 = vmatprep.subr.mxu0 %v197
      %272 = vmatpush1.msra.mxu0 %v196
      %273 = vmatprep.subr.mxu0 %v194
      %274 = vmatpush1.msra.mxu0 %v193
      %275 = vmatprep.subr.mxu0 %v191
      %276 = vmatpush1.msra.mxu0 %v190
      %277 = vmatprep.subr.mxu0 %v188
      %278 = vmatpush1.msra.mxu0 %v187
      %279 = vmatprep.subr.mxu0 %v185
      %280 = vmatpush1.msra.mxu0 %v184
      %281 = vmatprep.subr.mxu0 0.0
      %282 = vmatpush2.msra.mxu0 0.0
      %283 = vmatprep.subr.mxu0 0.0
      %284 = vmatpush2.msra.mxu0 0.0
      %285 = vmatprep.subr.mxu0 0.0
      %286 = vmatpush2.msra.mxu0 0.0
      %287 = vmatprep.subr.mxu0 0.0
      %288 = vmatpush2.msra.mxu0 0.0
      %289 = vmatprep.subr.mxu0 0.0
      %290 = vmatpush2.msra.mxu0 0.0
      %291 = vmatprep.subr.mxu0 0.0
      %292 = vmatpush2.msra.mxu0 0.0
      %293 = vmatprep.subr.mxu0 0.0
      %294 = vmatpush2.msra.mxu0 0.0
      %295 = vmatprep.subr.mxu0 0.0
      %296 = vmatpush2.msra.mxu0 0.0
      %297 = vmatprep.subr.mxu0 0.0
      %298 = vmatpush2.msra.mxu0 0.0
      %299 = vmatprep.subr.mxu0 0.0
      %300 = vmatpush2.msra.mxu0 0.0
      %301 = vmatprep.subr.mxu0 0.0
      %302 = vmatpush2.msra.mxu0 0.0
      %303 = vmatprep.subr.mxu0 0.0
      %304 = vmatpush2.msra.mxu0 0.0
      %305 = vmatprep.subr.mxu0 0.0
      %306 = vmatpush2.msra.mxu0 0.0
      %307 = vmatprep.subr.mxu0 0.0
      %308 = vmatpush2.msra.mxu0 0.0
      %309 = vmatprep.subr.mxu0 0.0
      %310 = vmatpush2.msra.mxu0 0.0
      %311 = vmatprep.subr.mxu0 0.0
      %312 = vmatpush2.msra.mxu0 0.0
      %313 = vmatprep.mubr.f32.mxu0 0.0
      %314 = vmatmul.mubr.f32.gmra.mxu0 %v176
      %v315 = vpop.f32.mrf.mxu0
      %v316 = vadd.f32 %v237, %v315
      %v317 = vpop.f32.mrf.mxu0
      %v318 = vadd.f32 %v241, %v317
      %319 = vmatprep.mubr.f32.mxu0 0.0
      %320 = vmatmul.mubr.f32.gmra.mxu0 %v177
      %v321 = vpop.f32.mrf.mxu0
      %v322 = vadd.f32 %v237, %v321
      %v323 = vpop.f32.mrf.mxu0
      %v324 = vadd.f32 %v241, %v323
      %325 = vmatprep.mubr.f32.mxu0 0.0
      %326 = vmatmul.mubr.f32.gmra.mxu0 %v178
      %v327 = vpop.f32.mrf.mxu0
      %v328 = vadd.f32 %v237, %v327
      %v329 = vpop.f32.mrf.mxu0
      %v330 = vadd.f32 %v241, %v329
      %331 = vmatprep.mubr.f32.mxu0 0.0
      %332 = vmatmul.mubr.f32.gmra.mxu0 %v179
      %v333 = vpop.f32.mrf.mxu0
      %v334 = vadd.f32 %v237, %v333
      %v335 = vpop.f32.mrf.mxu0
      %v336 = vadd.f32 %v241, %v335
      %337 = vmatprep.mubr.f32.mxu0 0.0
      %338 = vmatmul.mubr.f32.gmra.mxu0 %v180
      %v339 = vpop.f32.mrf.mxu0
      %v340 = vadd.f32 %v237, %v339
      %v341 = vpop.f32.mrf.mxu0
      %v342 = vadd.f32 %v241, %v341
      %343 = vmatprep.mubr.f32.mxu0 0.0
      %344 = vmatmul.mubr.f32.gmra.mxu0 %v181
      %v345 = vpop.f32.mrf.mxu0
      %v346 = vadd.f32 %v237, %v345
      %v347 = vpop.f32.mrf.mxu0
      %v348 = vadd.f32 %v241, %v347
      %349 = vmatprep.mubr.f32.mxu0 0.0
      %350 = vmatmul.mubr.f32.gmra.mxu0 %v182
      %v351 = vpop.f32.mrf.mxu0
      %v352 = vadd.f32 %v237, %v351
      %v353 = vpop.f32.mrf.mxu0
      %v354 = vadd.f32 %v241, %v353
      %355 = vmatprep.mubr.f32.mxu0 0.0
      %356 = vmatmul.mubr.f32.gmra.mxu0 %v183
      %v357 = vpop.f32.mrf.mxu0
      %v358 = vadd.f32 %v237, %v357
      %v359 = vpop.f32.mrf.mxu0
      %v360 = vadd.f32 %v241, %v359
      %361 = vdwg.mxu0
      %362 = vmatprep.subr.mxu0 0.0
      %363 = vmatpush1.msra.mxu0 %v231
      %364 = vmatprep.subr.mxu0 0.0
      %365 = vmatpush1.msra.mxu0 %v228
      %366 = vmatprep.subr.mxu0 0.0
      %367 = vmatpush1.msra.mxu0 %v225
      %368 = vmatprep.subr.mxu0 0.0
      %369 = vmatpush1.msra.mxu0 %v222
      %370 = vmatprep.subr.mxu0 0.0
      %371 = vmatpush1.msra.mxu0 %v219
      %372 = vmatprep.subr.mxu0 0.0
      %373 = vmatpush1.msra.mxu0 %v216
      %374 = vmatprep.subr.mxu0 0.0
      %375 = vmatpush1.msra.mxu0 %v213
      %376 = vmatprep.subr.mxu0 0.0
      %377 = vmatpush1.msra.mxu0 %v210
      %378 = vmatprep.subr.mxu0 0.0
      %379 = vmatpush1.msra.mxu0 %v207
      %380 = vmatprep.subr.mxu0 0.0
      %381 = vmatpush1.msra.mxu0 %v204
      %382 = vmatprep.subr.mxu0 0.0
      %383 = vmatpush1.msra.mxu0 %v201
      %384 = vmatprep.subr.mxu0 0.0
      %385 = vmatpush1.msra.mxu0 %v198
      %386 = vmatprep.subr.mxu0 0.0
      %387 = vmatpush1.msra.mxu0 %v195
      %388 = vmatprep.subr.mxu0 0.0
      %389 = vmatpush1.msra.mxu0 %v192
      %390 = vmatprep.subr.mxu0 0.0
      %391 = vmatpush1.msra.mxu0 %v189
      %392 = vmatprep.subr.mxu0 0.0
      %393 = vmatpush1.msra.mxu0 %v186
      %394 = vmatprep.subr.mxu0 0.0
      %395 = vmatpush2.msra.mxu0 0.0
      %396 = vmatprep.subr.mxu0 0.0
      %397 = vmatpush2.msra.mxu0 0.0
      %398 = vmatprep.subr.mxu0 0.0
      %399 = vmatpush2.msra.mxu0 0.0
      %400 = vmatprep.subr.mxu0 0.0
      %401 = vmatpush2.msra.mxu0 0.0
      %402 = vmatprep.subr.mxu0 0.0
      %403 = vmatpush2.msra.mxu0 0.0
      %404 = vmatprep.subr.mxu0 0.0
      %405 = vmatpush2.msra.mxu0 0.0
      %406 = vmatprep.subr.mxu0 0.0
      %407 = vmatpush2.msra.mxu0 0.0
      %408 = vmatprep.subr.mxu0 0.0
      %409 = vmatpush2.msra.mxu0 0.0
      %410 = vmatprep.subr.mxu0 0.0
      %411 = vmatpush2.msra.mxu0 0.0
      %412 = vmatprep.subr.mxu0 0.0
      %413 = vmatpush2.msra.mxu0 0.0
      %414 = vmatprep.subr.mxu0 0.0
      %415 = vmatpush2.msra.mxu0 0.0
      %416 = vmatprep.subr.mxu0 0.0
      %417 = vmatpush2.msra.mxu0 0.0
      %418 = vmatprep.subr.mxu0 0.0
      %419 = vmatpush2.msra.mxu0 0.0
      %420 = vmatprep.subr.mxu0 0.0
      %421 = vmatpush2.msra.mxu0 0.0
      %422 = vmatprep.subr.mxu0 0.0
      %423 = vmatpush2.msra.mxu0 0.0
      %424 = vmatprep.subr.mxu0 0.0
      %425 = vmatpush2.msra.mxu0 0.0
      %426 = vmatprep.mubr.f32.mxu0 0.0
      %427 = vmatmul.mubr.f32.gmra.mxu0 %v176
      %v428 = vpop.f32.mrf.mxu0
      %v429 = vadd.f32 %v245, %v428
      %v430 = vpop.f32.mrf.mxu0
      %431 = vmatprep.mubr.f32.mxu0 0.0
      %432 = vmatmul.mubr.f32.gmra.mxu0 %v177
      %v433 = vpop.f32.mrf.mxu0
      %v434 = vadd.f32 %v245, %v433
      %v435 = vpop.f32.mrf.mxu0
      %436 = vmatprep.mubr.f32.mxu0 0.0
      %437 = vmatmul.mubr.f32.gmra.mxu0 %v178
      %v438 = vpop.f32.mrf.mxu0
      %v439 = vadd.f32 %v245, %v438
      %v440 = vpop.f32.mrf.mxu0
      %441 = vmatprep.mubr.f32.mxu0 0.0
      %442 = vmatmul.mubr.f32.gmra.mxu0 %v179
      %v443 = vpop.f32.mrf.mxu0
      %v444 = vadd.f32 %v245, %v443
      %v445 = vpop.f32.mrf.mxu0
      %446 = vmatprep.mubr.f32.mxu0 0.0
      %447 = vmatmul.mubr.f32.gmra.mxu0 %v180
      %v448 = vpop.f32.mrf.mxu0
      %v449 = vadd.f32 %v245, %v448
      %v450 = vpop.f32.mrf.mxu0
      %451 = vmatprep.mubr.f32.mxu0 0.0
      %452 = vmatmul.mubr.f32.gmra.mxu0 %v181
      %v453 = vpop.f32.mrf.mxu0
      %v454 = vadd.f32 %v245, %v453
      %v455 = vpop.f32.mrf.mxu0
      %456 = vmatprep.mubr.f32.mxu0 0.0
      %457 = vmatmul.mubr.f32.gmra.mxu0 %v182
      %v458 = vpop.f32.mrf.mxu0
      %v459 = vadd.f32 %v245, %v458
      %v460 = vpop.f32.mrf.mxu0
      %461 = vmatprep.mubr.f32.mxu0 0.0
      %462 = vmatmul.mubr.f32.gmra.mxu0 %v183
      %v463 = vpop.f32.mrf.mxu0
      %v464 = vadd.f32 %v245, %v463
      %v465 = vpop.f32.mrf.mxu0
      %466 = vdwg.mxu0
      %467 = vst [vmem:[%s174] sm:$0xff] %v316
      %468 = vst [vmem:[%s174 + $0x8] sm:$0xff] %v318
      %469 = vst [vmem:[%s174 + $0x10] sm:$0xff] %v429
      %470 = vst [vmem:[%s174 + $0x18] sm:$0xff] %v322
      %471 = vst [vmem:[%s174 + $0x20] sm:$0xff] %v324
      %472 = vst [vmem:[%s174 + $0x28] sm:$0xff] %v434
      %473 = vst [vmem:[%s174 + $0x30] sm:$0xff] %v328
      %474 = vst [vmem:[%s174 + $0x38] sm:$0xff] %v330
      %475 = vst [vmem:[%s174 + $0x40] sm:$0xff] %v439
      %476 = vst [vmem:[%s174 + $0x48] sm:$0xff] %v334
      %477 = vst [vmem:[%s174 + $0x50] sm:$0xff] %v336
      %478 = vst [vmem:[%s174 + $0x58] sm:$0xff] %v444
      %479 = vst [vmem:[%s174 + $0x60] sm:$0xff] %v340
      %480 = vst [vmem:[%s174 + $0x68] sm:$0xff] %v342
      %481 = vst [vmem:[%s174 + $0x70] sm:$0xff] %v449
      %482 = vst [vmem:[%s174 + $0x78] sm:$0xff] %v346
      %483 = vst [vmem:[%s174 + $0x80] sm:$0xff] %v348
      %484 = vst [vmem:[%s174 + $0x88] sm:$0xff] %v454
      %485 = vst [vmem:[%s174 + $0x90] sm:$0xff] %v352
      %486 = vst [vmem:[%s174 + $0x98] sm:$0xff] %v354
      %487 = vst [vmem:[%s174 + $0xa0] sm:$0xff] %v459
      %488 = vst [vmem:[%s174 + $0xa8] sm:$0xff] %v358
      %489 = vst [vmem:[%s174 + $0xb0] sm:$0xff] %v360
      %490 = vst [vmem:[%s174 + $0xb8] sm:$0xff] %v464
      %s491 = smul.u32 8, %s14
      %p492 = scmp.lt.s32.totalorder %s491, 15
      %s493 = scalar_select %p492, %s491, 15
      %s494 = smul.addr %s493, 3
      %s495 = smul.addr %s494, 8
      %s496 = scalar_lea.vmem %s3, %s495
      // Predicated region
      $region33: #{rnnlm_forward.2} parent=31 // pred_check
        %p497 = pneg %p100
      $region34: #{rnnlm_forward.2} parent=31 // pred_check_branch
        %499 = sbr.rel (%p497) target = $region36
      $region35: #{rnnlm_forward.2} parent=31 // pred_region
        %s500 = smul.u32 8, %s14
      $region36: #{rnnlm_forward.2} parent=31 // pred_fallthru
        _
    $region32: #{rnnlm_forward.2} parent=5 // pred_fallthru
      _
    %p501 = scmp.le.s32.totalorder 2, %s9
    // Predicated region
    $region37: #{rnnlm_forward.2} parent=5 // pred_check
      %p502 = pneg %p501
    $region38: #{rnnlm_forward.2} parent=5 // pred_check_branch
      %504 = sbr.rel (%p502) target = $region40
    $region39: #{rnnlm_forward.2} parent=5 // pred_region
      %s505 = ssub.s32 %s9, 2
      // Predicated region
      $region41: #{rnnlm_forward.2} parent=39 // pred_check
        %p506 = pneg %p106
      $region42: #{rnnlm_forward.2} parent=39 // pred_check_branch
        %508 = sbr.rel (%p506) target = $region44
      $region43: #{rnnlm_forward.2} parent=39 // pred_region
        %s509 = smul.u32 8, %s15
        %p510 = scmp.lt.s32.totalorder %s509, 15
        %s511 = scalar_select %p510, %s509, 15
        %s512 = smul.addr %s511, 3
        %s513 = smul.addr %s512, 8
        %s514 = scalar_lea.vmem %s3, %s513
      $region44: #{rnnlm_forward.2} parent=39 // pred_fallthru
        _
    $region40: #{rnnlm_forward.2} parent=5 // pred_fallthru
      _
  $region6: #{rnnlm_forward.2} parent=0 // loop_footer
    %s13 = sadd.s32 1, %s9
  $region7: #{rnnlm_forward.2} parent=0 // loop_footer_branch
    %8 = sbr.rel target = $region3
  $region8: #{rnnlm_forward.2} parent=0 // loop_exit
    _

// kernel: rnnlm_forward.3
$region0: #{rnnlm_forward.3}
  #allocation0 [shape = 'u32[]', space=smem, size = 0x4, offset = 0x4, fixed_abs, tag = 'smem constant byte address 0x4 - core index']
  #allocation1 [shape = 'u32[144,128]{1,0:T(1,128)}', space=vmem, size = 0x12000, scoped, tag = 'internal scratch']
  #allocation2 [shape = 'f32[8,128]{1,0:T(8,128)}', space=vmem, size = 0x1000, scoped, tag = 'scratch operand']
  #allocation3 [shape = 'f32[8,8,128]{2,1,0:T(8,128)}', space=vmem, size = 0x8000, scoped, tag = 'scratch operand']
  %s0 = inlined_call_operand.vmem [shape: f32[16,8,384], index: 0, kind: input, shape index: {}]
  %s1 = inlined_call_operand.vmem [shape: f32[8,128], index: 1, kind: input, shape index: {}]
  %s2 = inlined_call_operand.vmem [shape: f32[128,384], index: 2, kind: input, shape index: {}]
  %s3 = inlined_call_operand.vmem [shape: f32[1,128], index: 3, kind: input, shape index: {}]
  %s4 = inlined_call_operand.vmem [shape: f32[128,4], index: 4, kind: input, shape index: {}]
  %s5 = inlined_call_operand.vmem [shape: f32[1,4], index: 5, kind: input, shape index: {}]
  %s6 = inlined_call_operand.vmem [shape: f32[16,8,4], index: 6, kind: output, shape index: {0}]
  %s7 = inlined_call_operand.hbm [shape: f32[8,128], index: 7, kind: output, shape index: {1}]
  %8 = xla_tuple %s6, %s7
  %s9 = sld [smem:[#allocation0]]
  $region73: #{rnnlm_forward.3} parent=0
    _
  %s11 = ssub.s32 1, %s9
  %s12 = scalar_select 0, %s11, %s9
  $region1: #{rnnlm_forward.3} parent=0
    #allocation4 [shape = 'u8[4096]{0}', space=vmem, size = 0x1000, scoped, tag = 'output window, operand 1, single buffered']
    #allocation5 [shape = 's32[2]{0}', space=sflag, size = 0x8, scoped, tag = 'scoped memory for rnnlm_forward.3']
    %13 = vsyncpa [#allocation5], 0
    loop: start=0, step=1, limit=4
    $region2: #{rnnlm_forward.3} parent=1 // loop_pre_header
      _
    $region3: #{rnnlm_forward.3} parent=1 // loop_header
      %s15 = sphi 0, %s19
      %p16 = scmp.ge.s32.totalorder %s15, 4
      %s25 = sphi 0, %s27
      %s28 = sphi 0, %s25
      %s29 = sphi 0, %s28
      %s45 = sphi 0, %s29
      %s49 = sphi 0, %s49
      %s51 = sphi 0, %s49
      %s52 = sphi 0, %s51
      %s66 = sphi 0, %s52
      %s70 = sphi 0, %s70
      %s72 = sphi 0, %s70
      %s73 = sphi 0, %s72
      %s87 = sphi 0, %s73
      %s91 = sphi 0, %s91
      %s93 = sphi 0, %s91
      %s94 = sphi 0, %s93
      %s108 = sphi 0, %s94
      %s112 = sphi 0, %s112
      %s114 = sphi 0, %s112
      %s115 = sphi 0, %s114
      %s129 = sphi 0, %s115
      %s133 = sphi 0, %s133
      %s135 = sphi 0, %s133
      %s136 = sphi 0, %s135
      %s150 = sphi 0, %s136
      %s156 = sphi 0, %s158
      %s159 = sphi 0, %s156
      %s160 = sphi 0, %s159
      %s176 = sphi 0, %s160
      %s180 = sphi 0, %s180
      %s182 = sphi 0, %s180
      %s183 = sphi 0, %s182
      %s197 = sphi 0, %s183
    $region4: #{rnnlm_forward.3} parent=1 // loop_header_branch
      %18 = sbr.rel (%p16) target = $region8
    $region5: #{rnnlm_forward.3} parent=1 // loop_body
      %s20 = ssub.s32 %s15, 1
      %s21 = ssub.s32 %s15, 2
      %s22 = sadd.s32 %s15, 1
      %s23 = ssub.s32 %s15, %s22
      %p24 = scmp.eq.s32.totalorder %s23, 0
      %s26 = sadd.s32 %s25, 1
      %s27 = scalar_select %p24, %s25, %s26
      %p30 = pneg %p24
      %p31 = scmp.eq.s32.totalorder %s15, 1
      %p32 = por %p30, %p31
      %p33 = scmp.ne.s32.totalorder %s25, %s28
      %p34 = scmp.eq.s32.totalorder %s15, 0
      %p35 = por %p33, %p34
      %p36 = scmp.ne.s32.totalorder %s25, %s28
      %p37 = scmp.eq.s32.totalorder %s20, 1
      %p38 = por %p36, %p37
      %p39 = scmp.ne.s32.totalorder %s28, %s29
      %p40 = scmp.eq.s32.totalorder %s20, 0
      %p41 = por %p39, %p40
      %p42 = scmp.ne.s32.totalorder %s28, %s29
      %p43 = scmp.eq.s32.totalorder %s21, 1
      %p44 = por %p42, %p43
      %p46 = scmp.ne.s32.totalorder %s29, %s45
      %p47 = scmp.eq.s32.totalorder %s21, 0
      %p48 = por %p46, %p47
      %s50 = sadd.s32 %s49, 1
      %p53 = scmp.eq.s32.totalorder %s15, 1
      %p54 = scmp.ne.s32.totalorder %s49, %s51
      %p55 = scmp.eq.s32.totalorder %s15, 0
      %p56 = por %p54, %p55
      %p57 = scmp.ne.s32.totalorder %s49, %s51
      %p58 = scmp.eq.s32.totalorder %s20, 1
      %p59 = por %p57, %p58
      %p60 = scmp.ne.s32.totalorder %s51, %s52
      %p61 = scmp.eq.s32.totalorder %s20, 0
      %p62 = por %p60, %p61
      %p63 = scmp.ne.s32.totalorder %s51, %s52
      %p64 = scmp.eq.s32.totalorder %s21, 1
      %p65 = por %p63, %p64
      %p67 = scmp.ne.s32.totalorder %s52, %s66
      %p68 = scmp.eq.s32.totalorder %s21, 0
      %p69 = por %p67, %p68
      %s71 = sadd.s32 %s70, 1
      %p74 = scmp.eq.s32.totalorder %s15, 1
      %p75 = scmp.ne.s32.totalorder %s70, %s72
      %p76 = scmp.eq.s32.totalorder %s15, 0
      %p77 = por %p75, %p76
      %p78 = scmp.ne.s32.totalorder %s70, %s72
      %p79 = scmp.eq.s32.totalorder %s20, 1
      %p80 = por %p78, %p79
      %p81 = scmp.ne.s32.totalorder %s72, %s73
      %p82 = scmp.eq.s32.totalorder %s20, 0
      %p83 = por %p81, %p82
      %p84 = scmp.ne.s32.totalorder %s72, %s73
      %p85 = scmp.eq.s32.totalorder %s21, 1
      %p86 = por %p84, %p85
      %p88 = scmp.ne.s32.totalorder %s73, %s87
      %p89 = scmp.eq.s32.totalorder %s21, 0
      %p90 = por %p88, %p89
      %s92 = sadd.s32 %s91, 1
      %p95 = scmp.eq.s32.totalorder %s15, 1
      %p96 = scmp.ne.s32.totalorder %s91, %s93
      %p97 = scmp.eq.s32.totalorder %s15, 0
      %p98 = por %p96, %p97
      %p99 = scmp.ne.s32.totalorder %s91, %s93
      %p100 = scmp.eq.s32.totalorder %s20, 1
      %p101 = por %p99, %p100
      %p102 = scmp.ne.s32.totalorder %s93, %s94
      %p103 = scmp.eq.s32.totalorder %s20, 0
      %p104 = por %p102, %p103
      %p105 = scmp.ne.s32.totalorder %s93, %s94
      %p106 = scmp.eq.s32.totalorder %s21, 1
      %p107 = por %p105, %p106
      %p109 = scmp.ne.s32.totalorder %s94, %s108
      %p110 = scmp.eq.s32.totalorder %s21, 0
      %p111 = por %p109, %p110
      %s113 = sadd.s32 %s112, 1
      %p116 = scmp.eq.s32.totalorder %s15, 1
      %p117 = scmp.ne.s32.totalorder %s112, %s114
      %p118 = scmp.eq.s32.totalorder %s15, 0
      %p119 = por %p117, %p118
      %p120 = scmp.ne.s32.totalorder %s112, %s114
      %p121 = scmp.eq.s32.totalorder %s20, 1
      %p122 = por %p120, %p121
      %p123 = scmp.ne.s32.totalorder %s114, %s115
      %p124 = scmp.eq.s32.totalorder %s20, 0
      %p125 = por %p123, %p124
      %p126 = scmp.ne.s32.totalorder %s114, %s115
      %p127 = scmp.eq.s32.totalorder %s21, 1
      %p128 = por %p126, %p127
      %p130 = scmp.ne.s32.totalorder %s115, %s129
      %p131 = scmp.eq.s32.totalorder %s21, 0
      %p132 = por %p130, %p131
      %s134 = sadd.s32 %s133, 1
      %p137 = scmp.eq.s32.totalorder %s15, 1
      %p138 = scmp.ne.s32.totalorder %s133, %s135
      %p139 = scmp.eq.s32.totalorder %s15, 0
      %p140 = por %p138, %p139
      %p141 = scmp.ne.s32.totalorder %s133, %s135
      %p142 = scmp.eq.s32.totalorder %s20, 1
      %p143 = por %p141, %p142
      %p144 = scmp.ne.s32.totalorder %s135, %s136
      %p145 = scmp.eq.s32.totalorder %s20, 0
      %p146 = por %p144, %p145
      %p147 = scmp.ne.s32.totalorder %s135, %s136
      %p148 = scmp.eq.s32.totalorder %s21, 1
      %p149 = por %p147, %p148
      %p151 = scmp.ne.s32.totalorder %s136, %s150
      %p152 = scmp.eq.s32.totalorder %s21, 0
      %p153 = por %p151, %p152
      %s154 = ssub.s32 %s15, %s22
      %p155 = scmp.eq.s32.totalorder %s154, 0
      %s157 = sadd.s32 %s156, 1
      %s158 = scalar_select %p155, %s156, %s157
      %p161 = pneg %p155
      %p162 = scmp.eq.s32.totalorder %s15, 1
      %p163 = por %p161, %p162
      %p164 = scmp.ne.s32.totalorder %s156, %s159
      %p165 = scmp.eq.s32.totalorder %s15, 0
      %p166 = por %p164, %p165
      %p167 = scmp.ne.s32.totalorder %s156, %s159
      %p168 = scmp.eq.s32.totalorder %s20, 1
      %p169 = por %p167, %p168
      %p170 = scmp.ne.s32.totalorder %s159, %s160
      %p171 = scmp.eq.s32.totalorder %s20, 0
      %p172 = por %p170, %p171
      %p173 = scmp.ne.s32.totalorder %s159, %s160
      %p174 = scmp.eq.s32.totalorder %s21, 1
      %p175 = por %p173, %p174
      %p177 = scmp.ne.s32.totalorder %s160, %s176
      %p178 = scmp.eq.s32.totalorder %s21, 0
      %p179 = por %p177, %p178
      %s181 = sadd.s32 %s180, 1
      %p184 = scmp.eq.s32.totalorder %s15, 1
      %p185 = scmp.ne.s32.totalorder %s180, %s182
      %p186 = scmp.eq.s32.totalorder %s15, 0
      %p187 = por %p185, %p186
      %p188 = scmp.ne.s32.totalorder %s180, %s182
      %p189 = scmp.eq.s32.totalorder %s20, 1
      %p190 = por %p188, %p189
      %p191 = scmp.ne.s32.totalorder %s182, %s183
      %p192 = scmp.eq.s32.totalorder %s20, 0
      %p193 = por %p191, %p192
      %p194 = scmp.ne.s32.totalorder %s182, %s183
      %p195 = scmp.eq.s32.totalorder %s21, 1
      %p196 = por %p194, %p195
      %p198 = scmp.ne.s32.totalorder %s183, %s197
      %p199 = scmp.eq.s32.totalorder %s21, 0
      %p200 = por %p198, %p199
      %p201 = scmp.le.s32.totalorder 1, %s15
      %p202 = scmp.lt.s32.totalorder %s15, 3
      %p203 = pnand %p201, %p202
      %p204 = pneg %p203
      // Predicated region
      $region9: #{rnnlm_forward.3} parent=5 // pred_check
        _
      $region10: #{rnnlm_forward.3} parent=5 // pred_check_branch
        %206 = sbr.rel (%p203) target = $region12
      $region11: #{rnnlm_forward.3} parent=5 // pred_region
        %s207 = ssub.s32 %s15, 1
        // Predicated region
        $region13: #{rnnlm_forward.3} parent=11 // pred_check
          %p208 = pneg %p62
        $region14: #{rnnlm_forward.3} parent=11 // pred_check_branch
          %210 = sbr.rel (%p208) target = $region16
        $region15: #{rnnlm_forward.3} parent=11 // pred_region
          _
        $region16: #{rnnlm_forward.3} parent=11 // pred_fallthru
          _
        // Predicated region
        $region17: #{rnnlm_forward.3} parent=11 // pred_check
          %p211 = pneg %p83
        $region18: #{rnnlm_forward.3} parent=11 // pred_check_branch
          %213 = sbr.rel (%p211) target = $region20
        $region19: #{rnnlm_forward.3} parent=11 // pred_region
          _
        $region20: #{rnnlm_forward.3} parent=11 // pred_fallthru
          _
        // Predicated region
        $region21: #{rnnlm_forward.3} parent=11 // pred_check
          %p214 = pneg %p104
        $region22: #{rnnlm_forward.3} parent=11 // pred_check_branch
          %216 = sbr.rel (%p214) target = $region24
        $region23: #{rnnlm_forward.3} parent=11 // pred_region
          _
        $region24: #{rnnlm_forward.3} parent=11 // pred_fallthru
          _
        // Predicated region
        $region25: #{rnnlm_forward.3} parent=11 // pred_check
          %p217 = pneg %p125
        $region26: #{rnnlm_forward.3} parent=11 // pred_check_branch
          %219 = sbr.rel (%p217) target = $region28
        $region27: #{rnnlm_forward.3} parent=11 // pred_region
          _
        $region28: #{rnnlm_forward.3} parent=11 // pred_fallthru
          _
        // Predicated region
        $region29: #{rnnlm_forward.3} parent=11 // pred_check
          %p220 = pneg %p146
        $region30: #{rnnlm_forward.3} parent=11 // pred_check_branch
          %222 = sbr.rel (%p220) target = $region32
        $region31: #{rnnlm_forward.3} parent=11 // pred_region
          _
        $region32: #{rnnlm_forward.3} parent=11 // pred_fallthru
          _
      $region12: #{rnnlm_forward.3} parent=5 // pred_fallthru
        _
      %p223 = scmp.lt.s32.totalorder %s15, 2
      // Predicated region
      $region33: #{rnnlm_forward.3} parent=5 // pred_check
        %p224 = pneg %p223
      $region34: #{rnnlm_forward.3} parent=5 // pred_check_branch
        %226 = sbr.rel (%p224) target = $region36
      $region35: #{rnnlm_forward.3} parent=5 // pred_region
        // Predicated region
        $region37: #{rnnlm_forward.3} parent=35 // pred_check
          %p227 = pneg %p35
        $region38: #{rnnlm_forward.3} parent=35 // pred_check_branch
          %229 = sbr.rel (%p227) target = $region40
        $region39: #{rnnlm_forward.3} parent=35 // pred_region
          %s230 = smul.u32 8, %s15
          %p231 = scmp.lt.s32.totalorder %s230, 15
          %s232 = scalar_select %p231, %s230, 15
          %s233 = smul.addr %s232, 3
          %s234 = smul.addr %s233, 8
          %s235 = scalar_lea.vmem %s0, %s234
          %s236 = smul.u32 8, %s15
        $region40: #{rnnlm_forward.3} parent=35 // pred_fallthru
          _
      $region36: #{rnnlm_forward.3} parent=5 // pred_fallthru
        _
      %p237 = scmp.le.s32.totalorder 1, %s15
      %p238 = scmp.lt.s32.totalorder %s15, 3
      %p239 = pnand %p237, %p238
      %p240 = pneg %p239
      // Predicated region
      $region41: #{rnnlm_forward.3} parent=5 // pred_check
        _
      $region42: #{rnnlm_forward.3} parent=5 // pred_check_branch
        %242 = sbr.rel (%p239) target = $region44
      $region43: #{rnnlm_forward.3} parent=5 // pred_region
        %s243 = ssub.s32 %s15, 1
        %s244 = smul.u32 8, %s20
        %p245 = scmp.lt.s32.totalorder %s244, 15
        %s246 = scalar_select %p245, %s244, 15
        %s247 = smul.addr %s246, 3
        %s248 = smul.addr %s247, 8
        %s249 = scalar_lea.vmem %s0, %s248
        %p250 = pneg %p41
        %p251 = pneg %p38
        %p252 = pneg %p62
        %p253 = pneg %p59
        %p254 = pneg %p83
        %p255 = pneg %p80
        %p256 = pneg %p104
        %p257 = pneg %p101
        %p258 = pneg %p125
        %p259 = pneg %p122
        %p260 = pneg %p146
        %p261 = pneg %p143
        %p262 = pneg %p172
        %p263 = pneg %p169
        %s264 = smul.u32 8, %s20
        %p265 = scmp.lt.s32.totalorder %s264, 15
        %s266 = scalar_select %p265, %s264, 15
        %s267 = smul.addr %s266, 8
        %s268 = scalar_lea.vmem %s6, %s267
        %p269 = pneg %p193
        %p270 = pneg %p190
        %s271 = smul.u32 8, %s20
        %p272 = scmp.lt.s32.totalorder %s271, 15
        %s273 = scalar_select %p272, %s271, 15
        %s274 = smul.addr %s273, 3
        %s275 = smul.addr %s274, 8
        %s276 = scalar_lea.vmem %s0, %s275
        %s277 = smul.u32 8, %s20
        %s278 = smul.u32 8, %s20
        %p279 = scmp.lt.s32.totalorder %s278, 15
        %s280 = scalar_select %p279, %s278, 15
        %s281 = smul.addr %s280, 8
        %s282 = scalar_lea.vmem %s6, %s281
        %s283 = smul.u32 8, %s20
        %p284 = scmp.eq.s32.totalorder %s20, 0
        // Predicated region
        $region45: #{rnnlm_forward.3} parent=43 // pred_check
          %p285 = pneg %p284
        $region46: #{rnnlm_forward.3} parent=43 // pred_check_branch
          %287 = sbr.rel (%p285) target = $region48
        $region47: #{rnnlm_forward.3} parent=43 // pred_region
          %v288 = vld [vmem:[%s1] sm:$0xff]
          %289 = vst [vmem:[#allocation2] sm:$0xff] %v288
        $region48: #{rnnlm_forward.3} parent=43 // pred_fallthru
          _
        %v290 = vld [vmem:[%s3] sm:$0x1]
        %v291 = vld [vmem:[#allocation2] sm:$0xff]
        %v292 = vld [vmem:[%s276] sm:$0xff]
        %v293 = vld [vmem:[%s276 + $0x8] sm:$0xff]
        %v294 = vld [vmem:[%s276 + $0x10] sm:$0xff]
        %v295 = vld [vmem:[%s2] sm:$0xff]
        %v296 = vld [vmem:[%s2 + $0x8] sm:$0xff]
        %v297 = vld [vmem:[%s2 + $0x10] sm:$0xff]
        %v298 = vld [vmem:[%s2 + $0x18] sm:$0xff]
        %v299 = vld [vmem:[%s2 + $0x20] sm:$0xff]
        %v300 = vld [vmem:[%s2 + $0x28] sm:$0xff]
        %v301 = vld [vmem:[%s2 + $0x30] sm:$0xff]
        %v302 = vld [vmem:[%s2 + $0x38] sm:$0xff]
        %v303 = vld [vmem:[%s2 + $0x40] sm:$0xff]
        %v304 = vld [vmem:[%s2 + $0x48] sm:$0xff]
        %v305 = vld [vmem:[%s2 + $0x50] sm:$0xff]
        %v306 = vld [vmem:[%s2 + $0x58] sm:$0xff]
        %v307 = vld [vmem:[%s2 + $0x60] sm:$0xff]
        %v308 = vld [vmem:[%s2 + $0x68] sm:$0xff]
        %v309 = vld [vmem:[%s2 + $0x70] sm:$0xff]
        %v310 = vld [vmem:[%s2 + $0x78] sm:$0xff]
        %v311 = vld [vmem:[%s2 + $0x80] sm:$0xff]
        %v312 = vld [vmem:[%s2 + $0x88] sm:$0xff]
        %v313 = vld [vmem:[%s2 + $0x90] sm:$0xff]
        %v314 = vld [vmem:[%s2 + $0x98] sm:$0xff]
        %v315 = vld [vmem:[%s2 + $0xa0] sm:$0xff]
        %v316 = vld [vmem:[%s2 + $0xa8] sm:$0xff]
        %v317 = vld [vmem:[%s2 + $0xb0] sm:$0xff]
        %v318 = vld [vmem:[%s2 + $0xb8] sm:$0xff]
        %v319 = vld [vmem:[%s2 + $0xc0] sm:$0xff]
        %v320 = vld [vmem:[%s2 + $0xc8] sm:$0xff]
        %v321 = vld [vmem:[%s2 + $0xd0] sm:$0xff]
        %v322 = vld [vmem:[%s2 + $0xd8] sm:$0xff]
        %v323 = vld [vmem:[%s2 + $0xe0] sm:$0xff]
        %v324 = vld [vmem:[%s2 + $0xe8] sm:$0xff]
        %v325 = vld [vmem:[%s2 + $0xf0] sm:$0xff]
        %v326 = vld [vmem:[%s2 + $0xf8] sm:$0xff]
        %v327 = vld [vmem:[%s2 + $0x100] sm:$0xff]
        %v328 = vld [vmem:[%s2 + $0x108] sm:$0xff]
        %v329 = vld [vmem:[%s2 + $0x110] sm:$0xff]
        %v330 = vld [vmem:[%s2 + $0x118] sm:$0xff]
        %v331 = vld [vmem:[%s2 + $0x120] sm:$0xff]
        %v332 = vld [vmem:[%s2 + $0x128] sm:$0xff]
        %v333 = vld [vmem:[%s2 + $0x130] sm:$0xff]
        %v334 = vld [vmem:[%s2 + $0x138] sm:$0xff]
        %v335 = vld [vmem:[%s2 + $0x140] sm:$0xff]
        %v336 = vld [vmem:[%s2 + $0x148] sm:$0xff]
        %v337 = vld [vmem:[%s2 + $0x150] sm:$0xff]
        %v338 = vld [vmem:[%s2 + $0x158] sm:$0xff]
        %v339 = vld [vmem:[%s2 + $0x160] sm:$0xff]
        %v340 = vld [vmem:[%s2 + $0x168] sm:$0xff]
        %v341 = vld [vmem:[%s2 + $0x170] sm:$0xff]
        %v342 = vld [vmem:[%s2 + $0x178] sm:$0xff]
        %343 = vmatprep.subr.mxu0 %v341
        %344 = vmatpush1.msra.mxu0 %v340
        %345 = vmatprep.subr.mxu0 %v338
        %346 = vmatpush1.msra.mxu0 %v337
        %347 = vmatprep.subr.mxu0 %v335
        %348 = vmatpush1.msra.mxu0 %v334
        %349 = vmatprep.subr.mxu0 %v332
        %350 = vmatpush1.msra.mxu0 %v331
        %351 = vmatprep.subr.mxu0 %v329
        %352 = vmatpush1.msra.mxu0 %v328
        %353 = vmatprep.subr.mxu0 %v326
        %354 = vmatpush1.msra.mxu0 %v325
        %355 = vmatprep.subr.mxu0 %v323
        %356 = vmatpush1.msra.mxu0 %v322
        %357 = vmatprep.subr.mxu0 %v320
        %358 = vmatpush1.msra.mxu0 %v319
        %359 = vmatprep.subr.mxu0 %v317
        %360 = vmatpush1.msra.mxu0 %v316
        %361 = vmatprep.subr.mxu0 %v314
        %362 = vmatpush1.msra.mxu0 %v313
        %363 = vmatprep.subr.mxu0 %v311
        %364 = vmatpush1.msra.mxu0 %v310
        %365 = vmatprep.subr.mxu0 %v308
        %366 = vmatpush1.msra.mxu0 %v307
        %367 = vmatprep.subr.mxu0 %v305
        %368 = vmatpush1.msra.mxu0 %v304
        %369 = vmatprep.subr.mxu0 %v302
        %370 = vmatpush1.msra.mxu0 %v301
        %371 = vmatprep.subr.mxu0 %v299
        %372 = vmatpush1.msra.mxu0 %v298
        %373 = vmatprep.subr.mxu0 %v296
        %374 = vmatpush1.msra.mxu0 %v295
        %375 = vmatprep.subr.mxu0 0.0
        %376 = vmatpush2.msra.mxu0 0.0
        %377 = vmatprep.subr.mxu0 0.0
        %378 = vmatpush2.msra.mxu0 0.0
        %379 = vmatprep.subr.mxu0 0.0
        %380 = vmatpush2.msra.mxu0 0.0
        %381 = vmatprep.subr.mxu0 0.0
        %382 = vmatpush2.msra.mxu0 0.0
        %383 = vmatprep.subr.mxu0 0.0
        %384 = vmatpush2.msra.mxu0 0.0
        %385 = vmatprep.subr.mxu0 0.0
        %386 = vmatpush2.msra.mxu0 0.0
        %387 = vmatprep.subr.mxu0 0.0
        %388 = vmatpush2.msra.mxu0 0.0
        %389 = vmatprep.subr.mxu0 0.0
        %390 = vmatpush2.msra.mxu0 0.0
        %391 = vmatprep.subr.mxu0 0.0
        %392 = vmatpush2.msra.mxu0 0.0
        %393 = vmatprep.subr.mxu0 0.0
        %394 = vmatpush2.msra.mxu0 0.0
        %395 = vmatprep.subr.mxu0 0.0
        %396 = vmatpush2.msra.mxu0 0.0
        %397 = vmatprep.subr.mxu0 0.0
        %398 = vmatpush2.msra.mxu0 0.0
        %399 = vmatprep.subr.mxu0 0.0
        %400 = vmatpush2.msra.mxu0 0.0
        %401 = vmatprep.subr.mxu0 0.0
        %402 = vmatpush2.msra.mxu0 0.0
        %403 = vmatprep.subr.mxu0 0.0
        %404 = vmatpush2.msra.mxu0 0.0
        %405 = vmatprep.subr.mxu0 0.0
        %406 = vmatpush2.msra.mxu0 0.0
        %407 = vmatprep.mubr.f32.mxu0 0.0
        %408 = vmatmul.mubr.f32.gmra.mxu0 %v291
        %v409 = vpop.f32.mrf.mxu0
        %v410 = vadd.f32 0.0, %v409
        %v411 = vpop.f32.mrf.mxu0
        %v412 = vadd.f32 0.0, %v411
        %413 = vdwg.mxu0
        %414 = vmatprep.subr.mxu0 0.0
        %415 = vmatpush1.msra.mxu0 %v342
        %416 = vmatprep.subr.mxu0 0.0
        %417 = vmatpush1.msra.mxu0 %v339
        %418 = vmatprep.subr.mxu0 0.0
        %419 = vmatpush1.msra.mxu0 %v336
        %420 = vmatprep.subr.mxu0 0.0
        %421 = vmatpush1.msra.mxu0 %v333
        %422 = vmatprep.subr.mxu0 0.0
        %423 = vmatpush1.msra.mxu0 %v330
        %424 = vmatprep.subr.mxu0 0.0
        %425 = vmatpush1.msra.mxu0 %v327
        %426 = vmatprep.subr.mxu0 0.0
        %427 = vmatpush1.msra.mxu0 %v324
        %428 = vmatprep.subr.mxu0 0.0
        %429 = vmatpush1.msra.mxu0 %v321
        %430 = vmatprep.subr.mxu0 0.0
        %431 = vmatpush1.msra.mxu0 %v318
        %432 = vmatprep.subr.mxu0 0.0
        %433 = vmatpush1.msra.mxu0 %v315
        %434 = vmatprep.subr.mxu0 0.0
        %435 = vmatpush1.msra.mxu0 %v312
        %436 = vmatprep.subr.mxu0 0.0
        %437 = vmatpush1.msra.mxu0 %v309
        %438 = vmatprep.subr.mxu0 0.0
        %439 = vmatpush1.msra.mxu0 %v306
        %440 = vmatprep.subr.mxu0 0.0
        %441 = vmatpush1.msra.mxu0 %v303
        %442 = vmatprep.subr.mxu0 0.0
        %443 = vmatpush1.msra.mxu0 %v300
        %444 = vmatprep.subr.mxu0 0.0
        %445 = vmatpush1.msra.mxu0 %v297
        %446 = vmatprep.subr.mxu0 0.0
        %447 = vmatpush2.msra.mxu0 0.0
        %448 = vmatprep.subr.mxu0 0.0
        %449 = vmatpush2.msra.mxu0 0.0
        %450 = vmatprep.subr.mxu0 0.0
        %451 = vmatpush2.msra.mxu0 0.0
        %452 = vmatprep.subr.mxu0 0.0
        %453 = vmatpush2.msra.mxu0 0.0
        %454 = vmatprep.subr.mxu0 0.0
        %455 = vmatpush2.msra.mxu0 0.0
        %456 = vmatprep.subr.mxu0 0.0
        %457 = vmatpush2.msra.mxu0 0.0
        %458 = vmatprep.subr.mxu0 0.0
        %459 = vmatpush2.msra.mxu0 0.0
        %460 = vmatprep.subr.mxu0 0.0
        %461 = vmatpush2.msra.mxu0 0.0
        %462 = vmatprep.subr.mxu0 0.0
        %463 = vmatpush2.msra.mxu0 0.0
        %464 = vmatprep.subr.mxu0 0.0
        %465 = vmatpush2.msra.mxu0 0.0
        %466 = vmatprep.subr.mxu0 0.0
        %467 = vmatpush2.msra.mxu0 0.0
        %468 = vmatprep.subr.mxu0 0.0
        %469 = vmatpush2.msra.mxu0 0.0
        %470 = vmatprep.subr.mxu0 0.0
        %471 = vmatpush2.msra.mxu0 0.0
        %472 = vmatprep.subr.mxu0 0.0
        %473 = vmatpush2.msra.mxu0 0.0
        %474 = vmatprep.subr.mxu0 0.0
        %475 = vmatpush2.msra.mxu0 0.0
        %476 = vmatprep.subr.mxu0 0.0
        %477 = vmatpush2.msra.mxu0 0.0
        %478 = vmatprep.mubr.f32.mxu0 0.0
        %479 = vmatmul.mubr.f32.gmra.mxu0 %v291
        %v480 = vpop.f32.mrf.mxu0
        %v481 = vadd.f32 0.0, %v480
        %v482 = vpop.f32.mrf.mxu0
        %483 = vdwg.mxu0
        %v484 = vadd.f32 %v292, %v410
        %v485 = vxor.u32 %v484, 2147483648
        %v486 = vmul.f32 %v485, 1.442695
        %v487 = vpow.pop %v486
        %v488 = vadd.f32 %v487, 1.0
        %v489 = vrcp.pop %v488
        %v490 = vmul.f32 1.0, %v489
        %v491 = vadd.f32 %v293, %v412
        %v492 = vxor.u32 %v491, 2147483648
        %v493 = vmul.f32 %v492, 1.442695
        %v494 = vpow.pop %v493
        %v495 = vadd.f32 %v494, 1.0
        %v496 = vrcp.pop %v495
        %v497 = vmul.f32 1.0, %v496
        %v499 = vlaneseq
        %v500 = vshrl.u32 %v499, 7
        %v501 = vsub.s32 0, %v500
        %v502 = vrot.slane %v290, %v501
        %v504 = vadd.f32 %v481, %v502
        %v505 = vmul.f32 %v490, %v504
        %v506 = vadd.f32 %v294, %v505
        %v507 = vtanh.pop %v506
        %v508 = vsub.f32 1.0, %v497
        %v509 = vmul.f32 %v508, %v507
        %v510 = vmul.f32 %v497, %v291
        %v511 = vadd.f32 %v509, %v510
        %512 = vst [vmem:[#allocation3] sm:$0xff] %v511
        %s513 = scalar_lea.vmem %s276, 24
        %v514 = vld [vmem:[%s513] sm:$0xff]
        %v515 = vld [vmem:[%s513 + $0x8] sm:$0xff]
        %v516 = vld [vmem:[%s513 + $0x10] sm:$0xff]
        %v517 = vld [vmem:[%s2] sm:$0xff]
        %v518 = vld [vmem:[%s2 + $0x8] sm:$0xff]
        %v519 = vld [vmem:[%s2 + $0x10] sm:$0xff]
        %v520 = vld [vmem:[%s2 + $0x18] sm:$0xff]
        %v521 = vld [vmem:[%s2 + $0x20] sm:$0xff]
        %v522 = vld [vmem:[%s2 + $0x28] sm:$0xff]
        %v523 = vld [vmem:[%s2 + $0x30] sm:$0xff]
        %v524 = vld [vmem:[%s2 + $0x38] sm:$0xff]
        %v525 = vld [vmem:[%s2 + $0x40] sm:$0xff]
        %v526 = vld [vmem:[%s2 + $0x48] sm:$0xff]
        %v527 = vld [vmem:[%s2 + $0x50] sm:$0xff]
        %v528 = vld [vmem:[%s2 + $0x58] sm:$0xff]
        %v529 = vld [vmem:[%s2 + $0x60] sm:$0xff]
        %v530 = vld [vmem:[%s2 + $0x68] sm:$0xff]
        %v531 = vld [vmem:[%s2 + $0x70] sm:$0xff]
        %v532 = vld [vmem:[%s2 + $0x78] sm:$0xff]
        %v533 = vld [vmem:[%s2 + $0x80] sm:$0xff]
        %v534 = vld [vmem:[%s2 + $0x88] sm:$0xff]
        %v535 = vld [vmem:[%s2 + $0x90] sm:$0xff]
        %v536 = vld [vmem:[%s2 + $0x98] sm:$0xff]
        %v537 = vld [vmem:[%s2 + $0xa0] sm:$0xff]
        %v538 = vld [vmem:[%s2 + $0xa8] sm:$0xff]
        %v539 = vld [vmem:[%s2 + $0xb0] sm:$0xff]
        %v540 = vld [vmem:[%s2 + $0xb8] sm:$0xff]
        %v541 = vld [vmem:[%s2 + $0xc0] sm:$0xff]
        %v542 = vld [vmem:[%s2 + $0xc8] sm:$0xff]
        %v543 = vld [vmem:[%s2 + $0xd0] sm:$0xff]
        %v544 = vld [vmem:[%s2 + $0xd8] sm:$0xff]
        %v545 = vld [vmem:[%s2 + $0xe0] sm:$0xff]
        %v546 = vld [vmem:[%s2 + $0xe8] sm:$0xff]
        %v547 = vld [vmem:[%s2 + $0xf0] sm:$0xff]
        %v548 = vld [vmem:[%s2 + $0xf8] sm:$0xff]
        %v549 = vld [vmem:[%s2 + $0x100] sm:$0xff]
        %v550 = vld [vmem:[%s2 + $0x108] sm:$0xff]
        %v551 = vld [vmem:[%s2 + $0x110] sm:$0xff]
        %v552 = vld [vmem:[%s2 + $0x118] sm:$0xff]
        %v553 = vld [vmem:[%s2 + $0x120] sm:$0xff]
        %v554 = vld [vmem:[%s2 + $0x128] sm:$0xff]
        %v555 = vld [vmem:[%s2 + $0x130] sm:$0xff]
        %v556 = vld [vmem:[%s2 + $0x138] sm:$0xff]
        %v557 = vld [vmem:[%s2 + $0x140] sm:$0xff]
        %v558 = vld [vmem:[%s2 + $0x148] sm:$0xff]
        %v559 = vld [vmem:[%s2 + $0x150] sm:$0xff]
        %v560 = vld [vmem:[%s2 + $0x158] sm:$0xff]
        %v561 = vld [vmem:[%s2 + $0x160] sm:$0xff]
        %v562 = vld [vmem:[%s2 + $0x168] sm:$0xff]
        %v563 = vld [vmem:[%s2 + $0x170] sm:$0xff]
        %v564 = vld [vmem:[%s2 + $0x178] sm:$0xff]
        %565 = vmatprep.subr.mxu0 %v563
        %566 = vmatpush1.msra.mxu0 %v562
        %567 = vmatprep.subr.mxu0 %v560
        %568 = vmatpush1.msra.mxu0 %v559
        %569 = vmatprep.subr.mxu0 %v557
        %570 = vmatpush1.msra.mxu0 %v556
        %571 = vmatprep.subr.mxu0 %v554
        %572 = vmatpush1.msra.mxu0 %v553
        %573 = vmatprep.subr.mxu0 %v551
        %574 = vmatpush1.msra.mxu0 %v550
        %575 = vmatprep.subr.mxu0 %v548
        %576 = vmatpush1.msra.mxu0 %v547
        %577 = vmatprep.subr.mxu0 %v545
        %578 = vmatpush1.msra.mxu0 %v544
        %579 = vmatprep.subr.mxu0 %v542
        %580 = vmatpush1.msra.mxu0 %v541
        %581 = vmatprep.subr.mxu0 %v539
        %582 = vmatpush1.msra.mxu0 %v538
        %583 = vmatprep.subr.mxu0 %v536
        %584 = vmatpush1.msra.mxu0 %v535
        %585 = vmatprep.subr.mxu0 %v533
        %586 = vmatpush1.msra.mxu0 %v532
        %587 = vmatprep.subr.mxu0 %v530
        %588 = vmatpush1.msra.mxu0 %v529
        %589 = vmatprep.subr.mxu0 %v527
        %590 = vmatpush1.msra.mxu0 %v526
        %591 = vmatprep.subr.mxu0 %v524
        %592 = vmatpush1.msra.mxu0 %v523
        %593 = vmatprep.subr.mxu0 %v521
        %594 = vmatpush1.msra.mxu0 %v520
        %595 = vmatprep.subr.mxu0 %v518
        %596 = vmatpush1.msra.mxu0 %v517
        %597 = vmatprep.subr.mxu0 0.0
        %598 = vmatpush2.msra.mxu0 0.0
        %599 = vmatprep.subr.mxu0 0.0
        %600 = vmatpush2.msra.mxu0 0.0
        %601 = vmatprep.subr.mxu0 0.0
        %602 = vmatpush2.msra.mxu0 0.0
        %603 = vmatprep.subr.mxu0 0.0
        %604 = vmatpush2.msra.mxu0 0.0
        %605 = vmatprep.subr.mxu0 0.0
        %606 = vmatpush2.msra.mxu0 0.0
        %607 = vmatprep.subr.mxu0 0.0
        %608 = vmatpush2.msra.mxu0 0.0
        %609 = vmatprep.subr.mxu0 0.0
        %610 = vmatpush2.msra.mxu0 0.0
        %611 = vmatprep.subr.mxu0 0.0
        %612 = vmatpush2.msra.mxu0 0.0
        %613 = vmatprep.subr.mxu0 0.0
        %614 = vmatpush2.msra.mxu0 0.0
        %615 = vmatprep.subr.mxu0 0.0
        %616 = vmatpush2.msra.mxu0 0.0
        %617 = vmatprep.subr.mxu0 0.0
        %618 = vmatpush2.msra.mxu0 0.0
        %619 = vmatprep.subr.mxu0 0.0
        %620 = vmatpush2.msra.mxu0 0.0
        %621 = vmatprep.subr.mxu0 0.0
        %622 = vmatpush2.msra.mxu0 0.0
        %623 = vmatprep.subr.mxu0 0.0
        %624 = vmatpush2.msra.mxu0 0.0
        %625 = vmatprep.subr.mxu0 0.0
        %626 = vmatpush2.msra.mxu0 0.0
        %627 = vmatprep.subr.mxu0 0.0
        %628 = vmatpush2.msra.mxu0 0.0
        %629 = vmatprep.mubr.f32.mxu0 0.0
        %630 = vmatmul.mubr.f32.gmra.mxu0 %v511
        %v631 = vpop.f32.mrf.mxu0
        %v632 = vadd.f32 0.0, %v631
        %v633 = vpop.f32.mrf.mxu0
        %v634 = vadd.f32 0.0, %v633
        %635 = vdwg.mxu0
        %636 = vmatprep.subr.mxu0 0.0
        %637 = vmatpush1.msra.mxu0 %v564
        %638 = vmatprep.subr.mxu0 0.0
        %639 = vmatpush1.msra.mxu0 %v561
        %640 = vmatprep.subr.mxu0 0.0
        %641 = vmatpush1.msra.mxu0 %v558
        %642 = vmatprep.subr.mxu0 0.0
        %643 = vmatpush1.msra.mxu0 %v555
        %644 = vmatprep.subr.mxu0 0.0
        %645 = vmatpush1.msra.mxu0 %v552
        %646 = vmatprep.subr.mxu0 0.0
        %647 = vmatpush1.msra.mxu0 %v549
        %648 = vmatprep.subr.mxu0 0.0
        %649 = vmatpush1.msra.mxu0 %v546
        %650 = vmatprep.subr.mxu0 0.0
        %651 = vmatpush1.msra.mxu0 %v543
        %652 = vmatprep.subr.mxu0 0.0
        %653 = vmatpush1.msra.mxu0 %v540
        %654 = vmatprep.subr.mxu0 0.0
        %655 = vmatpush1.msra.mxu0 %v537
        %656 = vmatprep.subr.mxu0 0.0
        %657 = vmatpush1.msra.mxu0 %v534
        %658 = vmatprep.subr.mxu0 0.0
        %659 = vmatpush1.msra.mxu0 %v531
        %660 = vmatprep.subr.mxu0 0.0
        %661 = vmatpush1.msra.mxu0 %v528
        %662 = vmatprep.subr.mxu0 0.0
        %663 = vmatpush1.msra.mxu0 %v525
        %664 = vmatprep.subr.mxu0 0.0
        %665 = vmatpush1.msra.mxu0 %v522
        %666 = vmatprep.subr.mxu0 0.0
        %667 = vmatpush1.msra.mxu0 %v519
        %668 = vmatprep.subr.mxu0 0.0
        %669 = vmatpush2.msra.mxu0 0.0
        %670 = vmatprep.subr.mxu0 0.0
        %671 = vmatpush2.msra.mxu0 0.0
        %672 = vmatprep.subr.mxu0 0.0
        %673 = vmatpush2.msra.mxu0 0.0
        %674 = vmatprep.subr.mxu0 0.0
        %675 = vmatpush2.msra.mxu0 0.0
        %676 = vmatprep.subr.mxu0 0.0
        %677 = vmatpush2.msra.mxu0 0.0
        %678 = vmatprep.subr.mxu0 0.0
        %679 = vmatpush2.msra.mxu0 0.0
        %680 = vmatprep.subr.mxu0 0.0
        %681 = vmatpush2.msra.mxu0 0.0
        %682 = vmatprep.subr.mxu0 0.0
        %683 = vmatpush2.msra.mxu0 0.0
        %684 = vmatprep.subr.mxu0 0.0
        %685 = vmatpush2.msra.mxu0 0.0
        %686 = vmatprep.subr.mxu0 0.0
        %687 = vmatpush2.msra.mxu0 0.0
        %688 = vmatprep.subr.mxu0 0.0
        %689 = vmatpush2.msra.mxu0 0.0
        %690 = vmatprep.subr.mxu0 0.0
        %691 = vmatpush2.msra.mxu0 0.0
        %692 = vmatprep.subr.mxu0 0.0
        %693 = vmatpush2.msra.mxu0 0.0
        %694 = vmatprep.subr.mxu0 0.0
        %695 = vmatpush2.msra.mxu0 0.0
        %696 = vmatprep.subr.mxu0 0.0
        %697 = vmatpush2.msra.mxu0 0.0
        %698 = vmatprep.subr.mxu0 0.0
        %699 = vmatpush2.msra.mxu0 0.0
        %700 = vmatprep.mubr.f32.mxu0 0.0
        %701 = vmatmul.mubr.f32.gmra.mxu0 %v511
        %v702 = vpop.f32.mrf.mxu0
        %v703 = vadd.f32 0.0, %v702
        %v704 = vpop.f32.mrf.mxu0
        %705 = vdwg.mxu0
        %v706 = vadd.f32 %v514, %v632
        %v707 = vxor.u32 %v706, 2147483648
        %v708 = vmul.f32 %v707, 1.442695
        %v709 = vpow.pop %v708
        %v710 = vadd.f32 %v709, 1.0
        %v711 = vrcp.pop %v710
        %v712 = vmul.f32 1.0, %v711
        %v713 = vadd.f32 %v515, %v634
        %v714 = vxor.u32 %v713, 2147483648
        %v715 = vmul.f32 %v714, 1.442695
        %v716 = vpow.pop %v715
        %v717 = vadd.f32 %v716, 1.0
        %v718 = vrcp.pop %v717
        %v719 = vmul.f32 1.0, %v718
        %v720 = vadd.f32 %v703, %v502
        %v721 = vmul.f32 %v712, %v720
        %v722 = vadd.f32 %v516, %v721
        %v723 = vtanh.pop %v722
        %v724 = vsub.f32 1.0, %v719
        %v725 = vmul.f32 %v724, %v723
        %v726 = vmul.f32 %v719, %v511
        %v727 = vadd.f32 %v725, %v726
        %s728 = scalar_lea.vmem [#allocation3], 8
        %729 = vst [vmem:[%s728] sm:$0xff] %v727
        %s730 = scalar_lea.vmem %s276, 48
        %v731 = vld [vmem:[%s730] sm:$0xff]
        %v732 = vld [vmem:[%s730 + $0x8] sm:$0xff]
        %v733 = vld [vmem:[%s730 + $0x10] sm:$0xff]
        %v734 = vld [vmem:[%s2] sm:$0xff]
        %v735 = vld [vmem:[%s2 + $0x8] sm:$0xff]
        %v736 = vld [vmem:[%s2 + $0x10] sm:$0xff]
        %v737 = vld [vmem:[%s2 + $0x18] sm:$0xff]
        %v738 = vld [vmem:[%s2 + $0x20] sm:$0xff]
        %v739 = vld [vmem:[%s2 + $0x28] sm:$0xff]
        %v740 = vld [vmem:[%s2 + $0x30] sm:$0xff]
        %v741 = vld [vmem:[%s2 + $0x38] sm:$0xff]
        %v742 = vld [vmem:[%s2 + $0x40] sm:$0xff]
        %v743 = vld [vmem:[%s2 + $0x48] sm:$0xff]
        %v744 = vld [vmem:[%s2 + $0x50] sm:$0xff]
        %v745 = vld [vmem:[%s2 + $0x58] sm:$0xff]
        %v746 = vld [vmem:[%s2 + $0x60] sm:$0xff]
        %v747 = vld [vmem:[%s2 + $0x68] sm:$0xff]
        %v748 = vld [vmem:[%s2 + $0x70] sm:$0xff]
        %v749 = vld [vmem:[%s2 + $0x78] sm:$0xff]
        %v750 = vld [vmem:[%s2 + $0x80] sm:$0xff]
        %v751 = vld [vmem:[%s2 + $0x88] sm:$0xff]
        %v752 = vld [vmem:[%s2 + $0x90] sm:$0xff]
        %v753 = vld [vmem:[%s2 + $0x98] sm:$0xff]
        %v754 = vld [vmem:[%s2 + $0xa0] sm:$0xff]
        %v755 = vld [vmem:[%s2 + $0xa8] sm:$0xff]
        %v756 = vld [vmem:[%s2 + $0xb0] sm:$0xff]
        %v757 = vld [vmem:[%s2 + $0xb8] sm:$0xff]
        %v758 = vld [vmem:[%s2 + $0xc0] sm:$0xff]
        %v759 = vld [vmem:[%s2 + $0xc8] sm:$0xff]
        %v760 = vld [vmem:[%s2 + $0xd0] sm:$0xff]
        %v761 = vld [vmem:[%s2 + $0xd8] sm:$0xff]
        %v762 = vld [vmem:[%s2 + $0xe0] sm:$0xff]
        %v763 = vld [vmem:[%s2 + $0xe8] sm:$0xff]
        %v764 = vld [vmem:[%s2 + $0xf0] sm:$0xff]
        %v765 = vld [vmem:[%s2 + $0xf8] sm:$0xff]
        %v766 = vld [vmem:[%s2 + $0x100] sm:$0xff]
        %v767 = vld [vmem:[%s2 + $0x108] sm:$0xff]
        %v768 = vld [vmem:[%s2 + $0x110] sm:$0xff]
        %v769 = vld [vmem:[%s2 + $0x118] sm:$0xff]
        %v770 = vld [vmem:[%s2 + $0x120] sm:$0xff]
        %v771 = vld [vmem:[%s2 + $0x128] sm:$0xff]
        %v772 = vld [vmem:[%s2 + $0x130] sm:$0xff]
        %v773 = vld [vmem:[%s2 + $0x138] sm:$0xff]
        %v774 = vld [vmem:[%s2 + $0x140] sm:$0xff]
        %v775 = vld [vmem:[%s2 + $0x148] sm:$0xff]
        %v776 = vld [vmem:[%s2 + $0x150] sm:$0xff]
        %v777 = vld [vmem:[%s2 + $0x158] sm:$0xff]
        %v778 = vld [vmem:[%s2 + $0x160] sm:$0xff]
        %v779 = vld [vmem:[%s2 + $0x168] sm:$0xff]
        %v780 = vld [vmem:[%s2 + $0x170] sm:$0xff]
        %v781 = vld [vmem:[%s2 + $0x178] sm:$0xff]
        %782 = vmatprep.subr.mxu0 %v780
        %783 = vmatpush1.msra.mxu0 %v779
        %784 = vmatprep.subr.mxu0 %v777
        %785 = vmatpush1.msra.mxu0 %v776
        %786 = vmatprep.subr.mxu0 %v774
        %787 = vmatpush1.msra.mxu0 %v773
        %788 = vmatprep.subr.mxu0 %v771
        %789 = vmatpush1.msra.mxu0 %v770
        %790 = vmatprep.subr.mxu0 %v768
        %791 = vmatpush1.msra.mxu0 %v767
        %792 = vmatprep.subr.mxu0 %v765
        %793 = vmatpush1.msra.mxu0 %v764
        %794 = vmatprep.subr.mxu0 %v762
        %795 = vmatpush1.msra.mxu0 %v761
        %796 = vmatprep.subr.mxu0 %v759
        %797 = vmatpush1.msra.mxu0 %v758
        %798 = vmatprep.subr.mxu0 %v756
        %799 = vmatpush1.msra.mxu0 %v755
        %800 = vmatprep.subr.mxu0 %v753
        %801 = vmatpush1.msra.mxu0 %v752
        %802 = vmatprep.subr.mxu0 %v750
        %803 = vmatpush1.msra.mxu0 %v749
        %804 = vmatprep.subr.mxu0 %v747
        %805 = vmatpush1.msra.mxu0 %v746
        %806 = vmatprep.subr.mxu0 %v744
        %807 = vmatpush1.msra.mxu0 %v743
        %808 = vmatprep.subr.mxu0 %v741
        %809 = vmatpush1.msra.mxu0 %v740
        %810 = vmatprep.subr.mxu0 %v738
        %811 = vmatpush1.msra.mxu0 %v737
        %812 = vmatprep.subr.mxu0 %v735
        %813 = vmatpush1.msra.mxu0 %v734
        %814 = vmatprep.subr.mxu0 0.0
        %815 = vmatpush2.msra.mxu0 0.0
        %816 = vmatprep.subr.mxu0 0.0
        %817 = vmatpush2.msra.mxu0 0.0
        %818 = vmatprep.subr.mxu0 0.0
        %819 = vmatpush2.msra.mxu0 0.0
        %820 = vmatprep.subr.mxu0 0.0
        %821 = vmatpush2.msra.mxu0 0.0
        %822 = vmatprep.subr.mxu0 0.0
        %823 = vmatpush2.msra.mxu0 0.0
        %824 = vmatprep.subr.mxu0 0.0
        %825 = vmatpush2.msra.mxu0 0.0
        %826 = vmatprep.subr.mxu0 0.0
        %827 = vmatpush2.msra.mxu0 0.0
        %828 = vmatprep.subr.mxu0 0.0
        %829 = vmatpush2.msra.mxu0 0.0
        %830 = vmatprep.subr.mxu0 0.0
        %831 = vmatpush2.msra.mxu0 0.0
        %832 = vmatprep.subr.mxu0 0.0
        %833 = vmatpush2.msra.mxu0 0.0
        %834 = vmatprep.subr.mxu0 0.0
        %835 = vmatpush2.msra.mxu0 0.0
        %836 = vmatprep.subr.mxu0 0.0
        %837 = vmatpush2.msra.mxu0 0.0
        %838 = vmatprep.subr.mxu0 0.0
        %839 = vmatpush2.msra.mxu0 0.0
        %840 = vmatprep.subr.mxu0 0.0
        %841 = vmatpush2.msra.mxu0 0.0
        %842 = vmatprep.subr.mxu0 0.0
        %843 = vmatpush2.msra.mxu0 0.0
        %844 = vmatprep.subr.mxu0 0.0
        %845 = vmatpush2.msra.mxu0 0.0
        %846 = vmatprep.mubr.f32.mxu0 0.0
        %847 = vmatmul.mubr.f32.gmra.mxu0 %v727
        %v848 = vpop.f32.mrf.mxu0
        %v849 = vadd.f32 0.0, %v848
        %v850 = vpop.f32.mrf.mxu0
        %v851 = vadd.f32 0.0, %v850
        %852 = vdwg.mxu0
        %853 = vmatprep.subr.mxu0 0.0
        %854 = vmatpush1.msra.mxu0 %v781
        %855 = vmatprep.subr.mxu0 0.0
        %856 = vmatpush1.msra.mxu0 %v778
        %857 = vmatprep.subr.mxu0 0.0
        %858 = vmatpush1.msra.mxu0 %v775
        %859 = vmatprep.subr.mxu0 0.0
        %860 = vmatpush1.msra.mxu0 %v772
        %861 = vmatprep.subr.mxu0 0.0
        %862 = vmatpush1.msra.mxu0 %v769
        %863 = vmatprep.subr.mxu0 0.0
        %864 = vmatpush1.msra.mxu0 %v766
        %865 = vmatprep.subr.mxu0 0.0
        %866 = vmatpush1.msra.mxu0 %v763
        %867 = vmatprep.subr.mxu0 0.0
        %868 = vmatpush1.msra.mxu0 %v760
        %869 = vmatprep.subr.mxu0 0.0
        %870 = vmatpush1.msra.mxu0 %v757
        %871 = vmatprep.subr.mxu0 0.0
        %872 = vmatpush1.msra.mxu0 %v754
        %873 = vmatprep.subr.mxu0 0.0
        %874 = vmatpush1.msra.mxu0 %v751
        %875 = vmatprep.subr.mxu0 0.0
        %876 = vmatpush1.msra.mxu0 %v748
        %877 = vmatprep.subr.mxu0 0.0
        %878 = vmatpush1.msra.mxu0 %v745
        %879 = vmatprep.subr.mxu0 0.0
        %880 = vmatpush1.msra.mxu0 %v742
        %881 = vmatprep.subr.mxu0 0.0
        %882 = vmatpush1.msra.mxu0 %v739
        %883 = vmatprep.subr.mxu0 0.0
        %884 = vmatpush1.msra.mxu0 %v736
        %885 = vmatprep.subr.mxu0 0.0
        %886 = vmatpush2.msra.mxu0 0.0
        %887 = vmatprep.subr.mxu0 0.0
        %888 = vmatpush2.msra.mxu0 0.0
        %889 = vmatprep.subr.mxu0 0.0
        %890 = vmatpush2.msra.mxu0 0.0
        %891 = vmatprep.subr.mxu0 0.0
        %892 = vmatpush2.msra.mxu0 0.0
        %893 = vmatprep.subr.mxu0 0.0
        %894 = vmatpush2.msra.mxu0 0.0
        %895 = vmatprep.subr.mxu0 0.0
        %896 = vmatpush2.msra.mxu0 0.0
        %897 = vmatprep.subr.mxu0 0.0
        %898 = vmatpush2.msra.mxu0 0.0
        %899 = vmatprep.subr.mxu0 0.0
        %900 = vmatpush2.msra.mxu0 0.0
        %901 = vmatprep.subr.mxu0 0.0
        %902 = vmatpush2.msra.mxu0 0.0
        %903 = vmatprep.subr.mxu0 0.0
        %904 = vmatpush2.msra.mxu0 0.0
        %905 = vmatprep.subr.mxu0 0.0
        %906 = vmatpush2.msra.mxu0 0.0
        %907 = vmatprep.subr.mxu0 0.0
        %908 = vmatpush2.msra.mxu0 0.0
        %909 = vmatprep.subr.mxu0 0.0
        %910 = vmatpush2.msra.mxu0 0.0
        %911 = vmatprep.subr.mxu0 0.0
        %912 = vmatpush2.msra.mxu0 0.0
        %913 = vmatprep.subr.mxu0 0.0
        %914 = vmatpush2.msra.mxu0 0.0
        %915 = vmatprep.subr.mxu0 0.0
        %916 = vmatpush2.msra.mxu0 0.0
        %917 = vmatprep.mubr.f32.mxu0 0.0
        %918 = vmatmul.mubr.f32.gmra.mxu0 %v727
        %v919 = vpop.f32.mrf.mxu0
        %v920 = vadd.f32 0.0, %v919
        %v921 = vpop.f32.mrf.mxu0
        %922 = vdwg.mxu0
        %v923 = vadd.f32 %v731, %v849
        %v924 = vxor.u32 %v923, 2147483648
        %v925 = vmul.f32 %v924, 1.442695
        %v926 = vpow.pop %v925
        %v927 = vadd.f32 %v926, 1.0
        %v928 = vrcp.pop %v927
        %v929 = vmul.f32 1.0, %v928
        %v930 = vadd.f32 %v732, %v851
        %v931 = vxor.u32 %v930, 2147483648
        %v932 = vmul.f32 %v931, 1.442695
        %v933 = vpow.pop %v932
        %v934 = vadd.f32 %v933, 1.0
        %v935 = vrcp.pop %v934
        %v936 = vmul.f32 1.0, %v935
        %v937 = vadd.f32 %v920, %v502
        %v938 = vmul.f32 %v929, %v937
        %v939 = vadd.f32 %v733, %v938
        %v940 = vtanh.pop %v939
        %v941 = vsub.f32 1.0, %v936
        %v942 = vmul.f32 %v941, %v940
        %v943 = vmul.f32 %v936, %v727
        %v944 = vadd.f32 %v942, %v943
        %s945 = scalar_lea.vmem [#allocation3], 16
        %946 = vst [vmem:[%s945] sm:$0xff] %v944
        %s947 = scalar_lea.vmem %s276, 72
        %v948 = vld [vmem:[%s947] sm:$0xff]
        %v949 = vld [vmem:[%s947 + $0x8] sm:$0xff]
        %v950 = vld [vmem:[%s947 + $0x10] sm:$0xff]
        %v951 = vld [vmem:[%s2] sm:$0xff]
        %v952 = vld [vmem:[%s2 + $0x8] sm:$0xff]
        %v953 = vld [vmem:[%s2 + $0x10] sm:$0xff]
        %v954 = vld [vmem:[%s2 + $0x18] sm:$0xff]
        %v955 = vld [vmem:[%s2 + $0x20] sm:$0xff]
        %v956 = vld [vmem:[%s2 + $0x28] sm:$0xff]
        %v957 = vld [vmem:[%s2 + $0x30] sm:$0xff]
        %v958 = vld [vmem:[%s2 + $0x38] sm:$0xff]
        %v959 = vld [vmem:[%s2 + $0x40] sm:$0xff]
        %v960 = vld [vmem:[%s2 + $0x48] sm:$0xff]
        %v961 = vld [vmem:[%s2 + $0x50] sm:$0xff]
        %v962 = vld [vmem:[%s2 + $0x58] sm:$0xff]
        %v963 = vld [vmem:[%s2 + $0x60] sm:$0xff]
        %v964 = vld [vmem:[%s2 + $0x68] sm:$0xff]
        %v965 = vld [vmem:[%s2 + $0x70] sm:$0xff]
        %v966 = vld [vmem:[%s2 + $0x78] sm:$0xff]
        %v967 = vld [vmem:[%s2 + $0x80] sm:$0xff]
        %v968 = vld [vmem:[%s2 + $0x88] sm:$0xff]
        %v969 = vld [vmem:[%s2 + $0x90] sm:$0xff]
        %v970 = vld [vmem:[%s2 + $0x98] sm:$0xff]
        %v971 = vld [vmem:[%s2 + $0xa0] sm:$0xff]
        %v972 = vld [vmem:[%s2 + $0xa8] sm:$0xff]
        %v973 = vld [vmem:[%s2 + $0xb0] sm:$0xff]
        %v974 = vld [vmem:[%s2 + $0xb8] sm:$0xff]
        %v975 = vld [vmem:[%s2 + $0xc0] sm:$0xff]
        %v976 = vld [vmem:[%s2 + $0xc8] sm:$0xff]
        %v977 = vld [vmem:[%s2 + $0xd0] sm:$0xff]
        %v978 = vld [vmem:[%s2 + $0xd8] sm:$0xff]
        %v979 = vld [vmem:[%s2 + $0xe0] sm:$0xff]
        %v980 = vld [vmem:[%s2 + $0xe8] sm:$0xff]
        %v981 = vld [vmem:[%s2 + $0xf0] sm:$0xff]
        %v982 = vld [vmem:[%s2 + $0xf8] sm:$0xff]
        %v983 = vld [vmem:[%s2 + $0x100] sm:$0xff]
        %v984 = vld [vmem:[%s2 + $0x108] sm:$0xff]
        %v985 = vld [vmem:[%s2 + $0x110] sm:$0xff]
        %v986 = vld [vmem:[%s2 + $0x118] sm:$0xff]
        %v987 = vld [vmem:[%s2 + $0x120] sm:$0xff]
        %v988 = vld [vmem:[%s2 + $0x128] sm:$0xff]
        %v989 = vld [vmem:[%s2 + $0x130] sm:$0xff]
        %v990 = vld [vmem:[%s2 + $0x138] sm:$0xff]
        %v991 = vld [vmem:[%s2 + $0x140] sm:$0xff]
        %v992 = vld [vmem:[%s2 + $0x148] sm:$0xff]
        %v993 = vld [vmem:[%s2 + $0x150] sm:$0xff]
        %v994 = vld [vmem:[%s2 + $0x158] sm:$0xff]
        %v995 = vld [vmem:[%s2 + $0x160] sm:$0xff]
        %v996 = vld [vmem:[%s2 + $0x168] sm:$0xff]
        %v997 = vld [vmem:[%s2 + $0x170] sm:$0xff]
        %v998 = vld [vmem:[%s2 + $0x178] sm:$0xff]
        %999 = vmatprep.subr.mxu0 %v997
        %1000 = vmatpush1.msra.mxu0 %v996
        %1001 = vmatprep.subr.mxu0 %v994
        %1002 = vmatpush1.msra.mxu0 %v993
        %1003 = vmatprep.subr.mxu0 %v991
        %1004 = vmatpush1.msra.mxu0 %v990
        %1005 = vmatprep.subr.mxu0 %v988
        %1006 = vmatpush1.msra.mxu0 %v987
        %1007 = vmatprep.subr.mxu0 %v985
        %1008 = vmatpush1.msra.mxu0 %v984
        %1009 = vmatprep.subr.mxu0 %v982
        %1010 = vmatpush1.msra.mxu0 %v981
        %1011 = vmatprep.subr.mxu0 %v979
        %1012 = vmatpush1.msra.mxu0 %v978
        %1013 = vmatprep.subr.mxu0 %v976
        %1014 = vmatpush1.msra.mxu0 %v975
        %1015 = vmatprep.subr.mxu0 %v973
        %1016 = vmatpush1.msra.mxu0 %v972
        %1017 = vmatprep.subr.mxu0 %v970
        %1018 = vmatpush1.msra.mxu0 %v969
        %1019 = vmatprep.subr.mxu0 %v967
        %1020 = vmatpush1.msra.mxu0 %v966
        %1021 = vmatprep.subr.mxu0 %v964
        %1022 = vmatpush1.msra.mxu0 %v963
        %1023 = vmatprep.subr.mxu0 %v961
        %1024 = vmatpush1.msra.mxu0 %v960
        %1025 = vmatprep.subr.mxu0 %v958
        %1026 = vmatpush1.msra.mxu0 %v957
        %1027 = vmatprep.subr.mxu0 %v955
        %1028 = vmatpush1.msra.mxu0 %v954
        %1029 = vmatprep.subr.mxu0 %v952
        %1030 = vmatpush1.msra.mxu0 %v951
        %1031 = vmatprep.subr.mxu0 0.0
        %1032 = vmatpush2.msra.mxu0 0.0
        %1033 = vmatprep.subr.mxu0 0.0
        %1034 = vmatpush2.msra.mxu0 0.0
        %1035 = vmatprep.subr.mxu0 0.0
        %1036 = vmatpush2.msra.mxu0 0.0
        %1037 = vmatprep.subr.mxu0 0.0
        %1038 = vmatpush2.msra.mxu0 0.0
        %1039 = vmatprep.subr.mxu0 0.0
        %1040 = vmatpush2.msra.mxu0 0.0
        %1041 = vmatprep.subr.mxu0 0.0
        %1042 = vmatpush2.msra.mxu0 0.0
        %1043 = vmatprep.subr.mxu0 0.0
        %1044 = vmatpush2.msra.mxu0 0.0
        %1045 = vmatprep.subr.mxu0 0.0
        %1046 = vmatpush2.msra.mxu0 0.0
        %1047 = vmatprep.subr.mxu0 0.0
        %1048 = vmatpush2.msra.mxu0 0.0
        %1049 = vmatprep.subr.mxu0 0.0
        %1050 = vmatpush2.msra.mxu0 0.0
        %1051 = vmatprep.subr.mxu0 0.0
        %1052 = vmatpush2.msra.mxu0 0.0
        %1053 = vmatprep.subr.mxu0 0.0
        %1054 = vmatpush2.msra.mxu0 0.0
        %1055 = vmatprep.subr.mxu0 0.0
        %1056 = vmatpush2.msra.mxu0 0.0
        %1057 = vmatprep.subr.mxu0 0.0
        %1058 = vmatpush2.msra.mxu0 0.0
        %1059 = vmatprep.subr.mxu0 0.0
        %1060 = vmatpush2.msra.mxu0 0.0
        %1061 = vmatprep.subr.mxu0 0.0
        %1062 = vmatpush2.msra.mxu0 0.0
        %1063 = vmatprep.mubr.f32.mxu0 0.0
        %1064 = vmatmul.mubr.f32.gmra.mxu0 %v944
        %v1065 = vpop.f32.mrf.mxu0
        %v1066 = vadd.f32 0.0, %v1065
        %v1067 = vpop.f32.mrf.mxu0
        %v1068 = vadd.f32 0.0, %v1067
        %1069 = vdwg.mxu0
        %1070 = vmatprep.subr.mxu0 0.0
        %1071 = vmatpush1.msra.mxu0 %v998
        %1072 = vmatprep.subr.mxu0 0.0
        %1073 = vmatpush1.msra.mxu0 %v995
        %1074 = vmatprep.subr.mxu0 0.0
        %1075 = vmatpush1.msra.mxu0 %v992
        %1076 = vmatprep.subr.mxu0 0.0
        %1077 = vmatpush1.msra.mxu0 %v989
        %1078 = vmatprep.subr.mxu0 0.0
        %1079 = vmatpush1.msra.mxu0 %v986
        %1080 = vmatprep.subr.mxu0 0.0
        %1081 = vmatpush1.msra.mxu0 %v983
        %1082 = vmatprep.subr.mxu0 0.0
        %1083 = vmatpush1.msra.mxu0 %v980
        %1084 = vmatprep.subr.mxu0 0.0
        %1085 = vmatpush1.msra.mxu0 %v977
        %1086 = vmatprep.subr.mxu0 0.0
        %1087 = vmatpush1.msra.mxu0 %v974
        %1088 = vmatprep.subr.mxu0 0.0
        %1089 = vmatpush1.msra.mxu0 %v971
        %1090 = vmatprep.subr.mxu0 0.0
        %1091 = vmatpush1.msra.mxu0 %v968
        %1092 = vmatprep.subr.mxu0 0.0
        %1093 = vmatpush1.msra.mxu0 %v965
        %1094 = vmatprep.subr.mxu0 0.0
        %1095 = vmatpush1.msra.mxu0 %v962
        %1096 = vmatprep.subr.mxu0 0.0
        %1097 = vmatpush1.msra.mxu0 %v959
        %1098 = vmatprep.subr.mxu0 0.0
        %1099 = vmatpush1.msra.mxu0 %v956
        %1100 = vmatprep.subr.mxu0 0.0
        %1101 = vmatpush1.msra.mxu0 %v953
        %1102 = vmatprep.subr.mxu0 0.0
        %1103 = vmatpush2.msra.mxu0 0.0
        %1104 = vmatprep.subr.mxu0 0.0
        %1105 = vmatpush2.msra.mxu0 0.0
        %1106 = vmatprep.subr.mxu0 0.0
        %1107 = vmatpush2.msra.mxu0 0.0
        %1108 = vmatprep.subr.mxu0 0.0
        %1109 = vmatpush2.msra.mxu0 0.0
        %1110 = vmatprep.subr.mxu0 0.0
        %1111 = vmatpush2.msra.mxu0 0.0
        %1112 = vmatprep.subr.mxu0 0.0
        %1113 = vmatpush2.msra.mxu0 0.0
        %1114 = vmatprep.subr.mxu0 0.0
        %1115 = vmatpush2.msra.mxu0 0.0
        %1116 = vmatprep.subr.mxu0 0.0
        %1117 = vmatpush2.msra.mxu0 0.0
        %1118 = vmatprep.subr.mxu0 0.0
        %1119 = vmatpush2.msra.mxu0 0.0
        %1120 = vmatprep.subr.mxu0 0.0
        %1121 = vmatpush2.msra.mxu0 0.0
        %1122 = vmatprep.subr.mxu0 0.0
        %1123 = vmatpush2.msra.mxu0 0.0
        %1124 = vmatprep.subr.mxu0 0.0
        %1125 = vmatpush2.msra.mxu0 0.0
        %1126 = vmatprep.subr.mxu0 0.0
        %1127 = vmatpush2.msra.mxu0 0.0
        %1128 = vmatprep.subr.mxu0 0.0
        %1129 = vmatpush2.msra.mxu0 0.0
        %1130 = vmatprep.subr.mxu0 0.0
        %1131 = vmatpush2.msra.mxu0 0.0
        %1132 = vmatprep.subr.mxu0 0.0
        %1133 = vmatpush2.msra.mxu0 0.0
        %1134 = vmatprep.mubr.f32.mxu0 0.0
        %1135 = vmatmul.mubr.f32.gmra.mxu0 %v944
        %v1136 = vpop.f32.mrf.mxu0
        %v1137 = vadd.f32 0.0, %v1136
        %v1138 = vpop.f32.mrf.mxu0
        %1139 = vdwg.mxu0
        %v1140 = vadd.f32 %v948, %v1066
        %v1141 = vxor.u32 %v1140, 2147483648
        %v1142 = vmul.f32 %v1141, 1.442695
        %v1143 = vpow.pop %v1142
        %v1144 = vadd.f32 %v1143, 1.0
        %v1145 = vrcp.pop %v1144
        %v1146 = vmul.f32 1.0, %v1145
        %v1147 = vadd.f32 %v949, %v1068
        %v1148 = vxor.u32 %v1147, 2147483648
        %v1149 = vmul.f32 %v1148, 1.442695
        %v1150 = vpow.pop %v1149
        %v1151 = vadd.f32 %v1150, 1.0
        %v1152 = vrcp.pop %v1151
        %v1153 = vmul.f32 1.0, %v1152
        %v1154 = vadd.f32 %v1137, %v502
        %v1155 = vmul.f32 %v1146, %v1154
        %v1156 = vadd.f32 %v950, %v1155
        %v1157 = vtanh.pop %v1156
        %v1158 = vsub.f32 1.0, %v1153
        %v1159 = vmul.f32 %v1158, %v1157
        %v1160 = vmul.f32 %v1153, %v944
        %v1161 = vadd.f32 %v1159, %v1160
        %s1162 = scalar_lea.vmem [#allocation3], 24
        %1163 = vst [vmem:[%s1162] sm:$0xff] %v1161
        %s1164 = scalar_lea.vmem %s276, 96
        %v1165 = vld [vmem:[%s1164] sm:$0xff]
        %v1166 = vld [vmem:[%s1164 + $0x8] sm:$0xff]
        %v1167 = vld [vmem:[%s1164 + $0x10] sm:$0xff]
        %v1168 = vld [vmem:[%s2] sm:$0xff]
        %v1169 = vld [vmem:[%s2 + $0x8] sm:$0xff]
        %v1170 = vld [vmem:[%s2 + $0x10] sm:$0xff]
        %v1171 = vld [vmem:[%s2 + $0x18] sm:$0xff]
        %v1172 = vld [vmem:[%s2 + $0x20] sm:$0xff]
        %v1173 = vld [vmem:[%s2 + $0x28] sm:$0xff]
        %v1174 = vld [vmem:[%s2 + $0x30] sm:$0xff]
        %v1175 = vld [vmem:[%s2 + $0x38] sm:$0xff]
        %v1176 = vld [vmem:[%s2 + $0x40] sm:$0xff]
        %v1177 = vld [vmem:[%s2 + $0x48] sm:$0xff]
        %v1178 = vld [vmem:[%s2 + $0x50] sm:$0xff]
        %v1179 = vld [vmem:[%s2 + $0x58] sm:$0xff]
        %v1180 = vld [vmem:[%s2 + $0x60] sm:$0xff]
        %v1181 = vld [vmem:[%s2 + $0x68] sm:$0xff]
        %v1182 = vld [vmem:[%s2 + $0x70] sm:$0xff]
        %v1183 = vld [vmem:[%s2 + $0x78] sm:$0xff]
        %v1184 = vld [vmem:[%s2 + $0x80] sm:$0xff]
        %v1185 = vld [vmem:[%s2 + $0x88] sm:$0xff]
        %v1186 = vld [vmem:[%s2 + $0x90] sm:$0xff]
        %v1187 = vld [vmem:[%s2 + $0x98] sm:$0xff]
        %v1188 = vld [vmem:[%s2 + $0xa0] sm:$0xff]
        %v1189 = vld [vmem:[%s2 + $0xa8] sm:$0xff]
        %v1190 = vld [vmem:[%s2 + $0xb0] sm:$0xff]
        %v1191 = vld [vmem:[%s2 + $0xb8] sm:$0xff]
        %v1192 = vld [vmem:[%s2 + $0xc0] sm:$0xff]
        %v1193 = vld [vmem:[%s2 + $0xc8] sm:$0xff]
        %v1194 = vld [vmem:[%s2 + $0xd0] sm:$0xff]
        %v1195 = vld [vmem:[%s2 + $0xd8] sm:$0xff]
        %v1196 = vld [vmem:[%s2 + $0xe0] sm:$0xff]
        %v1197 = vld [vmem:[%s2 + $0xe8] sm:$0xff]
        %v1198 = vld [vmem:[%s2 + $0xf0] sm:$0xff]
        %v1199 = vld [vmem:[%s2 + $0xf8] sm:$0xff]
        %v1200 = vld [vmem:[%s2 + $0x100] sm:$0xff]
        %v1201 = vld [vmem:[%s2 + $0x108] sm:$0xff]
        %v1202 = vld [vmem:[%s2 + $0x110] sm:$0xff]
        %v1203 = vld [vmem:[%s2 + $0x118] sm:$0xff]
        %v1204 = vld [vmem:[%s2 + $0x120] sm:$0xff]
        %v1205 = vld [vmem:[%s2 + $0x128] sm:$0xff]
        %v1206 = vld [vmem:[%s2 + $0x130] sm:$0xff]
        %v1207 = vld [vmem:[%s2 + $0x138] sm:$0xff]
        %v1208 = vld [vmem:[%s2 + $0x140] sm:$0xff]
        %v1209 = vld [vmem:[%s2 + $0x148] sm:$0xff]
        %v1210 = vld [vmem:[%s2 + $0x150] sm:$0xff]
        %v1211 = vld [vmem:[%s2 + $0x158] sm:$0xff]
        %v1212 = vld [vmem:[%s2 + $0x160] sm:$0xff]
        %v1213 = vld [vmem:[%s2 + $0x168] sm:$0xff]
        %v1214 = vld [vmem:[%s2 + $0x170] sm:$0xff]
        %v1215 = vld [vmem:[%s2 + $0x178] sm:$0xff]
        %1216 = vmatprep.subr.mxu0 %v1214
        %1217 = vmatpush1.msra.mxu0 %v1213
        %1218 = vmatprep.subr.mxu0 %v1211
        %1219 = vmatpush1.msra.mxu0 %v1210
        %1220 = vmatprep.subr.mxu0 %v1208
        %1221 = vmatpush1.msra.mxu0 %v1207
        %1222 = vmatprep.subr.mxu0 %v1205
        %1223 = vmatpush1.msra.mxu0 %v1204
        %1224 = vmatprep.subr.mxu0 %v1202
        %1225 = vmatpush1.msra.mxu0 %v1201
        %1226 = vmatprep.subr.mxu0 %v1199
        %1227 = vmatpush1.msra.mxu0 %v1198
        %1228 = vmatprep.subr.mxu0 %v1196
        %1229 = vmatpush1.msra.mxu0 %v1195
        %1230 = vmatprep.subr.mxu0 %v1193
        %1231 = vmatpush1.msra.mxu0 %v1192
        %1232 = vmatprep.subr.mxu0 %v1190
        %1233 = vmatpush1.msra.mxu0 %v1189
        %1234 = vmatprep.subr.mxu0 %v1187
        %1235 = vmatpush1.msra.mxu0 %v1186
        %1236 = vmatprep.subr.mxu0 %v1184
        %1237 = vmatpush1.msra.mxu0 %v1183
        %1238 = vmatprep.subr.mxu0 %v1181
        %1239 = vmatpush1.msra.mxu0 %v1180
        %1240 = vmatprep.subr.mxu0 %v1178
        %1241 = vmatpush1.msra.mxu0 %v1177
        %1242 = vmatprep.subr.mxu0 %v1175
        %1243 = vmatpush1.msra.mxu0 %v1174
        %1244 = vmatprep.subr.mxu0 %v1172
        %1245 = vmatpush1.msra.mxu0 %v1171
        %1246 = vmatprep.subr.mxu0 %v1169
        %1247 = vmatpush1.msra.mxu0 %v1168
        %1248 = vmatprep.subr.mxu0 0.0
        %1249 = vmatpush2.msra.mxu0 0.0
        %1250 = vmatprep.subr.mxu0 0.0
        %1251 = vmatpush2.msra.mxu0 0.0
        %1252 = vmatprep.subr.mxu0 0.0
        %1253 = vmatpush2.msra.mxu0 0.0
        %1254 = vmatprep.subr.mxu0 0.0
        %1255 = vmatpush2.msra.mxu0 0.0
        %1256 = vmatprep.subr.mxu0 0.0
        %1257 = vmatpush2.msra.mxu0 0.0
        %1258 = vmatprep.subr.mxu0 0.0
        %1259 = vmatpush2.msra.mxu0 0.0
        %1260 = vmatprep.subr.mxu0 0.0
        %1261 = vmatpush2.msra.mxu0 0.0
        %1262 = vmatprep.subr.mxu0 0.0
        %1263 = vmatpush2.msra.mxu0 0.0
        %1264 = vmatprep.subr.mxu0 0.0
        %1265 = vmatpush2.msra.mxu0 0.0
        %1266 = vmatprep.subr.mxu0 0.0
        %1267 = vmatpush2.msra.mxu0 0.0
        %1268 = vmatprep.subr.mxu0 0.0
        %1269 = vmatpush2.msra.mxu0 0.0
        %1270 = vmatprep.subr.mxu0 0.0
        %1271 = vmatpush2.msra.mxu0 0.0
        %1272 = vmatprep.subr.mxu0 0.0
        %1273 = vmatpush2.msra.mxu0 0.0
        %1274 = vmatprep.subr.mxu0 0.0
        %1275 = vmatpush2.msra.mxu0 0.0
        %1276 = vmatprep.subr.mxu0 0.0
        %1277 = vmatpush2.msra.mxu0 0.0
        %1278 = vmatprep.subr.mxu0 0.0
        %1279 = vmatpush2.msra.mxu0 0.0
        %1280 = vmatprep.mubr.f32.mxu0 0.0
        %1281 = vmatmul.mubr.f32.gmra.mxu0 %v1161
        %v1282 = vpop.f32.mrf.mxu0
        %v1283 = vadd.f32 0.0, %v1282
        %v1284 = vpop.f32.mrf.mxu0
        %v1285 = vadd.f32 0.0, %v1284
        %1286 = vdwg.mxu0
        %1287 = vmatprep.subr.mxu0 0.0
        %1288 = vmatpush1.msra.mxu0 %v1215
        %1289 = vmatprep.subr.mxu0 0.0
        %1290 = vmatpush1.msra.mxu0 %v1212
        %1291 = vmatprep.subr.mxu0 0.0
        %1292 = vmatpush1.msra.mxu0 %v1209
        %1293 = vmatprep.subr.mxu0 0.0
        %1294 = vmatpush1.msra.mxu0 %v1206
        %1295 = vmatprep.subr.mxu0 0.0
        %1296 = vmatpush1.msra.mxu0 %v1203
        %1297 = vmatprep.subr.mxu0 0.0
        %1298 = vmatpush1.msra.mxu0 %v1200
        %1299 = vmatprep.subr.mxu0 0.0
        %1300 = vmatpush1.msra.mxu0 %v1197
        %1301 = vmatprep.subr.mxu0 0.0
        %1302 = vmatpush1.msra.mxu0 %v1194
        %1303 = vmatprep.subr.mxu0 0.0
        %1304 = vmatpush1.msra.mxu0 %v1191
        %1305 = vmatprep.subr.mxu0 0.0
        %1306 = vmatpush1.msra.mxu0 %v1188
        %1307 = vmatprep.subr.mxu0 0.0
        %1308 = vmatpush1.msra.mxu0 %v1185
        %1309 = vmatprep.subr.mxu0 0.0
        %1310 = vmatpush1.msra.mxu0 %v1182
        %1311 = vmatprep.subr.mxu0 0.0
        %1312 = vmatpush1.msra.mxu0 %v1179
        %1313 = vmatprep.subr.mxu0 0.0
        %1314 = vmatpush1.msra.mxu0 %v1176
        %1315 = vmatprep.subr.mxu0 0.0
        %1316 = vmatpush1.msra.mxu0 %v1173
        %1317 = vmatprep.subr.mxu0 0.0
        %1318 = vmatpush1.msra.mxu0 %v1170
        %1319 = vmatprep.subr.mxu0 0.0
        %1320 = vmatpush2.msra.mxu0 0.0
        %1321 = vmatprep.subr.mxu0 0.0
        %1322 = vmatpush2.msra.mxu0 0.0
        %1323 = vmatprep.subr.mxu0 0.0
        %1324 = vmatpush2.msra.mxu0 0.0
        %1325 = vmatprep.subr.mxu0 0.0
        %1326 = vmatpush2.msra.mxu0 0.0
        %1327 = vmatprep.subr.mxu0 0.0
        %1328 = vmatpush2.msra.mxu0 0.0
        %1329 = vmatprep.subr.mxu0 0.0
        %1330 = vmatpush2.msra.mxu0 0.0
        %1331 = vmatprep.subr.mxu0 0.0
        %1332 = vmatpush2.msra.mxu0 0.0
        %1333 = vmatprep.subr.mxu0 0.0
        %1334 = vmatpush2.msra.mxu0 0.0
        %1335 = vmatprep.subr.mxu0 0.0
        %1336 = vmatpush2.msra.mxu0 0.0
        %1337 = vmatprep.subr.mxu0 0.0
        %1338 = vmatpush2.msra.mxu0 0.0
        %1339 = vmatprep.subr.mxu0 0.0
        %1340 = vmatpush2.msra.mxu0 0.0
        %1341 = vmatprep.subr.mxu0 0.0
        %1342 = vmatpush2.msra.mxu0 0.0
        %1343 = vmatprep.subr.mxu0 0.0
        %1344 = vmatpush2.msra.mxu0 0.0
        %1345 = vmatprep.subr.mxu0 0.0
        %1346 = vmatpush2.msra.mxu0 0.0
        %1347 = vmatprep.subr.mxu0 0.0
        %1348 = vmatpush2.msra.mxu0 0.0
        %1349 = vmatprep.subr.mxu0 0.0
        %1350 = vmatpush2.msra.mxu0 0.0
        %1351 = vmatprep.mubr.f32.mxu0 0.0
        %1352 = vmatmul.mubr.f32.gmra.mxu0 %v1161
        %v1353 = vpop.f32.mrf.mxu0
        %v1354 = vadd.f32 0.0, %v1353
        %v1355 = vpop.f32.mrf.mxu0
        %1356 = vdwg.mxu0
        %v1357 = vadd.f32 %v1165, %v1283
        %v1358 = vxor.u32 %v1357, 2147483648
        %v1359 = vmul.f32 %v1358, 1.442695
        %v1360 = vpow.pop %v1359
        %v1361 = vadd.f32 %v1360, 1.0
        %v1362 = vrcp.pop %v1361
        %v1363 = vmul.f32 1.0, %v1362
        %v1364 = vadd.f32 %v1166, %v1285
        %v1365 = vxor.u32 %v1364, 2147483648
        %v1366 = vmul.f32 %v1365, 1.442695
        %v1367 = vpow.pop %v1366
        %v1368 = vadd.f32 %v1367, 1.0
        %v1369 = vrcp.pop %v1368
        %v1370 = vmul.f32 1.0, %v1369
        %v1371 = vadd.f32 %v1354, %v502
        %v1372 = vmul.f32 %v1363, %v1371
        %v1373 = vadd.f32 %v1167, %v1372
        %v1374 = vtanh.pop %v1373
        %v1375 = vsub.f32 1.0, %v1370
        %v1376 = vmul.f32 %v1375, %v1374
        %v1377 = vmul.f32 %v1370, %v1161
        %v1378 = vadd.f32 %v1376, %v1377
        %s1379 = scalar_lea.vmem [#allocation3], 32
        %1380 = vst [vmem:[%s1379] sm:$0xff] %v1378
        %s1381 = scalar_lea.vmem %s276, 120
        %v1382 = vld [vmem:[%s1381] sm:$0xff]
        %v1383 = vld [vmem:[%s1381 + $0x8] sm:$0xff]
        %v1384 = vld [vmem:[%s1381 + $0x10] sm:$0xff]
        %v1385 = vld [vmem:[%s2] sm:$0xff]
        %v1386 = vld [vmem:[%s2 + $0x8] sm:$0xff]
        %v1387 = vld [vmem:[%s2 + $0x10] sm:$0xff]
        %v1388 = vld [vmem:[%s2 + $0x18] sm:$0xff]
        %v1389 = vld [vmem:[%s2 + $0x20] sm:$0xff]
        %v1390 = vld [vmem:[%s2 + $0x28] sm:$0xff]
        %v1391 = vld [vmem:[%s2 + $0x30] sm:$0xff]
        %v1392 = vld [vmem:[%s2 + $0x38] sm:$0xff]
        %v1393 = vld [vmem:[%s2 + $0x40] sm:$0xff]
        %v1394 = vld [vmem:[%s2 + $0x48] sm:$0xff]
        %v1395 = vld [vmem:[%s2 + $0x50] sm:$0xff]
        %v1396 = vld [vmem:[%s2 + $0x58] sm:$0xff]
        %v1397 = vld [vmem:[%s2 + $0x60] sm:$0xff]
        %v1398 = vld [vmem:[%s2 + $0x68] sm:$0xff]
        %v1399 = vld [vmem:[%s2 + $0x70] sm:$0xff]
        %v1400 = vld [vmem:[%s2 + $0x78] sm:$0xff]
        %v1401 = vld [vmem:[%s2 + $0x80] sm:$0xff]
        %v1402 = vld [vmem:[%s2 + $0x88] sm:$0xff]
        %v1403 = vld [vmem:[%s2 + $0x90] sm:$0xff]
        %v1404 = vld [vmem:[%s2 + $0x98] sm:$0xff]
        %v1405 = vld [vmem:[%s2 + $0xa0] sm:$0xff]
        %v1406 = vld [vmem:[%s2 + $0xa8] sm:$0xff]
        %v1407 = vld [vmem:[%s2 + $0xb0] sm:$0xff]
        %v1408 = vld [vmem:[%s2 + $0xb8] sm:$0xff]
        %v1409 = vld [vmem:[%s2 + $0xc0] sm:$0xff]
        %v1410 = vld [vmem:[%s2 + $0xc8] sm:$0xff]
        %v1411 = vld [vmem:[%s2 + $0xd0] sm:$0xff]
        %v1412 = vld [vmem:[%s2 + $0xd8] sm:$0xff]
        %v1413 = vld [vmem:[%s2 + $0xe0] sm:$0xff]
        %v1414 = vld [vmem:[%s2 + $0xe8] sm:$0xff]
        %v1415 = vld [vmem:[%s2 + $0xf0] sm:$0xff]
        %v1416 = vld [vmem:[%s2 + $0xf8] sm:$0xff]
        %v1417 = vld [vmem:[%s2 + $0x100] sm:$0xff]
        %v1418 = vld [vmem:[%s2 + $0x108] sm:$0xff]
        %v1419 = vld [vmem:[%s2 + $0x110] sm:$0xff]
        %v1420 = vld [vmem:[%s2 + $0x118] sm:$0xff]
        %v1421 = vld [vmem:[%s2 + $0x120] sm:$0xff]
        %v1422 = vld [vmem:[%s2 + $0x128] sm:$0xff]
        %v1423 = vld [vmem:[%s2 + $0x130] sm:$0xff]
        %v1424 = vld [vmem:[%s2 + $0x138] sm:$0xff]
        %v1425 = vld [vmem:[%s2 + $0x140] sm:$0xff]
        %v1426 = vld [vmem:[%s2 + $0x148] sm:$0xff]
        %v1427 = vld [vmem:[%s2 + $0x150] sm:$0xff]
        %v1428 = vld [vmem:[%s2 + $0x158] sm:$0xff]
        %v1429 = vld [vmem:[%s2 + $0x160] sm:$0xff]
        %v1430 = vld [vmem:[%s2 + $0x168] sm:$0xff]
        %v1431 = vld [vmem:[%s2 + $0x170] sm:$0xff]
        %v1432 = vld [vmem:[%s2 + $0x178] sm:$0xff]
        %1433 = vmatprep.subr.mxu0 %v1431
        %1434 = vmatpush1.msra.mxu0 %v1430
        %1435 = vmatprep.subr.mxu0 %v1428
        %1436 = vmatpush1.msra.mxu0 %v1427
        %1437 = vmatprep.subr.mxu0 %v1425
        %1438 = vmatpush1.msra.mxu0 %v1424
        %1439 = vmatprep.subr.mxu0 %v1422
        %1440 = vmatpush1.msra.mxu0 %v1421
        %1441 = vmatprep.subr.mxu0 %v1419
        %1442 = vmatpush1.msra.mxu0 %v1418
        %1443 = vmatprep.subr.mxu0 %v1416
        %1444 = vmatpush1.msra.mxu0 %v1415
        %1445 = vmatprep.subr.mxu0 %v1413
        %1446 = vmatpush1.msra.mxu0 %v1412
        %1447 = vmatprep.subr.mxu0 %v1410
        %1448 = vmatpush1.msra.mxu0 %v1409
        %1449 = vmatprep.subr.mxu0 %v1407
        %1450 = vmatpush1.msra.mxu0 %v1406
        %1451 = vmatprep.subr.mxu0 %v1404
        %1452 = vmatpush1.msra.mxu0 %v1403
        %1453 = vmatprep.subr.mxu0 %v1401
        %1454 = vmatpush1.msra.mxu0 %v1400
        %1455 = vmatprep.subr.mxu0 %v1398
        %1456 = vmatpush1.msra.mxu0 %v1397
        %1457 = vmatprep.subr.mxu0 %v1395
        %1458 = vmatpush1.msra.mxu0 %v1394
        %1459 = vmatprep.subr.mxu0 %v1392
        %1460 = vmatpush1.msra.mxu0 %v1391
        %1461 = vmatprep.subr.mxu0 %v1389
        %1462 = vmatpush1.msra.mxu0 %v1388
        %1463 = vmatprep.subr.mxu0 %v1386
        %1464 = vmatpush1.msra.mxu0 %v1385
        %1465 = vmatprep.subr.mxu0 0.0
        %1466 = vmatpush2.msra.mxu0 0.0
        %1467 = vmatprep.subr.mxu0 0.0
        %1468 = vmatpush2.msra.mxu0 0.0
        %1469 = vmatprep.subr.mxu0 0.0
        %1470 = vmatpush2.msra.mxu0 0.0
        %1471 = vmatprep.subr.mxu0 0.0
        %1472 = vmatpush2.msra.mxu0 0.0
        %1473 = vmatprep.subr.mxu0 0.0
        %1474 = vmatpush2.msra.mxu0 0.0
        %1475 = vmatprep.subr.mxu0 0.0
        %1476 = vmatpush2.msra.mxu0 0.0
        %1477 = vmatprep.subr.mxu0 0.0
        %1478 = vmatpush2.msra.mxu0 0.0
        %1479 = vmatprep.subr.mxu0 0.0
        %1480 = vmatpush2.msra.mxu0 0.0
        %1481 = vmatprep.subr.mxu0 0.0
        %1482 = vmatpush2.msra.mxu0 0.0
        %1483 = vmatprep.subr.mxu0 0.0
        %1484 = vmatpush2.msra.mxu0 0.0
        %1485 = vmatprep.subr.mxu0 0.0
        %1486 = vmatpush2.msra.mxu0 0.0
        %1487 = vmatprep.subr.mxu0 0.0
        %1488 = vmatpush2.msra.mxu0 0.0
        %1489 = vmatprep.subr.mxu0 0.0
        %1490 = vmatpush2.msra.mxu0 0.0
        %1491 = vmatprep.subr.mxu0 0.0
        %1492 = vmatpush2.msra.mxu0 0.0
        %1493 = vmatprep.subr.mxu0 0.0
        %1494 = vmatpush2.msra.mxu0 0.0
        %1495 = vmatprep.subr.mxu0 0.0
        %1496 = vmatpush2.msra.mxu0 0.0
        %1497 = vmatprep.mubr.f32.mxu0 0.0
        %1498 = vmatmul.mubr.f32.gmra.mxu0 %v1378
        %v1499 = vpop.f32.mrf.mxu0
        %v1500 = vadd.f32 0.0, %v1499
        %v1501 = vpop.f32.mrf.mxu0
        %v1502 = vadd.f32 0.0, %v1501
        %1503 = vdwg.mxu0
        %1504 = vmatprep.subr.mxu0 0.0
        %1505 = vmatpush1.msra.mxu0 %v1432
        %1506 = vmatprep.subr.mxu0 0.0
        %1507 = vmatpush1.msra.mxu0 %v1429
        %1508 = vmatprep.subr.mxu0 0.0
        %1509 = vmatpush1.msra.mxu0 %v1426
        %1510 = vmatprep.subr.mxu0 0.0
        %1511 = vmatpush1.msra.mxu0 %v1423
        %1512 = vmatprep.subr.mxu0 0.0
        %1513 = vmatpush1.msra.mxu0 %v1420
        %1514 = vmatprep.subr.mxu0 0.0
        %1515 = vmatpush1.msra.mxu0 %v1417
        %1516 = vmatprep.subr.mxu0 0.0
        %1517 = vmatpush1.msra.mxu0 %v1414
        %1518 = vmatprep.subr.mxu0 0.0
        %1519 = vmatpush1.msra.mxu0 %v1411
        %1520 = vmatprep.subr.mxu0 0.0
        %1521 = vmatpush1.msra.mxu0 %v1408
        %1522 = vmatprep.subr.mxu0 0.0
        %1523 = vmatpush1.msra.mxu0 %v1405
        %1524 = vmatprep.subr.mxu0 0.0
        %1525 = vmatpush1.msra.mxu0 %v1402
        %1526 = vmatprep.subr.mxu0 0.0
        %1527 = vmatpush1.msra.mxu0 %v1399
        %1528 = vmatprep.subr.mxu0 0.0
        %1529 = vmatpush1.msra.mxu0 %v1396
        %1530 = vmatprep.subr.mxu0 0.0
        %1531 = vmatpush1.msra.mxu0 %v1393
        %1532 = vmatprep.subr.mxu0 0.0
        %1533 = vmatpush1.msra.mxu0 %v1390
        %1534 = vmatprep.subr.mxu0 0.0
        %1535 = vmatpush1.msra.mxu0 %v1387
        %1536 = vmatprep.subr.mxu0 0.0
        %1537 = vmatpush2.msra.mxu0 0.0
        %1538 = vmatprep.subr.mxu0 0.0
        %1539 = vmatpush2.msra.mxu0 0.0
        %1540 = vmatprep.subr.mxu0 0.0
        %1541 = vmatpush2.msra.mxu0 0.0
        %1542 = vmatprep.subr.mxu0 0.0
        %1543 = vmatpush2.msra.mxu0 0.0
        %1544 = vmatprep.subr.mxu0 0.0
        %1545 = vmatpush2.msra.mxu0 0.0
        %1546 = vmatprep.subr.mxu0 0.0
        %1547 = vmatpush2.msra.mxu0 0.0
        %1548 = vmatprep.subr.mxu0 0.0
        %1549 = vmatpush2.msra.mxu0 0.0
        %1550 = vmatprep.subr.mxu0 0.0
        %1551 = vmatpush2.msra.mxu0 0.0
        %1552 = vmatprep.subr.mxu0 0.0
        %1553 = vmatpush2.msra.mxu0 0.0
        %1554 = vmatprep.subr.mxu0 0.0
        %1555 = vmatpush2.msra.mxu0 0.0
        %1556 = vmatprep.subr.mxu0 0.0
        %1557 = vmatpush2.msra.mxu0 0.0
        %1558 = vmatprep.subr.mxu0 0.0
        %1559 = vmatpush2.msra.mxu0 0.0
        %1560 = vmatprep.subr.mxu0 0.0
        %1561 = vmatpush2.msra.mxu0 0.0
        %1562 = vmatprep.subr.mxu0 0.0
        %1563 = vmatpush2.msra.mxu0 0.0
        %1564 = vmatprep.subr.mxu0 0.0
        %1565 = vmatpush2.msra.mxu0 0.0
        %1566 = vmatprep.subr.mxu0 0.0
        %1567 = vmatpush2.msra.mxu0 0.0
        %1568 = vmatprep.mubr.f32.mxu0 0.0
        %1569 = vmatmul.mubr.f32.gmra.mxu0 %v1378
        %v1570 = vpop.f32.mrf.mxu0
        %v1571 = vadd.f32 0.0, %v1570
        %v1572 = vpop.f32.mrf.mxu0
        %1573 = vdwg.mxu0
        %v1574 = vadd.f32 %v1382, %v1500
        %v1575 = vxor.u32 %v1574, 2147483648
        %v1576 = vmul.f32 %v1575, 1.442695
        %v1577 = vpow.pop %v1576
        %v1578 = vadd.f32 %v1577, 1.0
        %v1579 = vrcp.pop %v1578
        %v1580 = vmul.f32 1.0, %v1579
        %v1581 = vadd.f32 %v1383, %v1502
        %v1582 = vxor.u32 %v1581, 2147483648
        %v1583 = vmul.f32 %v1582, 1.442695
        %v1584 = vpow.pop %v1583
        %v1585 = vadd.f32 %v1584, 1.0
        %v1586 = vrcp.pop %v1585
        %v1587 = vmul.f32 1.0, %v1586
        %v1588 = vadd.f32 %v1571, %v502
        %v1589 = vmul.f32 %v1580, %v1588
        %v1590 = vadd.f32 %v1384, %v1589
        %v1591 = vtanh.pop %v1590
        %v1592 = vsub.f32 1.0, %v1587
        %v1593 = vmul.f32 %v1592, %v1591
        %v1594 = vmul.f32 %v1587, %v1378
        %v1595 = vadd.f32 %v1593, %v1594
        %s1596 = scalar_lea.vmem [#allocation3], 40
        %1597 = vst [vmem:[%s1596] sm:$0xff] %v1595
        %s1598 = scalar_lea.vmem %s276, 144
        %v1599 = vld [vmem:[%s1598] sm:$0xff]
        %v1600 = vld [vmem:[%s1598 + $0x8] sm:$0xff]
        %v1601 = vld [vmem:[%s1598 + $0x10] sm:$0xff]
        %v1602 = vld [vmem:[%s2] sm:$0xff]
        %v1603 = vld [vmem:[%s2 + $0x8] sm:$0xff]
        %v1604 = vld [vmem:[%s2 + $0x10] sm:$0xff]
        %v1605 = vld [vmem:[%s2 + $0x18] sm:$0xff]
        %v1606 = vld [vmem:[%s2 + $0x20] sm:$0xff]
        %v1607 = vld [vmem:[%s2 + $0x28] sm:$0xff]
        %v1608 = vld [vmem:[%s2 + $0x30] sm:$0xff]
        %v1609 = vld [vmem:[%s2 + $0x38] sm:$0xff]
        %v1610 = vld [vmem:[%s2 + $0x40] sm:$0xff]
        %v1611 = vld [vmem:[%s2 + $0x48] sm:$0xff]
        %v1612 = vld [vmem:[%s2 + $0x50] sm:$0xff]
        %v1613 = vld [vmem:[%s2 + $0x58] sm:$0xff]
        %v1614 = vld [vmem:[%s2 + $0x60] sm:$0xff]
        %v1615 = vld [vmem:[%s2 + $0x68] sm:$0xff]
        %v1616 = vld [vmem:[%s2 + $0x70] sm:$0xff]
        %v1617 = vld [vmem:[%s2 + $0x78] sm:$0xff]
        %v1618 = vld [vmem:[%s2 + $0x80] sm:$0xff]
        %v1619 = vld [vmem:[%s2 + $0x88] sm:$0xff]
        %v1620 = vld [vmem:[%s2 + $0x90] sm:$0xff]
        %v1621 = vld [vmem:[%s2 + $0x98] sm:$0xff]
        %v1622 = vld [vmem:[%s2 + $0xa0] sm:$0xff]
        %v1623 = vld [vmem:[%s2 + $0xa8] sm:$0xff]
        %v1624 = vld [vmem:[%s2 + $0xb0] sm:$0xff]
        %v1625 = vld [vmem:[%s2 + $0xb8] sm:$0xff]
        %v1626 = vld [vmem:[%s2 + $0xc0] sm:$0xff]
        %v1627 = vld [vmem:[%s2 + $0xc8] sm:$0xff]
        %v1628 = vld [vmem:[%s2 + $0xd0] sm:$0xff]
        %v1629 = vld [vmem:[%s2 + $0xd8] sm:$0xff]
        %v1630 = vld [vmem:[%s2 + $0xe0] sm:$0xff]
        %v1631 = vld [vmem:[%s2 + $0xe8] sm:$0xff]
        %v1632 = vld [vmem:[%s2 + $0xf0] sm:$0xff]
        %v1633 = vld [vmem:[%s2 + $0xf8] sm:$0xff]
        %v1634 = vld [vmem:[%s2 + $0x100] sm:$0xff]
        %v1635 = vld [vmem:[%s2 + $0x108] sm:$0xff]
        %v1636 = vld [vmem:[%s2 + $0x110] sm:$0xff]
        %v1637 = vld [vmem:[%s2 + $0x118] sm:$0xff]
        %v1638 = vld [vmem:[%s2 + $0x120] sm:$0xff]
        %v1639 = vld [vmem:[%s2 + $0x128] sm:$0xff]
        %v1640 = vld [vmem:[%s2 + $0x130] sm:$0xff]
        %v1641 = vld [vmem:[%s2 + $0x138] sm:$0xff]
        %v1642 = vld [vmem:[%s2 + $0x140] sm:$0xff]
        %v1643 = vld [vmem:[%s2 + $0x148] sm:$0xff]
        %v1644 = vld [vmem:[%s2 + $0x150] sm:$0xff]
        %v1645 = vld [vmem:[%s2 + $0x158] sm:$0xff]
        %v1646 = vld [vmem:[%s2 + $0x160] sm:$0xff]
        %v1647 = vld [vmem:[%s2 + $0x168] sm:$0xff]
        %v1648 = vld [vmem:[%s2 + $0x170] sm:$0xff]
        %v1649 = vld [vmem:[%s2 + $0x178] sm:$0xff]
        %1650 = vmatprep.subr.mxu0 %v1648
        %1651 = vmatpush1.msra.mxu0 %v1647
        %1652 = vmatprep.subr.mxu0 %v1645
        %1653 = vmatpush1.msra.mxu0 %v1644
        %1654 = vmatprep.subr.mxu0 %v1642
        %1655 = vmatpush1.msra.mxu0 %v1641
        %1656 = vmatprep.subr.mxu0 %v1639
        %1657 = vmatpush1.msra.mxu0 %v1638
        %1658 = vmatprep.subr.mxu0 %v1636
        %1659 = vmatpush1.msra.mxu0 %v1635
        %1660 = vmatprep.subr.mxu0 %v1633
        %1661 = vmatpush1.msra.mxu0 %v1632
        %1662 = vmatprep.subr.mxu0 %v1630
        %1663 = vmatpush1.msra.mxu0 %v1629
        %1664 = vmatprep.subr.mxu0 %v1627
        %1665 = vmatpush1.msra.mxu0 %v1626
        %1666 = vmatprep.subr.mxu0 %v1624
        %1667 = vmatpush1.msra.mxu0 %v1623
        %1668 = vmatprep.subr.mxu0 %v1621
        %1669 = vmatpush1.msra.mxu0 %v1620
        %1670 = vmatprep.subr.mxu0 %v1618
        %1671 = vmatpush1.msra.mxu0 %v1617
        %1672 = vmatprep.subr.mxu0 %v1615
        %1673 = vmatpush1.msra.mxu0 %v1614
        %1674 = vmatprep.subr.mxu0 %v1612
        %1675 = vmatpush1.msra.mxu0 %v1611
        %1676 = vmatprep.subr.mxu0 %v1609
        %1677 = vmatpush1.msra.mxu0 %v1608
        %1678 = vmatprep.subr.mxu0 %v1606
        %1679 = vmatpush1.msra.mxu0 %v1605
        %1680 = vmatprep.subr.mxu0 %v1603
        %1681 = vmatpush1.msra.mxu0 %v1602
        %1682 = vmatprep.subr.mxu0 0.0
        %1683 = vmatpush2.msra.mxu0 0.0
        %1684 = vmatprep.subr.mxu0 0.0
        %1685 = vmatpush2.msra.mxu0 0.0
        %1686 = vmatprep.subr.mxu0 0.0
        %1687 = vmatpush2.msra.mxu0 0.0
        %1688 = vmatprep.subr.mxu0 0.0
        %1689 = vmatpush2.msra.mxu0 0.0
        %1690 = vmatprep.subr.mxu0 0.0
        %1691 = vmatpush2.msra.mxu0 0.0
        %1692 = vmatprep.subr.mxu0 0.0
        %1693 = vmatpush2.msra.mxu0 0.0
        %1694 = vmatprep.subr.mxu0 0.0
        %1695 = vmatpush2.msra.mxu0 0.0
        %1696 = vmatprep.subr.mxu0 0.0
        %1697 = vmatpush2.msra.mxu0 0.0
        %1698 = vmatprep.subr.mxu0 0.0
        %1699 = vmatpush2.msra.mxu0 0.0
        %1700 = vmatprep.subr.mxu0 0.0
        %1701 = vmatpush2.msra.mxu0 0.0
        %1702 = vmatprep.subr.mxu0 0.0
        %1703 = vmatpush2.msra.mxu0 0.0
        %1704 = vmatprep.subr.mxu0 0.0
        %1705 = vmatpush2.msra.mxu0 0.0
        %1706 = vmatprep.subr.mxu0 0.0
        %1707 = vmatpush2.msra.mxu0 0.0
        %1708 = vmatprep.subr.mxu0 0.0
        %1709 = vmatpush2.msra.mxu0 0.0
        %1710 = vmatprep.subr.mxu0 0.0
        %1711 = vmatpush2.msra.mxu0 0.0
        %1712 = vmatprep.subr.mxu0 0.0
        %1713 = vmatpush2.msra.mxu0 0.0
        %1714 = vmatprep.mubr.f32.mxu0 0.0
        %1715 = vmatmul.mubr.f32.gmra.mxu0 %v1595
        %v1716 = vpop.f32.mrf.mxu0
        %v1717 = vadd.f32 0.0, %v1716
        %v1718 = vpop.f32.mrf.mxu0
        %v1719 = vadd.f32 0.0, %v1718
        %1720 = vdwg.mxu0
        %1721 = vmatprep.subr.mxu0 0.0
        %1722 = vmatpush1.msra.mxu0 %v1649
        %1723 = vmatprep.subr.mxu0 0.0
        %1724 = vmatpush1.msra.mxu0 %v1646
        %1725 = vmatprep.subr.mxu0 0.0
        %1726 = vmatpush1.msra.mxu0 %v1643
        %1727 = vmatprep.subr.mxu0 0.0
        %1728 = vmatpush1.msra.mxu0 %v1640
        %1729 = vmatprep.subr.mxu0 0.0
        %1730 = vmatpush1.msra.mxu0 %v1637
        %1731 = vmatprep.subr.mxu0 0.0
        %1732 = vmatpush1.msra.mxu0 %v1634
        %1733 = vmatprep.subr.mxu0 0.0
        %1734 = vmatpush1.msra.mxu0 %v1631
        %1735 = vmatprep.subr.mxu0 0.0
        %1736 = vmatpush1.msra.mxu0 %v1628
        %1737 = vmatprep.subr.mxu0 0.0
        %1738 = vmatpush1.msra.mxu0 %v1625
        %1739 = vmatprep.subr.mxu0 0.0
        %1740 = vmatpush1.msra.mxu0 %v1622
        %1741 = vmatprep.subr.mxu0 0.0
        %1742 = vmatpush1.msra.mxu0 %v1619
        %1743 = vmatprep.subr.mxu0 0.0
        %1744 = vmatpush1.msra.mxu0 %v1616
        %1745 = vmatprep.subr.mxu0 0.0
        %1746 = vmatpush1.msra.mxu0 %v1613
        %1747 = vmatprep.subr.mxu0 0.0
        %1748 = vmatpush1.msra.mxu0 %v1610
        %1749 = vmatprep.subr.mxu0 0.0
        %1750 = vmatpush1.msra.mxu0 %v1607
        %1751 = vmatprep.subr.mxu0 0.0
        %1752 = vmatpush1.msra.mxu0 %v1604
        %1753 = vmatprep.subr.mxu0 0.0
        %1754 = vmatpush2.msra.mxu0 0.0
        %1755 = vmatprep.subr.mxu0 0.0
        %1756 = vmatpush2.msra.mxu0 0.0
        %1757 = vmatprep.subr.mxu0 0.0
        %1758 = vmatpush2.msra.mxu0 0.0
        %1759 = vmatprep.subr.mxu0 0.0
        %1760 = vmatpush2.msra.mxu0 0.0
        %1761 = vmatprep.subr.mxu0 0.0
        %1762 = vmatpush2.msra.mxu0 0.0
        %1763 = vmatprep.subr.mxu0 0.0
        %1764 = vmatpush2.msra.mxu0 0.0
        %1765 = vmatprep.subr.mxu0 0.0
        %1766 = vmatpush2.msra.mxu0 0.0
        %1767 = vmatprep.subr.mxu0 0.0
        %1768 = vmatpush2.msra.mxu0 0.0
        %1769 = vmatprep.subr.mxu0 0.0
        %1770 = vmatpush2.msra.mxu0 0.0
        %1771 = vmatprep.subr.mxu0 0.0
        %1772 = vmatpush2.msra.mxu0 0.0
        %1773 = vmatprep.subr.mxu0 0.0
        %1774 = vmatpush2.msra.mxu0 0.0
        %1775 = vmatprep.subr.mxu0 0.0
        %1776 = vmatpush2.msra.mxu0 0.0
        %1777 = vmatprep.subr.mxu0 0.0
        %1778 = vmatpush2.msra.mxu0 0.0
        %1779 = vmatprep.subr.mxu0 0.0
        %1780 = vmatpush2.msra.mxu0 0.0
        %1781 = vmatprep.subr.mxu0 0.0
        %1782 = vmatpush2.msra.mxu0 0.0
        %1783 = vmatprep.subr.mxu0 0.0
        %1784 = vmatpush2.msra.mxu0 0.0
        %1785 = vmatprep.mubr.f32.mxu0 0.0
        %1786 = vmatmul.mubr.f32.gmra.mxu0 %v1595
        %v1787 = vpop.f32.mrf.mxu0
        %v1788 = vadd.f32 0.0, %v1787
        %v1789 = vpop.f32.mrf.mxu0
        %1790 = vdwg.mxu0
        %v1791 = vadd.f32 %v1599, %v1717
        %v1792 = vxor.u32 %v1791, 2147483648
        %v1793 = vmul.f32 %v1792, 1.442695
        %v1794 = vpow.pop %v1793
        %v1795 = vadd.f32 %v1794, 1.0
        %v1796 = vrcp.pop %v1795
        %v1797 = vmul.f32 1.0, %v1796
        %v1798 = vadd.f32 %v1600, %v1719
        %v1799 = vxor.u32 %v1798, 2147483648
        %v1800 = vmul.f32 %v1799, 1.442695
        %v1801 = vpow.pop %v1800
        %v1802 = vadd.f32 %v1801, 1.0
        %v1803 = vrcp.pop %v1802
        %v1804 = vmul.f32 1.0, %v1803
        %v1805 = vadd.f32 %v1788, %v502
        %v1806 = vmul.f32 %v1797, %v1805
        %v1807 = vadd.f32 %v1601, %v1806
        %v1808 = vtanh.pop %v1807
        %v1809 = vsub.f32 1.0, %v1804
        %v1810 = vmul.f32 %v1809, %v1808
        %v1811 = vmul.f32 %v1804, %v1595
        %v1812 = vadd.f32 %v1810, %v1811
        %s1813 = scalar_lea.vmem [#allocation3], 48
        %1814 = vst [vmem:[%s1813] sm:$0xff] %v1812
        %s1815 = scalar_lea.vmem %s276, 168
        %v1816 = vld [vmem:[%s1815] sm:$0xff]
        %v1817 = vld [vmem:[%s1815 + $0x8] sm:$0xff]
        %v1818 = vld [vmem:[%s1815 + $0x10] sm:$0xff]
        %v1819 = vld [vmem:[%s2] sm:$0xff]
        %v1820 = vld [vmem:[%s2 + $0x8] sm:$0xff]
        %v1821 = vld [vmem:[%s2 + $0x10] sm:$0xff]
        %v1822 = vld [vmem:[%s2 + $0x18] sm:$0xff]
        %v1823 = vld [vmem:[%s2 + $0x20] sm:$0xff]
        %v1824 = vld [vmem:[%s2 + $0x28] sm:$0xff]
        %v1825 = vld [vmem:[%s2 + $0x30] sm:$0xff]
        %v1826 = vld [vmem:[%s2 + $0x38] sm:$0xff]
        %v1827 = vld [vmem:[%s2 + $0x40] sm:$0xff]
        %v1828 = vld [vmem:[%s2 + $0x48] sm:$0xff]
        %v1829 = vld [vmem:[%s2 + $0x50] sm:$0xff]
        %v1830 = vld [vmem:[%s2 + $0x58] sm:$0xff]
        %v1831 = vld [vmem:[%s2 + $0x60] sm:$0xff]
        %v1832 = vld [vmem:[%s2 + $0x68] sm:$0xff]
        %v1833 = vld [vmem:[%s2 + $0x70] sm:$0xff]
        %v1834 = vld [vmem:[%s2 + $0x78] sm:$0xff]
        %v1835 = vld [vmem:[%s2 + $0x80] sm:$0xff]
        %v1836 = vld [vmem:[%s2 + $0x88] sm:$0xff]
        %v1837 = vld [vmem:[%s2 + $0x90] sm:$0xff]
        %v1838 = vld [vmem:[%s2 + $0x98] sm:$0xff]
        %v1839 = vld [vmem:[%s2 + $0xa0] sm:$0xff]
        %v1840 = vld [vmem:[%s2 + $0xa8] sm:$0xff]
        %v1841 = vld [vmem:[%s2 + $0xb0] sm:$0xff]
        %v1842 = vld [vmem:[%s2 + $0xb8] sm:$0xff]
        %v1843 = vld [vmem:[%s2 + $0xc0] sm:$0xff]
        %v1844 = vld [vmem:[%s2 + $0xc8] sm:$0xff]
        %v1845 = vld [vmem:[%s2 + $0xd0] sm:$0xff]
        %v1846 = vld [vmem:[%s2 + $0xd8] sm:$0xff]
        %v1847 = vld [vmem:[%s2 + $0xe0] sm:$0xff]
        %v1848 = vld [vmem:[%s2 + $0xe8] sm:$0xff]
        %v1849 = vld [vmem:[%s2 + $0xf0] sm:$0xff]
        %v1850 = vld [vmem:[%s2 + $0xf8] sm:$0xff]
        %v1851 = vld [vmem:[%s2 + $0x100] sm:$0xff]
        %v1852 = vld [vmem:[%s2 + $0x108] sm:$0xff]
        %v1853 = vld [vmem:[%s2 + $0x110] sm:$0xff]
        %v1854 = vld [vmem:[%s2 + $0x118] sm:$0xff]
        %v1855 = vld [vmem:[%s2 + $0x120] sm:$0xff]
        %v1856 = vld [vmem:[%s2 + $0x128] sm:$0xff]
        %v1857 = vld [vmem:[%s2 + $0x130] sm:$0xff]
        %v1858 = vld [vmem:[%s2 + $0x138] sm:$0xff]
        %v1859 = vld [vmem:[%s2 + $0x140] sm:$0xff]
        %v1860 = vld [vmem:[%s2 + $0x148] sm:$0xff]
        %v1861 = vld [vmem:[%s2 + $0x150] sm:$0xff]
        %v1862 = vld [vmem:[%s2 + $0x158] sm:$0xff]
        %v1863 = vld [vmem:[%s2 + $0x160] sm:$0xff]
        %v1864 = vld [vmem:[%s2 + $0x168] sm:$0xff]
        %v1865 = vld [vmem:[%s2 + $0x170] sm:$0xff]
        %v1866 = vld [vmem:[%s2 + $0x178] sm:$0xff]
        %1867 = vmatprep.subr.mxu0 %v1865
        %1868 = vmatpush1.msra.mxu0 %v1864
        %1869 = vmatprep.subr.mxu0 %v1862
        %1870 = vmatpush1.msra.mxu0 %v1861
        %1871 = vmatprep.subr.mxu0 %v1859
        %1872 = vmatpush1.msra.mxu0 %v1858
        %1873 = vmatprep.subr.mxu0 %v1856
        %1874 = vmatpush1.msra.mxu0 %v1855
        %1875 = vmatprep.subr.mxu0 %v1853
        %1876 = vmatpush1.msra.mxu0 %v1852
        %1877 = vmatprep.subr.mxu0 %v1850
        %1878 = vmatpush1.msra.mxu0 %v1849
        %1879 = vmatprep.subr.mxu0 %v1847
        %1880 = vmatpush1.msra.mxu0 %v1846
        %1881 = vmatprep.subr.mxu0 %v1844
        %1882 = vmatpush1.msra.mxu0 %v1843
        %1883 = vmatprep.subr.mxu0 %v1841
        %1884 = vmatpush1.msra.mxu0 %v1840
        %1885 = vmatprep.subr.mxu0 %v1838
        %1886 = vmatpush1.msra.mxu0 %v1837
        %1887 = vmatprep.subr.mxu0 %v1835
        %1888 = vmatpush1.msra.mxu0 %v1834
        %1889 = vmatprep.subr.mxu0 %v1832
        %1890 = vmatpush1.msra.mxu0 %v1831
        %1891 = vmatprep.subr.mxu0 %v1829
        %1892 = vmatpush1.msra.mxu0 %v1828
        %1893 = vmatprep.subr.mxu0 %v1826
        %1894 = vmatpush1.msra.mxu0 %v1825
        %1895 = vmatprep.subr.mxu0 %v1823
        %1896 = vmatpush1.msra.mxu0 %v1822
        %1897 = vmatprep.subr.mxu0 %v1820
        %1898 = vmatpush1.msra.mxu0 %v1819
        %1899 = vmatprep.subr.mxu0 0.0
        %1900 = vmatpush2.msra.mxu0 0.0
        %1901 = vmatprep.subr.mxu0 0.0
        %1902 = vmatpush2.msra.mxu0 0.0
        %1903 = vmatprep.subr.mxu0 0.0
        %1904 = vmatpush2.msra.mxu0 0.0
        %1905 = vmatprep.subr.mxu0 0.0
        %1906 = vmatpush2.msra.mxu0 0.0
        %1907 = vmatprep.subr.mxu0 0.0
        %1908 = vmatpush2.msra.mxu0 0.0
        %1909 = vmatprep.subr.mxu0 0.0
        %1910 = vmatpush2.msra.mxu0 0.0
        %1911 = vmatprep.subr.mxu0 0.0
        %1912 = vmatpush2.msra.mxu0 0.0
        %1913 = vmatprep.subr.mxu0 0.0
        %1914 = vmatpush2.msra.mxu0 0.0
        %1915 = vmatprep.subr.mxu0 0.0
        %1916 = vmatpush2.msra.mxu0 0.0
        %1917 = vmatprep.subr.mxu0 0.0
        %1918 = vmatpush2.msra.mxu0 0.0
        %1919 = vmatprep.subr.mxu0 0.0
        %1920 = vmatpush2.msra.mxu0 0.0
        %1921 = vmatprep.subr.mxu0 0.0
        %1922 = vmatpush2.msra.mxu0 0.0
        %1923 = vmatprep.subr.mxu0 0.0
        %1924 = vmatpush2.msra.mxu0 0.0
        %1925 = vmatprep.subr.mxu0 0.0
        %1926 = vmatpush2.msra.mxu0 0.0
        %1927 = vmatprep.subr.mxu0 0.0
        %1928 = vmatpush2.msra.mxu0 0.0
        %1929 = vmatprep.subr.mxu0 0.0
        %1930 = vmatpush2.msra.mxu0 0.0
        %1931 = vmatprep.mubr.f32.mxu0 0.0
        %1932 = vmatmul.mubr.f32.gmra.mxu0 %v1812
        %v1933 = vpop.f32.mrf.mxu0
        %v1934 = vadd.f32 0.0, %v1933
        %v1935 = vpop.f32.mrf.mxu0
        %v1936 = vadd.f32 0.0, %v1935
        %1937 = vdwg.mxu0
        %1938 = vmatprep.subr.mxu0 0.0
        %1939 = vmatpush1.msra.mxu0 %v1866
        %1940 = vmatprep.subr.mxu0 0.0
        %1941 = vmatpush1.msra.mxu0 %v1863
        %1942 = vmatprep.subr.mxu0 0.0
        %1943 = vmatpush1.msra.mxu0 %v1860
        %1944 = vmatprep.subr.mxu0 0.0
        %1945 = vmatpush1.msra.mxu0 %v1857
        %1946 = vmatprep.subr.mxu0 0.0
        %1947 = vmatpush1.msra.mxu0 %v1854
        %1948 = vmatprep.subr.mxu0 0.0
        %1949 = vmatpush1.msra.mxu0 %v1851
        %1950 = vmatprep.subr.mxu0 0.0
        %1951 = vmatpush1.msra.mxu0 %v1848
        %1952 = vmatprep.subr.mxu0 0.0
        %1953 = vmatpush1.msra.mxu0 %v1845
        %1954 = vmatprep.subr.mxu0 0.0
        %1955 = vmatpush1.msra.mxu0 %v1842
        %1956 = vmatprep.subr.mxu0 0.0
        %1957 = vmatpush1.msra.mxu0 %v1839
        %1958 = vmatprep.subr.mxu0 0.0
        %1959 = vmatpush1.msra.mxu0 %v1836
        %1960 = vmatprep.subr.mxu0 0.0
        %1961 = vmatpush1.msra.mxu0 %v1833
        %1962 = vmatprep.subr.mxu0 0.0
        %1963 = vmatpush1.msra.mxu0 %v1830
        %1964 = vmatprep.subr.mxu0 0.0
        %1965 = vmatpush1.msra.mxu0 %v1827
        %1966 = vmatprep.subr.mxu0 0.0
        %1967 = vmatpush1.msra.mxu0 %v1824
        %1968 = vmatprep.subr.mxu0 0.0
        %1969 = vmatpush1.msra.mxu0 %v1821
        %1970 = vmatprep.subr.mxu0 0.0
        %1971 = vmatpush2.msra.mxu0 0.0
        %1972 = vmatprep.subr.mxu0 0.0
        %1973 = vmatpush2.msra.mxu0 0.0
        %1974 = vmatprep.subr.mxu0 0.0
        %1975 = vmatpush2.msra.mxu0 0.0
        %1976 = vmatprep.subr.mxu0 0.0
        %1977 = vmatpush2.msra.mxu0 0.0
        %1978 = vmatprep.subr.mxu0 0.0
        %1979 = vmatpush2.msra.mxu0 0.0
        %1980 = vmatprep.subr.mxu0 0.0
        %1981 = vmatpush2.msra.mxu0 0.0
        %1982 = vmatprep.subr.mxu0 0.0
        %1983 = vmatpush2.msra.mxu0 0.0
        %1984 = vmatprep.subr.mxu0 0.0
        %1985 = vmatpush2.msra.mxu0 0.0
        %1986 = vmatprep.subr.mxu0 0.0
        %1987 = vmatpush2.msra.mxu0 0.0
        %1988 = vmatprep.subr.mxu0 0.0
        %1989 = vmatpush2.msra.mxu0 0.0
        %1990 = vmatprep.subr.mxu0 0.0
        %1991 = vmatpush2.msra.mxu0 0.0
        %1992 = vmatprep.subr.mxu0 0.0
        %1993 = vmatpush2.msra.mxu0 0.0
        %1994 = vmatprep.subr.mxu0 0.0
        %1995 = vmatpush2.msra.mxu0 0.0
        %1996 = vmatprep.subr.mxu0 0.0
        %1997 = vmatpush2.msra.mxu0 0.0
        %1998 = vmatprep.subr.mxu0 0.0
        %1999 = vmatpush2.msra.mxu0 0.0
        %2000 = vmatprep.subr.mxu0 0.0
        %2001 = vmatpush2.msra.mxu0 0.0
        %2002 = vmatprep.mubr.f32.mxu0 0.0
        %2003 = vmatmul.mubr.f32.gmra.mxu0 %v1812
        %v2004 = vpop.f32.mrf.mxu0
        %v2005 = vadd.f32 0.0, %v2004
        %v2006 = vpop.f32.mrf.mxu0
        %2007 = vdwg.mxu0
        %v2008 = vadd.f32 %v1816, %v1934
        %v2009 = vxor.u32 %v2008, 2147483648
        %v2010 = vmul.f32 %v2009, 1.442695
        %v2011 = vpow.pop %v2010
        %v2012 = vadd.f32 %v2011, 1.0
        %v2013 = vrcp.pop %v2012
        %v2014 = vmul.f32 1.0, %v2013
        %v2015 = vadd.f32 %v1817, %v1936
        %v2016 = vxor.u32 %v2015, 2147483648
        %v2017 = vmul.f32 %v2016, 1.442695
        %v2018 = vpow.pop %v2017
        %v2019 = vadd.f32 %v2018, 1.0
        %v2020 = vrcp.pop %v2019
        %v2021 = vmul.f32 1.0, %v2020
        %v2022 = vadd.f32 %v2005, %v502
        %v2023 = vmul.f32 %v2014, %v2022
        %v2024 = vadd.f32 %v1818, %v2023
        %v2025 = vtanh.pop %v2024
        %v2026 = vsub.f32 1.0, %v2021
        %v2027 = vmul.f32 %v2026, %v2025
        %v2028 = vmul.f32 %v2021, %v1812
        %v2029 = vadd.f32 %v2027, %v2028
        %s2030 = scalar_lea.vmem [#allocation3], 56
        %2031 = vst [vmem:[%s2030] sm:$0xff] %v2029
        %2032 = vst [vmem:[#allocation2] sm:$0xff] %v2029
        %v2033 = vld [vmem:[#allocation3] sm:$0xff]
        %v2034 = vld [vmem:[#allocation3 + $0x8] sm:$0xff]
        %v2035 = vld [vmem:[#allocation3 + $0x10] sm:$0xff]
        %v2036 = vld [vmem:[#allocation3 + $0x18] sm:$0xff]
        %v2037 = vld [vmem:[#allocation3 + $0x20] sm:$0xff]
        %v2038 = vld [vmem:[#allocation3 + $0x28] sm:$0xff]
        %v2039 = vld [vmem:[#allocation3 + $0x30] sm:$0xff]
        %v2040 = vld [vmem:[#allocation3 + $0x38] sm:$0xff]
        %v2041 = vld [vmem:[%s4] sm:$0xff]
        %v2042 = vld [vmem:[%s4 + $0x8] sm:$0xff]
        %v2043 = vld [vmem:[%s4 + $0x10] sm:$0xff]
        %v2044 = vld [vmem:[%s4 + $0x18] sm:$0xff]
        %v2045 = vld [vmem:[%s4 + $0x20] sm:$0xff]
        %v2046 = vld [vmem:[%s4 + $0x28] sm:$0xff]
        %v2047 = vld [vmem:[%s4 + $0x30] sm:$0xff]
        %v2048 = vld [vmem:[%s4 + $0x38] sm:$0xff]
        %v2049 = vld [vmem:[%s4 + $0x40] sm:$0xff]
        %v2050 = vld [vmem:[%s4 + $0x48] sm:$0xff]
        %v2051 = vld [vmem:[%s4 + $0x50] sm:$0xff]
        %v2052 = vld [vmem:[%s4 + $0x58] sm:$0xff]
        %v2053 = vld [vmem:[%s4 + $0x60] sm:$0xff]
        %v2054 = vld [vmem:[%s4 + $0x68] sm:$0xff]
        %v2055 = vld [vmem:[%s4 + $0x70] sm:$0xff]
        %v2056 = vld [vmem:[%s4 + $0x78] sm:$0xff]
        %v2057 = vld [vmem:[%s5] sm:$0x1]
        %v2059 = vlaneseq
        %v2060 = vshrl.u32 %v2059, 7
        %v2061 = vsub.s32 0, %v2060
        %v2062 = vrot.slane %v2057, %v2061
        %2064 = vmatprep.subr.mxu0 0.0
        %2065 = vmatpush1.msra.mxu0 %v2056
        %2066 = vmatprep.subr.mxu0 0.0
        %2067 = vmatpush1.msra.mxu0 %v2055
        %2068 = vmatprep.subr.mxu0 0.0
        %2069 = vmatpush1.msra.mxu0 %v2054
        %2070 = vmatprep.subr.mxu0 0.0
        %2071 = vmatpush1.msra.mxu0 %v2053
        %2072 = vmatprep.subr.mxu0 0.0
        %2073 = vmatpush1.msra.mxu0 %v2052
        %2074 = vmatprep.subr.mxu0 0.0
        %2075 = vmatpush1.msra.mxu0 %v2051
        %2076 = vmatprep.subr.mxu0 0.0
        %2077 = vmatpush1.msra.mxu0 %v2050
        %2078 = vmatprep.subr.mxu0 0.0
        %2079 = vmatpush1.msra.mxu0 %v2049
        %2080 = vmatprep.subr.mxu0 0.0
        %2081 = vmatpush1.msra.mxu0 %v2048
        %2082 = vmatprep.subr.mxu0 0.0
        %2083 = vmatpush1.msra.mxu0 %v2047
        %2084 = vmatprep.subr.mxu0 0.0
        %2085 = vmatpush1.msra.mxu0 %v2046
        %2086 = vmatprep.subr.mxu0 0.0
        %2087 = vmatpush1.msra.mxu0 %v2045
        %2088 = vmatprep.subr.mxu0 0.0
        %2089 = vmatpush1.msra.mxu0 %v2044
        %2090 = vmatprep.subr.mxu0 0.0
        %2091 = vmatpush1.msra.mxu0 %v2043
        %2092 = vmatprep.subr.mxu0 0.0
        %2093 = vmatpush1.msra.mxu0 %v2042
        %2094 = vmatprep.subr.mxu0 0.0
        %2095 = vmatpush1.msra.mxu0 %v2041
        %2096 = vmatprep.subr.mxu0 0.0
        %2097 = vmatpush2.msra.mxu0 0.0
        %2098 = vmatprep.subr.mxu0 0.0
        %2099 = vmatpush2.msra.mxu0 0.0
        %2100 = vmatprep.subr.mxu0 0.0
        %2101 = vmatpush2.msra.mxu0 0.0
        %2102 = vmatprep.subr.mxu0 0.0
        %2103 = vmatpush2.msra.mxu0 0.0
        %2104 = vmatprep.subr.mxu0 0.0
        %2105 = vmatpush2.msra.mxu0 0.0
        %2106 = vmatprep.subr.mxu0 0.0
        %2107 = vmatpush2.msra.mxu0 0.0
        %2108 = vmatprep.subr.mxu0 0.0
        %2109 = vmatpush2.msra.mxu0 0.0
        %2110 = vmatprep.subr.mxu0 0.0
        %2111 = vmatpush2.msra.mxu0 0.0
        %2112 = vmatprep.subr.mxu0 0.0
        %2113 = vmatpush2.msra.mxu0 0.0
        %2114 = vmatprep.subr.mxu0 0.0
        %2115 = vmatpush2.msra.mxu0 0.0
        %2116 = vmatprep.subr.mxu0 0.0
        %2117 = vmatpush2.msra.mxu0 0.0
        %2118 = vmatprep.subr.mxu0 0.0
        %2119 = vmatpush2.msra.mxu0 0.0
        %2120 = vmatprep.subr.mxu0 0.0
        %2121 = vmatpush2.msra.mxu0 0.0
        %2122 = vmatprep.subr.mxu0 0.0
        %2123 = vmatpush2.msra.mxu0 0.0
        %2124 = vmatprep.subr.mxu0 0.0
        %2125 = vmatpush2.msra.mxu0 0.0
        %2126 = vmatprep.subr.mxu0 0.0
        %2127 = vmatpush2.msra.mxu0 0.0
        %2128 = vmatprep.mubr.f32.mxu0 0.0
        %2129 = vmatmul.mubr.f32.gmra.mxu0 %v2033
        %v2130 = vpop.f32.mrf.mxu0
        %v2131 = vadd.f32 %v2062, %v2130
        %v2132 = vpop.f32.mrf.mxu0
        %2133 = vmatprep.mubr.f32.mxu0 0.0
        %2134 = vmatmul.mubr.f32.gmra.mxu0 %v2034
        %v2135 = vpop.f32.mrf.mxu0
        %v2136 = vadd.f32 %v2062, %v2135
        %v2137 = vpop.f32.mrf.mxu0
        %2138 = vmatprep.mubr.f32.mxu0 0.0
        %2139 = vmatmul.mubr.f32.gmra.mxu0 %v2035
        %v2140 = vpop.f32.mrf.mxu0
        %v2141 = vadd.f32 %v2062, %v2140
        %v2142 = vpop.f32.mrf.mxu0
        %2143 = vmatprep.mubr.f32.mxu0 0.0
        %2144 = vmatmul.mubr.f32.gmra.mxu0 %v2036
        %v2145 = vpop.f32.mrf.mxu0
        %v2146 = vadd.f32 %v2062, %v2145
        %v2147 = vpop.f32.mrf.mxu0
        %2148 = vmatprep.mubr.f32.mxu0 0.0
        %2149 = vmatmul.mubr.f32.gmra.mxu0 %v2037
        %v2150 = vpop.f32.mrf.mxu0
        %v2151 = vadd.f32 %v2062, %v2150
        %v2152 = vpop.f32.mrf.mxu0
        %2153 = vmatprep.mubr.f32.mxu0 0.0
        %2154 = vmatmul.mubr.f32.gmra.mxu0 %v2038
        %v2155 = vpop.f32.mrf.mxu0
        %v2156 = vadd.f32 %v2062, %v2155
        %v2157 = vpop.f32.mrf.mxu0
        %2158 = vmatprep.mubr.f32.mxu0 0.0
        %2159 = vmatmul.mubr.f32.gmra.mxu0 %v2039
        %v2160 = vpop.f32.mrf.mxu0
        %v2161 = vadd.f32 %v2062, %v2160
        %v2162 = vpop.f32.mrf.mxu0
        %2163 = vmatprep.mubr.f32.mxu0 0.0
        %2164 = vmatmul.mubr.f32.gmra.mxu0 %v2040
        %v2165 = vpop.f32.mrf.mxu0
        %v2166 = vadd.f32 %v2062, %v2165
        %v2167 = vpop.f32.mrf.mxu0
        %2168 = vdwg.mxu0
        %vm2169 = vcmask 31744
        %2170 = vst.msk [vmem:[%s282] sm:$0xff] %vm2169, %v2131
        %2171 = vst.msk [vmem:[%s282 + $0x8] sm:$0xff] %vm2169, %v2136
        %2172 = vst.msk [vmem:[%s282 + $0x10] sm:$0xff] %vm2169, %v2141
        %2173 = vst.msk [vmem:[%s282 + $0x18] sm:$0xff] %vm2169, %v2146
        %2174 = vst.msk [vmem:[%s282 + $0x20] sm:$0xff] %vm2169, %v2151
        %2175 = vst.msk [vmem:[%s282 + $0x28] sm:$0xff] %vm2169, %v2156
        %2176 = vst.msk [vmem:[%s282 + $0x30] sm:$0xff] %vm2169, %v2161
        %2177 = vst.msk [vmem:[%s282 + $0x38] sm:$0xff] %vm2169, %v2166
        %p2178 = scmp.eq.s32.totalorder %s20, 1
        // Predicated region
        $region49: #{rnnlm_forward.3} parent=43 // pred_check
          %p2179 = pneg %p2178
        $region50: #{rnnlm_forward.3} parent=43 // pred_check_branch
          %2181 = sbr.rel (%p2179) target = $region52
        $region51: #{rnnlm_forward.3} parent=43 // pred_region
          %2182 = vst [vmem:[#allocation4] sm:$0xff] %v2029
        $region52: #{rnnlm_forward.3} parent=43 // pred_fallthru
          _
        %s2183 = smul.u32 8, %s20
        %p2184 = scmp.lt.s32.totalorder %s2183, 15
        %s2185 = scalar_select %p2184, %s2183, 15
        %s2186 = smul.addr %s2185, 8
        %s2187 = scalar_lea.vmem %s6, %s2186
        // Predicated region
        $region53: #{rnnlm_forward.3} parent=43 // pred_check
          %p2188 = pneg %p169
        $region54: #{rnnlm_forward.3} parent=43 // pred_check_branch
          %2190 = sbr.rel (%p2188) target = $region56
        $region55: #{rnnlm_forward.3} parent=43 // pred_region
          %s2191 = smul.u32 8, %s20
        $region56: #{rnnlm_forward.3} parent=43 // pred_fallthru
          _
        // Predicated region
        $region57: #{rnnlm_forward.3} parent=43 // pred_check
          %p2192 = pneg %p190
        $region58: #{rnnlm_forward.3} parent=43 // pred_check_branch
          %2194 = sbr.rel (%p2192) target = $region60
        $region59: #{rnnlm_forward.3} parent=43 // pred_region
          %s2196 = ssub.s32 128, 128
          %2197 = vsyncadd [#allocation5], %s2196
          %s2199 = sshll.u32 [#allocation4], 4
          %s2200 = int_to_ptr.vmem [resolvable:$true] %s2199
          %2202 = dma.vmem_to_hbm [thread:$0]  %s2200, 128, %s7, [#allocation5]
        $region60: #{rnnlm_forward.3} parent=43 // pred_fallthru
          _
        // Predicated region
        $region61: #{rnnlm_forward.3} parent=43 // pred_check
          %p2203 = pneg %p190
        $region62: #{rnnlm_forward.3} parent=43 // pred_check_branch
          %2205 = sbr.rel (%p2203) target = $region64
        $region63: #{rnnlm_forward.3} parent=43 // pred_region
          %2206 = dma.done [#allocation5], 128
        $region64: #{rnnlm_forward.3} parent=43 // pred_fallthru
          _
      $region44: #{rnnlm_forward.3} parent=5 // pred_fallthru
        _
      %p2207 = scmp.le.s32.totalorder 2, %s15
      // Predicated region
      $region65: #{rnnlm_forward.3} parent=5 // pred_check
        %p2208 = pneg %p2207
      $region66: #{rnnlm_forward.3} parent=5 // pred_check_branch
        %2210 = sbr.rel (%p2208) target = $region68
      $region67: #{rnnlm_forward.3} parent=5 // pred_region
        %s2211 = ssub.s32 %s15, 2
        // Predicated region
        $region69: #{rnnlm_forward.3} parent=67 // pred_check
          %p2212 = pneg %p175
        $region70: #{rnnlm_forward.3} parent=67 // pred_check_branch
          %2214 = sbr.rel (%p2212) target = $region72
        $region71: #{rnnlm_forward.3} parent=67 // pred_region
          %s2215 = smul.u32 8, %s21
          %p2216 = scmp.lt.s32.totalorder %s2215, 15
          %s2217 = scalar_select %p2216, %s2215, 15
          %s2218 = smul.addr %s2217, 8
          %s2219 = scalar_lea.vmem %s6, %s2218
        $region72: #{rnnlm_forward.3} parent=67 // pred_fallthru
          _
      $region68: #{rnnlm_forward.3} parent=5 // pred_fallthru
        _
    $region6: #{rnnlm_forward.3} parent=1 // loop_footer
      %s19 = sadd.s32 1, %s15
    $region7: #{rnnlm_forward.3} parent=1 // loop_footer_branch
      %14 = sbr.rel target = $region3
    $region8: #{rnnlm_forward.3} parent=1 // loop_exit
      _
    %2220 = vsyncpa [#allocation5], 1
    %s2221 = scalar_lea.sflag [#allocation5], 1
    %2222 = vsyncpa %s2221, 1

</llo_original>
